<compile_context>
chip_gen: v5e
topology: v5e:2x2
jax: 0.10.0
libtpu: 0.0.40
codegen_flags: <defaults>
</compile_context>

<pallas_src>
import math
import numpy as np

import jax
import jax.numpy as jnp
from jax.experimental import pallas as pl
from jax.experimental.pallas import tpu as pltpu


# ----------------------------------------------------------------------------
# Pallas kernel: fused gc1 + gc2
#   y1 = relu( adj_n @ ((posw*x ) @ W1) + b1 )
#   y2 = relu( adj_n @ ((posw*y1) @ W2) + b2 ) * mask
# where adj_n = adj * 1/(rowsum(adj)+1)  (row-normalized adjacency).
# ----------------------------------------------------------------------------
def gcn2_kernel(posw_ref, mask_ref, x_ref, adj_ref,
                w1_ref, b1_ref, w2_ref, b2_ref, o_ref):
    posw = posw_ref[0]     # (S, 1) f32
    maskv = mask_ref[0]    # (S, 1) f32
    x = x_ref[0]           # (S, D) f32
    adj = adj_ref[0]       # (S, S) f32
    w1 = w1_ref[...]       # (D, D) bf16
    b1 = b1_ref[...]       # (1, D) f32
    w2 = w2_ref[...]       # (D, D) bf16
    b2 = b2_ref[...]       # (1, D) f32

    # Row-normalized adjacency:  (adj @ h) / (rowsum(adj)+1) == (adj*inv) @ h
    denom = jnp.sum(adj, axis=1, keepdims=True) + 1.0          # (S, 1)
    adj_n = adj * pl.reciprocal(denom, approx=True)            # (S, S) f32

    # ---- layer 1 ----
    xw1 = (x * posw).astype(jnp.bfloat16)                      # f32 epilogue, bf16 MXU in
    h1 = jnp.dot(xw1, w1, preferred_element_type=jnp.float32)  # (S, D) f32
    y1 = jnp.dot(adj_n, h1, preferred_element_type=jnp.float32) + b1
    y1 = jnp.maximum(y1, 0.0)                                  # relu (f32)

    # ---- layer 2 (position weight applied again, as in the PyTorch forward) ----
    xw2 = (y1 * posw).astype(jnp.bfloat16)
    h2 = jnp.dot(xw2, w2, preferred_element_type=jnp.float32)
    y2 = jnp.dot(adj_n, h2, preferred_element_type=jnp.float32) + b2
    y2 = jnp.maximum(y2, 0.0) * maskv                          # relu + final mask

    o_ref[0] = y2


def fused_gcn2(x, adj, posw, maskv, W1, b1, W2, b2):
    """relu(gc2(posw*relu(gc1(posw*x, adj)), adj)) * maskv — single kernel."""
    B, S, D = x.shape
    posw3 = posw.reshape(B, S, 1).astype(jnp.float32)
    mask3 = maskv.reshape(B, S, 1).astype(jnp.float32)
    b1r = b1.reshape(1, D).astype(jnp.float32)
    b2r = b2.reshape(1, D).astype(jnp.float32)
    w1b = W1.astype(jnp.bfloat16)
    w2b = W2.astype(jnp.bfloat16)

    # Advisory cost hint (2 layers, 2 matmuls per layer, per batch element).
    flops = 4 * B * (S * D * D + S * S * D)
    bytes_accessed = (2 * D * D * 2            # W1, W2 in bf16
                      + 2 * D * 4              # biases
                      + B * (2 * S * D * 4     # x in + y out
                             + S * S * 4       # adj
                             + 2 * S * 4))     # posw + mask
    cost = pl.CostEstimate(flops=flops, transcendentals=B * S,
                           bytes_accessed=bytes_accessed)

    return pl.pallas_call(
        gcn2_kernel,
        out_shape=jax.ShapeDtypeStruct((B, S, D), jnp.float32),
        grid_spec=pltpu.PrefetchScalarGridSpec(
            num_scalar_prefetch=0,
            grid=(B,),
            in_specs=[
                pl.BlockSpec((1, S, 1), lambda i: (i, 0, 0)),   # posw
                pl.BlockSpec((1, S, 1), lambda i: (i, 0, 0)),   # mask
                pl.BlockSpec((1, S, D), lambda i: (i, 0, 0)),   # x
                pl.BlockSpec((1, S, S), lambda i: (i, 0, 0)),   # adj
                pl.BlockSpec((D, D), lambda i: (0, 0)),         # W1 (constant index -> one DMA)
                pl.BlockSpec((1, D), lambda i: (0, 0)),         # b1
                pl.BlockSpec((D, D), lambda i: (0, 0)),         # W2
                pl.BlockSpec((1, D), lambda i: (0, 0)),         # b2
            ],
            out_specs=pl.BlockSpec((1, S, D), lambda i: (i, 0, 0)),
        ),
        compiler_params=pltpu.CompilerParams(
            dimension_semantics=("parallel",)),                 # v7x: 1 batch per TC
        cost_estimate=cost,
    )(posw3, mask3, x.astype(jnp.float32), adj.astype(jnp.float32),
      w1b, b1r, w2b, b2r)


# ----------------------------------------------------------------------------
# Host-side (numpy) replica of GCNModel.position_weight's weight computation.
# Depends only on (seq_len, text_len, target_tags); the multiply with x is
# fused into the Pallas kernel above.
# TODO(synk): data-dependent Python scalar loops — kept on host (no clean
#             Pallas equivalent, and it is not the hot path).
# ----------------------------------------------------------------------------
def position_weight_np(seq_len, text_len, target_tags):
    batch_size = text_len.shape[0]
    weight = np.zeros((batch_size, seq_len), dtype=np.float64)
    for i in range(batch_size):
        tl = int(text_len[i])
        context_num = 0
        target_num = 0
        for j in range(1, tl):
            if target_tags[i][j] == 0:
                context_num += 1
            else:
                target_num += 1
        if target_num == 0 or context_num == tl - 2:
            weight[i, :] = 1.0
        else:
            temp_weight = []
            context_len = seq_len - 2
            for j in range(1, tl):
                if target_tags[i][j] != 0:
                    tw = np.zeros(tl)
                    for k in range(1, j):
                        tw[k] = 1 - (j - k) / context_len
                    right_begin = j + 1
                    for k in range(right_begin, tl - 1):
                        tw[k] = 1 - (k - right_begin + 1) / context_len
                    temp_weight.append(tw)
            final_weight = np.zeros(seq_len)
            for j in range(tl):
                for k in range(len(temp_weight)):
                    final_weight[j] = final_weight[j] + temp_weight[k][j]
            final_weight = final_weight / len(temp_weight)
            for j in range(tl):
                if target_tags[i][j] != 0:
                    final_weight[j] = 0
            weight[i, :] = final_weight
    return weight.astype(np.float32)


# ----------------------------------------------------------------------------
# GCNModel forward (gc3 is initialized by the PyTorch module but never used
# in forward; we mirror that).
# ----------------------------------------------------------------------------
def gcn_model_forward(params, bert_feature, bert_tokens, target_tags,
                      sentence_adjs, mask):
    B, S, D = bert_feature.shape
    text_len = np.sum(np.asarray(bert_tokens) != 0, axis=-1)
    posw = jnp.asarray(
        position_weight_np(S, text_len, np.asarray(target_tags)))

    return fused_gcn2(bert_feature, sentence_adjs, posw,
                      mask.astype(jnp.float32),
                      params["w1"], params["b1"],
                      params["w2"], params["b2"])


# Pure-JAX f32 reference (matches the PyTorch math) for a correctness check.
def reference_forward(params, bert_feature, sentence_adjs, posw, mask):
    def gc(x, adj, W, b):
        hidden = jnp.matmul(x, W)
        denom = jnp.sum(adj, axis=2, keepdims=True) + 1.0
        return jnp.matmul(adj, hidden) / denom + b

    x = jax.nn.relu(gc(posw[:, :, None] * bert_feature, sentence_adjs,
                       params["w1"], params["b1"]))
    x = jax.nn.relu(gc(posw[:, :, None] * x, sentence_adjs,
                       params["w2"], params["b2"]))
    return x * mask[:, :, None]


if __name__ == "__main__":
    B, S, D = 2, 8, 768  # D=768 is hard-coded in the PyTorch module

    key = jax.random.PRNGKey(0)
    kw1, kb1, kw2, kb2, kw3, kb3, kfeat, kadj = jax.random.split(key, 8)

    stdv = 1.0 / math.sqrt(768.0)  # GraphConvolution.reset_parameters
    params = {
        "w1": jax.random.uniform(kw1, (D, D), jnp.float32, -stdv, stdv),
        "b1": jax.random.uniform(kb1, (D,), jnp.float32, -stdv, stdv),
        "w2": jax.random.uniform(kw2, (D, D), jnp.float32, -stdv, stdv),
        "b2": jax.random.uniform(kb2, (D,), jnp.float32, -stdv, stdv),
        # gc3 exists in __init__ but is unused in forward
        "w3": jax.random.uniform(kw3, (D, D), jnp.float32, -stdv, stdv),
        "b3": jax.random.uniform(kb3, (D,), jnp.float32, -stdv, stdv),
    }

    bert_feature = jax.random.normal(kfeat, (B, S, D), jnp.float32)
    bert_tokens = jnp.array([[101, 5, 7, 9, 2, 102, 0, 0],
                             [101, 3, 4, 5, 6, 7, 8, 102]], jnp.int32)
    target_tags = jnp.array([[0, 1, 1, 0, 0, 0, 0, 0],
                             [0, 0, 0, 1, 1, 0, 0, 0]], jnp.int32)
    sentence_adjs = jax.random.bernoulli(kadj, 0.5, (B, S, S)).astype(jnp.float32)
    sentence_adjs = jnp.maximum(sentence_adjs, jnp.eye(S)[None])  # self-loops
    mask = (bert_tokens != 0).astype(jnp.float32)

    out = gcn_model_forward(params, bert_feature, bert_tokens, target_tags,
                            sentence_adjs, mask)
    out = jax.block_until_ready(out)

    # Correctness check against a plain-JAX f32 reference of the same math.
    # (Kernel uses bf16 MXU operands with f32 accumulation -> small rounding.)
    text_len = np.sum(np.asarray(bert_tokens) != 0, axis=-1)
    posw = jnp.asarray(position_weight_np(S, text_len, np.asarray(target_tags)))
    ref = reference_forward(params, bert_feature, sentence_adjs, posw, mask)
    assert out.shape == (B, S, D) and out.dtype == jnp.float32
    assert bool(jnp.allclose(out, ref, atol=2e-2, rtol=2e-2)), "mismatch vs reference"

    print("KERNEL_OK")
</pallas_src>

<mosaic_0001>
module attributes {stable_mosaic.version = 11 : i64} {
  func.func @gcn2_kernel(%arg0: i32, %arg1: memref<1x8x1xf32, #tpu.memory_space<vmem>>, %arg2: memref<1x8x1xf32, #tpu.memory_space<vmem>>, %arg3: memref<1x8x768xf32, #tpu.memory_space<vmem>>, %arg4: memref<1x8x8xf32, #tpu.memory_space<vmem>>, %arg5: memref<768x768xbf16, #tpu.memory_space<vmem>>, %arg6: memref<1x768xf32, #tpu.memory_space<vmem>>, %arg7: memref<768x768xbf16, #tpu.memory_space<vmem>>, %arg8: memref<1x768xf32, #tpu.memory_space<vmem>>, %arg9: memref<1x8x768xf32, #tpu.memory_space<vmem>>) attributes {dimension_semantics = [#tpu.dimension_semantics<parallel>], iteration_bounds = array<i64: 2>, scalar_prefetch = 0 : i64, scratch_operands = 0 : i64, tpu.core_type = #tpu.core_type<tc>, window_params = [{transform_indices = @transform_0, window_bounds = array<i64: 1, 8, 1>}, {transform_indices = @transform_1, window_bounds = array<i64: 1, 8, 1>}, {transform_indices = @transform_2, window_bounds = array<i64: 1, 8, 768>}, {transform_indices = @transform_3, window_bounds = array<i64: 1, 8, 8>}, {pipeline_mode = #tpu.pipeline_mode<synchronous>, transform_indices = @transform_4, window_bounds = array<i64: 768, 768>}, {pipeline_mode = #tpu.pipeline_mode<synchronous>, transform_indices = @transform_5, window_bounds = array<i64: 1, 768>}, {pipeline_mode = #tpu.pipeline_mode<synchronous>, transform_indices = @transform_6, window_bounds = array<i64: 768, 768>}, {pipeline_mode = #tpu.pipeline_mode<synchronous>, transform_indices = @transform_7, window_bounds = array<i64: 1, 768>}, {transform_indices = @transform_8, window_bounds = array<i64: 1, 8, 768>}]} {
    %c0 = arith.constant 0 : index
    %c0_0 = arith.constant 0 : index
    %c0_1 = arith.constant 0 : index
    %0 = vector.load %arg1[%c0, %c0_0, %c0_1] : memref<1x8x1xf32, #tpu.memory_space<vmem>>, vector<1x8x1xf32>
    %1 = vector.shape_cast %0 : vector<1x8x1xf32> to vector<8x1xf32>
    %c0_2 = arith.constant 0 : index
    %c0_3 = arith.constant 0 : index
    %c0_4 = arith.constant 0 : index
    %2 = vector.load %arg2[%c0_2, %c0_3, %c0_4] : memref<1x8x1xf32, #tpu.memory_space<vmem>>, vector<1x8x1xf32>
    %3 = vector.shape_cast %2 : vector<1x8x1xf32> to vector<8x1xf32>
    %c0_5 = arith.constant 0 : index
    %c0_6 = arith.constant 0 : index
    %c0_7 = arith.constant 0 : index
    %4 = vector.load %arg3[%c0_5, %c0_6, %c0_7] : memref<1x8x768xf32, #tpu.memory_space<vmem>>, vector<1x8x768xf32>
    %5 = vector.shape_cast %4 : vector<1x8x768xf32> to vector<8x768xf32>
    %c0_8 = arith.constant 0 : index
    %c0_9 = arith.constant 0 : index
    %c0_10 = arith.constant 0 : index
    %6 = vector.load %arg4[%c0_8, %c0_9, %c0_10] : memref<1x8x8xf32, #tpu.memory_space<vmem>>, vector<1x8x8xf32>
    %7 = vector.shape_cast %6 : vector<1x8x8xf32> to vector<8x8xf32>
    %c0_11 = arith.constant 0 : index
    %c0_12 = arith.constant 0 : index
    %8 = vector.load %arg5[%c0_11, %c0_12] : memref<768x768xbf16, #tpu.memory_space<vmem>>, vector<768x768xbf16>
    %c0_13 = arith.constant 0 : index
    %c0_14 = arith.constant 0 : index
    %9 = vector.load %arg6[%c0_13, %c0_14] : memref<1x768xf32, #tpu.memory_space<vmem>>, vector<1x768xf32>
    %c0_15 = arith.constant 0 : index
    %c0_16 = arith.constant 0 : index
    %10 = vector.load %arg7[%c0_15, %c0_16] : memref<768x768xbf16, #tpu.memory_space<vmem>>, vector<768x768xbf16>
    %c0_17 = arith.constant 0 : index
    %c0_18 = arith.constant 0 : index
    %11 = vector.load %arg8[%c0_17, %c0_18] : memref<1x768xf32, #tpu.memory_space<vmem>>, vector<1x768xf32>
    %cst = arith.constant dense<0.000000e+00> : vector<8xf32>
    %12 = vector.multi_reduction <add>, %7, %cst [1] : vector<8x8xf32> to vector<8xf32>
    %13 = vector.shape_cast %12 : vector<8xf32> to vector<8x1xf32>
    %cst_19 = arith.constant 1.000000e+00 : f32
    %14 = vector.broadcast %cst_19 : f32 to vector<8x1xf32>
    %15 = arith.addf %13, %14 : vector<8x1xf32>
    %16 = tpu.reciprocal %15 {approx = true} : vector<8x1xf32> -> vector<8x1xf32>
    %17 = vector.broadcast %16 : vector<8x1xf32> to vector<8x8xf32>
    %18 = arith.mulf %7, %17 : vector<8x8xf32>
    %19 = vector.broadcast %1 : vector<8x1xf32> to vector<8x768xf32>
    %20 = arith.mulf %5, %19 : vector<8x768xf32>
    %21 = arith.truncf %20 : vector<8x768xf32> to vector<8x768xbf16>
    %cst_20 = arith.constant dense<0.000000e+00> : vector<8x768xf32>
    %22 = tpu.matmul %21, %8, %cst_20 {dimension_numbers = #tpu.dot_dimension_numbers<[1], [0], [0], [1], [0, 0, 1, 1], [], []>} : vector<8x768xbf16>, vector<768x768xbf16>, vector<8x768xf32> -> vector<8x768xf32>
    %cst_21 = arith.constant dense<0.000000e+00> : vector<8x768xf32>
    %23 = tpu.matmul %18, %22, %cst_21 {dimension_numbers = #tpu.dot_dimension_numbers<[1], [0], [0], [1], [0, 0, 1, 1], [], []>} : vector<8x8xf32>, vector<8x768xf32>, vector<8x768xf32> -> vector<8x768xf32>
    %24 = vector.broadcast %9 : vector<1x768xf32> to vector<8x768xf32>
    %25 = arith.addf %23, %24 : vector<8x768xf32>
    %cst_22 = arith.constant 0.000000e+00 : f32
    %26 = vector.broadcast %cst_22 : f32 to vector<8x768xf32>
    %27 = arith.maximumf %25, %26 : vector<8x768xf32>
    %28 = vector.broadcast %1 : vector<8x1xf32> to vector<8x768xf32>
    %29 = arith.mulf %27, %28 : vector<8x768xf32>
    %30 = arith.truncf %29 : vector<8x768xf32> to vector<8x768xbf16>
    %cst_23 = arith.constant dense<0.000000e+00> : vector<8x768xf32>
    %31 = tpu.matmul %30, %10, %cst_23 {dimension_numbers = #tpu.dot_dimension_numbers<[1], [0], [0], [1], [0, 0, 1, 1], [], []>} : vector<8x768xbf16>, vector<768x768xbf16>, vector<8x768xf32> -> vector<8x768xf32>
    %cst_24 = arith.constant dense<0.000000e+00> : vector<8x768xf32>
    %32 = tpu.matmul %18, %31, %cst_24 {dimension_numbers = #tpu.dot_dimension_numbers<[1], [0], [0], [1], [0, 0, 1, 1], [], []>} : vector<8x8xf32>, vector<8x768xf32>, vector<8x768xf32> -> vector<8x768xf32>
    %33 = vector.broadcast %11 : vector<1x768xf32> to vector<8x768xf32>
    %34 = arith.addf %32, %33 : vector<8x768xf32>
    %cst_25 = arith.constant 0.000000e+00 : f32
    %35 = vector.broadcast %cst_25 : f32 to vector<8x768xf32>
    %36 = arith.maximumf %34, %35 : vector<8x768xf32>
    %37 = vector.broadcast %3 : vector<8x1xf32> to vector<8x768xf32>
    %38 = arith.mulf %36, %37 : vector<8x768xf32>
    %c0_26 = arith.constant 0 : index
    %c0_27 = arith.constant 0 : index
    %c0_28 = arith.constant 0 : index
    %39 = vector.load %arg9[%c0_26, %c0_27, %c0_28] : memref<1x8x768xf32, #tpu.memory_space<vmem>>, vector<1x8x768xf32>
    %40 = vector.shape_cast %39 : vector<1x8x768xf32> to vector<8x768xf32>
    %41 = vector.shape_cast %38 : vector<8x768xf32> to vector<1x8x768xf32>
    tpu.vector_store %arg9[%c0_26, %c0_27, %c0_28], %41 {strides = array<i32>} : memref<1x8x768xf32, #tpu.memory_space<vmem>>, vector<1x8x768xf32>,
    return
  }
  func.func @transform_0(%arg0: i32) -> (i32, i32, i32) {
    %c0_i32 = arith.constant 0 : i32
    %c0_i32_0 = arith.constant 0 : i32
    %c0_i32_1 = arith.constant 0 : i32
    return %arg0, %c0_i32, %c0_i32_0 : i32, i32, i32
  }
  func.func @transform_1(%arg0: i32) -> (i32, i32, i32) {
    %c0_i32 = arith.constant 0 : i32
    %c0_i32_0 = arith.constant 0 : i32
    %c0_i32_1 = arith.constant 0 : i32
    return %arg0, %c0_i32, %c0_i32_0 : i32, i32, i32
  }
  func.func @transform_2(%arg0: i32) -> (i32, i32, i32) {
    %c0_i32 = arith.constant 0 : i32
    %c0_i32_0 = arith.constant 0 : i32
    %c0_i32_1 = arith.constant 0 : i32
    return %arg0, %c0_i32, %c0_i32_0 : i32, i32, i32
  }
  func.func @transform_3(%arg0: i32) -> (i32, i32, i32) {
    %c0_i32 = arith.constant 0 : i32
    %c0_i32_0 = arith.constant 0 : i32
    %c0_i32_1 = arith.constant 0 : i32
    return %arg0, %c0_i32, %c0_i32_0 : i32, i32, i32
  }
  func.func @transform_4(%arg0: i32) -> (i32, i32) {
    %c0_i32 = arith.constant 0 : i32
    %c0_i32_0 = arith.constant 0 : i32
    %c0_i32_1 = arith.constant 0 : i32
    return %c0_i32, %c0_i32_0 : i32, i32
  }
  func.func @transform_5(%arg0: i32) -> (i32, i32) {
    %c0_i32 = arith.constant 0 : i32
    %c0_i32_0 = arith.constant 0 : i32
    %c0_i32_1 = arith.constant 0 : i32
    return %c0_i32, %c0_i32_0 : i32, i32
  }
  func.func @transform_6(%arg0: i32) -> (i32, i32) {
    %c0_i32 = arith.constant 0 : i32
    %c0_i32_0 = arith.constant 0 : i32
    %c0_i32_1 = arith.constant 0 : i32
    return %c0_i32, %c0_i32_0 : i32, i32
  }
  func.func @transform_7(%arg0: i32) -> (i32, i32) {
    %c0_i32 = arith.constant 0 : i32
    %c0_i32_0 = arith.constant 0 : i32
    %c0_i32_1 = arith.constant 0 : i32
    return %c0_i32, %c0_i32_0 : i32, i32
  }
  func.func @transform_8(%arg0: i32) -> (i32, i32, i32) {
    %c0_i32 = arith.constant 0 : i32
    %c0_i32_0 = arith.constant 0 : i32
    %c0_i32_1 = arith.constant 0 : i32
    return %arg0, %c0_i32, %c0_i32_0 : i32, i32, i32
  }
}

</mosaic_0001>

<llo_original>
// kernel: tpu_custom_call.1
$region0: #{tpu_custom_call.1}
  #allocation0 [shape = 'u32[]', space=smem, size = 0x4, offset = 0x4, fixed_abs, tag = 'smem constant byte address 0x4 - core index']
  #allocation1 [shape = 'u32[72,128]{1,0:T(1,128)}', space=vmem, size = 0x9000, scoped, tag = 'internal scratch']
  %s0 = inlined_call_operand.vmem [shape: f32[2,8,1], index: 0, kind: input, shape index: {}]
  %s1 = inlined_call_operand.vmem [shape: f32[2,8,1], index: 1, kind: input, shape index: {}]
  %s2 = inlined_call_operand.hbm [shape: f32[2,8,768], index: 2, kind: input, shape index: {}]
  %s3 = inlined_call_operand.hbm [shape: f32[2,8,8], index: 3, kind: input, shape index: {}]
  %s4 = inlined_call_operand.hbm [shape: bf16[768,768], index: 4, kind: input, shape index: {}]
  %s5 = inlined_call_operand.hbm [shape: f32[1,768], index: 5, kind: input, shape index: {}]
  %s6 = inlined_call_operand.hbm [shape: bf16[768,768], index: 6, kind: input, shape index: {}]
  %s7 = inlined_call_operand.hbm [shape: f32[1,768], index: 7, kind: input, shape index: {}]
  %s8 = inlined_call_operand.hbm [shape: f32[2,8,768], index: 8, kind: output, shape index: {}]
  %s9 = sld [smem:[#allocation0]]
  $region89: #{tpu_custom_call.1} parent=0
    _
  %s11 = ssub.s32 1, %s9
  %s12 = scalar_select 0, %s11, %s9
  $region1: #{tpu_custom_call.1} parent=0
    #allocation2 [shape = 'u8[49152]{0}', space=vmem, size = 0xc000, scoped, tag = 'input window, operand 2']
    #allocation3 [shape = 's32[2]{0}', space=sflag, size = 0x8, scoped, tag = 'scoped memory for tpu_custom_call.1']
    #allocation4 [shape = 's32[2]{0}', space=sflag, size = 0x8, scoped, tag = 'scoped memory for tpu_custom_call.1']
    #allocation5 [shape = 'u8[8192]{0}', space=vmem, size = 0x2000, scoped, tag = 'input window, operand 3']
    #allocation6 [shape = 's32[2]{0}', space=sflag, size = 0x8, scoped, tag = 'scoped memory for tpu_custom_call.1']
    #allocation7 [shape = 'u8[1179648]{0}', space=vmem, size = 0x120000, scoped, tag = 'input window, operand 4, single buffered']
    #allocation8 [shape = 'u8[3072]{0}', space=vmem, size = 0xc00, scoped, tag = 'input window, operand 5, single buffered']
    #allocation9 [shape = 's32[1]{0}', space=sflag, size = 0x4, scoped, tag = 'scoped memory for tpu_custom_call.1']
    #allocation10 [shape = 'u8[1179648]{0}', space=vmem, size = 0x120000, scoped, tag = 'input window, operand 6, single buffered']
    #allocation11 [shape = 'u8[3072]{0}', space=vmem, size = 0xc00, scoped, tag = 'input window, operand 7, single buffered']
    #allocation12 [shape = 's32[1]{0}', space=sflag, size = 0x4, scoped, tag = 'scoped memory for tpu_custom_call.1']
    #allocation13 [shape = 'u8[49152]{0}', space=vmem, size = 0xc000, scoped, tag = 'output window, operand 0']
    %13 = vsyncpa [#allocation3], 0
    %s14 = scalar_lea.sflag [#allocation3], 1
    %15 = vsyncpa %s14, 0
    %16 = vsyncpa [#allocation6], 0
    %s17 = scalar_lea.sflag [#allocation6], 1
    %18 = vsyncpa %s17, 0
    %19 = vsyncpa [#allocation9], 0
    %20 = vsyncpa [#allocation12], 0
    %21 = vsyncpa [#allocation4], 0
    %s22 = scalar_lea.sflag [#allocation4], 1
    %23 = vsyncpa %s22, 0
    loop: start=0, step=1, limit=4
    $region2: #{tpu_custom_call.1} parent=1 // loop_pre_header
      _
    $region3: #{tpu_custom_call.1} parent=1 // loop_header
      %s25 = sphi 0, %s29
      %p26 = scmp.ge.s32.totalorder %s25, 4
      %s35 = sphi 0, %s37
      %s38 = sphi 0, %s35
      %s39 = sphi 0, %s38
      %s55 = sphi 0, %s39
      %s61 = sphi 0, %s63
      %s64 = sphi 0, %s61
      %s65 = sphi 0, %s64
      %s81 = sphi 0, %s65
      %s87 = sphi 0, %s89
      %s90 = sphi 0, %s87
      %s91 = sphi 0, %s90
      %s107 = sphi 0, %s91
      %s113 = sphi 0, %s115
      %s116 = sphi 0, %s113
      %s117 = sphi 0, %s116
      %s133 = sphi 0, %s117
      %s137 = sphi 0, %s137
      %s139 = sphi 0, %s137
      %s140 = sphi 0, %s139
      %s154 = sphi 0, %s140
      %s158 = sphi 0, %s158
      %s160 = sphi 0, %s158
      %s161 = sphi 0, %s160
      %s175 = sphi 0, %s161
      %s179 = sphi 0, %s179
      %s181 = sphi 0, %s179
      %s182 = sphi 0, %s181
      %s196 = sphi 0, %s182
      %s200 = sphi 0, %s200
      %s202 = sphi 0, %s200
      %s203 = sphi 0, %s202
      %s217 = sphi 0, %s203
      %s223 = sphi 0, %s225
      %s226 = sphi 0, %s223
      %s227 = sphi 0, %s226
      %s243 = sphi 0, %s227
    $region4: #{tpu_custom_call.1} parent=1 // loop_header_branch
      %28 = sbr.rel (%p26) target = $region8
    $region5: #{tpu_custom_call.1} parent=1 // loop_body
      %s30 = ssub.s32 %s25, 1
      %s31 = ssub.s32 %s25, 2
      %s32 = sadd.s32 %s25, 1
      %s33 = ssub.s32 %s25, %s32
      %p34 = scmp.eq.s32.totalorder %s33, 0
      %s36 = sadd.s32 %s35, 1
      %s37 = scalar_select %p34, %s35, %s36
      %p40 = pneg %p34
      %p41 = scmp.eq.s32.totalorder %s25, 1
      %p42 = por %p40, %p41
      %p43 = scmp.ne.s32.totalorder %s35, %s38
      %p44 = scmp.eq.s32.totalorder %s25, 0
      %p45 = por %p43, %p44
      %p46 = scmp.ne.s32.totalorder %s35, %s38
      %p47 = scmp.eq.s32.totalorder %s30, 1
      %p48 = por %p46, %p47
      %p49 = scmp.ne.s32.totalorder %s38, %s39
      %p50 = scmp.eq.s32.totalorder %s30, 0
      %p51 = por %p49, %p50
      %p52 = scmp.ne.s32.totalorder %s38, %s39
      %p53 = scmp.eq.s32.totalorder %s31, 1
      %p54 = por %p52, %p53
      %p56 = scmp.ne.s32.totalorder %s39, %s55
      %p57 = scmp.eq.s32.totalorder %s31, 0
      %p58 = por %p56, %p57
      %s59 = ssub.s32 %s25, %s32
      %p60 = scmp.eq.s32.totalorder %s59, 0
      %s62 = sadd.s32 %s61, 1
      %s63 = scalar_select %p60, %s61, %s62
      %p66 = pneg %p60
      %p67 = scmp.eq.s32.totalorder %s25, 1
      %p68 = por %p66, %p67
      %p69 = scmp.ne.s32.totalorder %s61, %s64
      %p70 = scmp.eq.s32.totalorder %s25, 0
      %p71 = por %p69, %p70
      %p72 = scmp.ne.s32.totalorder %s61, %s64
      %p73 = scmp.eq.s32.totalorder %s30, 1
      %p74 = por %p72, %p73
      %p75 = scmp.ne.s32.totalorder %s64, %s65
      %p76 = scmp.eq.s32.totalorder %s30, 0
      %p77 = por %p75, %p76
      %p78 = scmp.ne.s32.totalorder %s64, %s65
      %p79 = scmp.eq.s32.totalorder %s31, 1
      %p80 = por %p78, %p79
      %p82 = scmp.ne.s32.totalorder %s65, %s81
      %p83 = scmp.eq.s32.totalorder %s31, 0
      %p84 = por %p82, %p83
      %s85 = ssub.s32 %s25, %s32
      %p86 = scmp.eq.s32.totalorder %s85, 0
      %s88 = sadd.s32 %s87, 1
      %s89 = scalar_select %p86, %s87, %s88
      %p92 = pneg %p86
      %p93 = scmp.eq.s32.totalorder %s25, 1
      %p94 = por %p92, %p93
      %p95 = scmp.ne.s32.totalorder %s87, %s90
      %p96 = scmp.eq.s32.totalorder %s25, 0
      %p97 = por %p95, %p96
      %p98 = scmp.ne.s32.totalorder %s87, %s90
      %p99 = scmp.eq.s32.totalorder %s30, 1
      %p100 = por %p98, %p99
      %p101 = scmp.ne.s32.totalorder %s90, %s91
      %p102 = scmp.eq.s32.totalorder %s30, 0
      %p103 = por %p101, %p102
      %p104 = scmp.ne.s32.totalorder %s90, %s91
      %p105 = scmp.eq.s32.totalorder %s31, 1
      %p106 = por %p104, %p105
      %p108 = scmp.ne.s32.totalorder %s91, %s107
      %p109 = scmp.eq.s32.totalorder %s31, 0
      %p110 = por %p108, %p109
      %s111 = ssub.s32 %s25, %s32
      %p112 = scmp.eq.s32.totalorder %s111, 0
      %s114 = sadd.s32 %s113, 1
      %s115 = scalar_select %p112, %s113, %s114
      %p118 = pneg %p112
      %p119 = scmp.eq.s32.totalorder %s25, 1
      %p120 = por %p118, %p119
      %p121 = scmp.ne.s32.totalorder %s113, %s116
      %p122 = scmp.eq.s32.totalorder %s25, 0
      %p123 = por %p121, %p122
      %p124 = scmp.ne.s32.totalorder %s113, %s116
      %p125 = scmp.eq.s32.totalorder %s30, 1
      %p126 = por %p124, %p125
      %p127 = scmp.ne.s32.totalorder %s116, %s117
      %p128 = scmp.eq.s32.totalorder %s30, 0
      %p129 = por %p127, %p128
      %p130 = scmp.ne.s32.totalorder %s116, %s117
      %p131 = scmp.eq.s32.totalorder %s31, 1
      %p132 = por %p130, %p131
      %p134 = scmp.ne.s32.totalorder %s117, %s133
      %p135 = scmp.eq.s32.totalorder %s31, 0
      %p136 = por %p134, %p135
      %s138 = sadd.s32 %s137, 1
      %p141 = scmp.eq.s32.totalorder %s25, 1
      %p142 = scmp.ne.s32.totalorder %s137, %s139
      %p143 = scmp.eq.s32.totalorder %s25, 0
      %p144 = por %p142, %p143
      %p145 = scmp.ne.s32.totalorder %s137, %s139
      %p146 = scmp.eq.s32.totalorder %s30, 1
      %p147 = por %p145, %p146
      %p148 = scmp.ne.s32.totalorder %s139, %s140
      %p149 = scmp.eq.s32.totalorder %s30, 0
      %p150 = por %p148, %p149
      %p151 = scmp.ne.s32.totalorder %s139, %s140
      %p152 = scmp.eq.s32.totalorder %s31, 1
      %p153 = por %p151, %p152
      %p155 = scmp.ne.s32.totalorder %s140, %s154
      %p156 = scmp.eq.s32.totalorder %s31, 0
      %p157 = por %p155, %p156
      %s159 = sadd.s32 %s158, 1
      %p162 = scmp.eq.s32.totalorder %s25, 1
      %p163 = scmp.ne.s32.totalorder %s158, %s160
      %p164 = scmp.eq.s32.totalorder %s25, 0
      %p165 = por %p163, %p164
      %p166 = scmp.ne.s32.totalorder %s158, %s160
      %p167 = scmp.eq.s32.totalorder %s30, 1
      %p168 = por %p166, %p167
      %p169 = scmp.ne.s32.totalorder %s160, %s161
      %p170 = scmp.eq.s32.totalorder %s30, 0
      %p171 = por %p169, %p170
      %p172 = scmp.ne.s32.totalorder %s160, %s161
      %p173 = scmp.eq.s32.totalorder %s31, 1
      %p174 = por %p172, %p173
      %p176 = scmp.ne.s32.totalorder %s161, %s175
      %p177 = scmp.eq.s32.totalorder %s31, 0
      %p178 = por %p176, %p177
      %s180 = sadd.s32 %s179, 1
      %p183 = scmp.eq.s32.totalorder %s25, 1
      %p184 = scmp.ne.s32.totalorder %s179, %s181
      %p185 = scmp.eq.s32.totalorder %s25, 0
      %p186 = por %p184, %p185
      %p187 = scmp.ne.s32.totalorder %s179, %s181
      %p188 = scmp.eq.s32.totalorder %s30, 1
      %p189 = por %p187, %p188
      %p190 = scmp.ne.s32.totalorder %s181, %s182
      %p191 = scmp.eq.s32.totalorder %s30, 0
      %p192 = por %p190, %p191
      %p193 = scmp.ne.s32.totalorder %s181, %s182
      %p194 = scmp.eq.s32.totalorder %s31, 1
      %p195 = por %p193, %p194
      %p197 = scmp.ne.s32.totalorder %s182, %s196
      %p198 = scmp.eq.s32.totalorder %s31, 0
      %p199 = por %p197, %p198
      %s201 = sadd.s32 %s200, 1
      %p204 = scmp.eq.s32.totalorder %s25, 1
      %p205 = scmp.ne.s32.totalorder %s200, %s202
      %p206 = scmp.eq.s32.totalorder %s25, 0
      %p207 = por %p205, %p206
      %p208 = scmp.ne.s32.totalorder %s200, %s202
      %p209 = scmp.eq.s32.totalorder %s30, 1
      %p210 = por %p208, %p209
      %p211 = scmp.ne.s32.totalorder %s202, %s203
      %p212 = scmp.eq.s32.totalorder %s30, 0
      %p213 = por %p211, %p212
      %p214 = scmp.ne.s32.totalorder %s202, %s203
      %p215 = scmp.eq.s32.totalorder %s31, 1
      %p216 = por %p214, %p215
      %p218 = scmp.ne.s32.totalorder %s203, %s217
      %p219 = scmp.eq.s32.totalorder %s31, 0
      %p220 = por %p218, %p219
      %s221 = ssub.s32 %s25, %s32
      %p222 = scmp.eq.s32.totalorder %s221, 0
      %s224 = sadd.s32 %s223, 1
      %s225 = scalar_select %p222, %s223, %s224
      %p228 = pneg %p222
      %p229 = scmp.eq.s32.totalorder %s25, 1
      %p230 = por %p228, %p229
      %p231 = scmp.ne.s32.totalorder %s223, %s226
      %p232 = scmp.eq.s32.totalorder %s25, 0
      %p233 = por %p231, %p232
      %p234 = scmp.ne.s32.totalorder %s223, %s226
      %p235 = scmp.eq.s32.totalorder %s30, 1
      %p236 = por %p234, %p235
      %p237 = scmp.ne.s32.totalorder %s226, %s227
      %p238 = scmp.eq.s32.totalorder %s30, 0
      %p239 = por %p237, %p238
      %p240 = scmp.ne.s32.totalorder %s226, %s227
      %p241 = scmp.eq.s32.totalorder %s31, 1
      %p242 = por %p240, %p241
      %p244 = scmp.ne.s32.totalorder %s227, %s243
      %p245 = scmp.eq.s32.totalorder %s31, 0
      %p246 = por %p244, %p245
      %p247 = scmp.le.s32.totalorder 1, %s25
      %p248 = scmp.lt.s32.totalorder %s25, 3
      %p249 = pnand %p247, %p248
      %p250 = pneg %p249
      // Predicated region
      $region9: #{tpu_custom_call.1} parent=5 // pred_check
        _
      $region10: #{tpu_custom_call.1} parent=5 // pred_check_branch
        %252 = sbr.rel (%p249) target = $region12
      $region11: #{tpu_custom_call.1} parent=5 // pred_region
        %s253 = ssub.s32 %s25, 1
        // Predicated region
        $region13: #{tpu_custom_call.1} parent=11 // pred_check
          %p254 = pneg %p150
        $region14: #{tpu_custom_call.1} parent=11 // pred_check_branch
          %256 = sbr.rel (%p254) target = $region16
        $region15: #{tpu_custom_call.1} parent=11 // pred_region
          %258 = vsyncadd [#allocation6], 0
          %s259 = sshll.u32 %s4, 4
          %s260 = int_to_ptr.hbm [resolvable:$true] %s259
          %s261 = sshll.u32 [#allocation7], 4
          %s262 = int_to_ptr.vmem [resolvable:$true] %s261
          %267 = dma.hbm_to_vmem [thread:$0]  %s260, 36864, %s262, [#allocation6], 384, 384, 24
        $region16: #{tpu_custom_call.1} parent=11 // pred_fallthru
          _
        // Predicated region
        $region17: #{tpu_custom_call.1} parent=11 // pred_check
          %p268 = pneg %p171
        $region18: #{tpu_custom_call.1} parent=11 // pred_check_branch
          %270 = sbr.rel (%p268) target = $region20
        $region19: #{tpu_custom_call.1} parent=11 // pred_region
          %272 = vsyncadd [#allocation9], 0
          %s274 = sshll.u32 %s5, 4
          %s275 = int_to_ptr.hbm [resolvable:$true] %s274
          %s276 = sshll.u32 [#allocation8], 4
          %s277 = int_to_ptr.vmem [resolvable:$true] %s276
          %279 = dma.hbm_to_vmem [thread:$0]  %s275, 96, %s277, [#allocation9]
        $region20: #{tpu_custom_call.1} parent=11 // pred_fallthru
          _
        // Predicated region
        $region21: #{tpu_custom_call.1} parent=11 // pred_check
          %p280 = pneg %p192
        $region22: #{tpu_custom_call.1} parent=11 // pred_check_branch
          %282 = sbr.rel (%p280) target = $region24
        $region23: #{tpu_custom_call.1} parent=11 // pred_region
          %284 = vsyncadd [#allocation9], 0
          %s285 = sshll.u32 %s6, 4
          %s286 = int_to_ptr.hbm [resolvable:$true] %s285
          %s287 = sshll.u32 [#allocation10], 4
          %s288 = int_to_ptr.vmem [resolvable:$true] %s287
          %293 = dma.hbm_to_vmem [thread:$0]  %s286, 36864, %s288, [#allocation9], 384, 384, 24
        $region24: #{tpu_custom_call.1} parent=11 // pred_fallthru
          _
        // Predicated region
        $region25: #{tpu_custom_call.1} parent=11 // pred_check
          %p294 = pneg %p213
        $region26: #{tpu_custom_call.1} parent=11 // pred_check_branch
          %296 = sbr.rel (%p294) target = $region28
        $region27: #{tpu_custom_call.1} parent=11 // pred_region
          %298 = vsyncadd [#allocation12], 0
          %s300 = sshll.u32 %s7, 4
          %s301 = int_to_ptr.hbm [resolvable:$true] %s300
          %s302 = sshll.u32 [#allocation11], 4
          %s303 = int_to_ptr.vmem [resolvable:$true] %s302
          %305 = dma.hbm_to_vmem [thread:$0]  %s301, 96, %s303, [#allocation12]
        $region28: #{tpu_custom_call.1} parent=11 // pred_fallthru
          _
      $region12: #{tpu_custom_call.1} parent=5 // pred_fallthru
        _
      %p306 = scmp.lt.s32.totalorder %s25, 2
      // Predicated region
      $region29: #{tpu_custom_call.1} parent=5 // pred_check
        %p307 = pneg %p306
      $region30: #{tpu_custom_call.1} parent=5 // pred_check_branch
        %309 = sbr.rel (%p307) target = $region32
      $region31: #{tpu_custom_call.1} parent=5 // pred_region
        // Predicated region
        $region33: #{tpu_custom_call.1} parent=31 // pred_check
          %p310 = pneg %p45
        $region34: #{tpu_custom_call.1} parent=31 // pred_check_branch
          %312 = sbr.rel (%p310) target = $region36
        $region35: #{tpu_custom_call.1} parent=31 // pred_region
          %p313 = scmp.lt.s32.totalorder %s25, 1
          %s314 = scalar_select %p313, %s25, 1
          %s315 = smul.addr %s314, 8
          %s316 = scalar_lea.vmem %s0, %s315
        $region36: #{tpu_custom_call.1} parent=31 // pred_fallthru
          _
        // Predicated region
        $region37: #{tpu_custom_call.1} parent=31 // pred_check
          %p317 = pneg %p71
        $region38: #{tpu_custom_call.1} parent=31 // pred_check_branch
          %319 = sbr.rel (%p317) target = $region40
        $region39: #{tpu_custom_call.1} parent=31 // pred_region
          %p320 = scmp.lt.s32.totalorder %s25, 1
          %s321 = scalar_select %p320, %s25, 1
          %s322 = smul.addr %s321, 8
          %s323 = scalar_lea.vmem %s1, %s322
        $region40: #{tpu_custom_call.1} parent=31 // pred_fallthru
          _
        // Predicated region
        $region41: #{tpu_custom_call.1} parent=31 // pred_check
          %p324 = pneg %p97
        $region42: #{tpu_custom_call.1} parent=31 // pred_check_branch
          %326 = sbr.rel (%p324) target = $region44
        $region43: #{tpu_custom_call.1} parent=31 // pred_region
          %s327 = sand.u32 %s87, 1
          %s328 = scalar_lea.sflag [#allocation3], %s327
          %s329 = sand.u32 %s87, 1
          %s330 = smul.addr %s329, 48
          %s331 = scalar_lea.vmem [#allocation2], %s330
          %333 = vsyncadd %s328, 0
          %s334 = smul.addr %s25, 6
          %s335 = smul.addr %s334, 8
          %s336 = scalar_lea.hbm %s2, %s335
          %s338 = sshll.u32 %s336, 4
          %s339 = int_to_ptr.hbm [resolvable:$true] %s338
          %s340 = sshll.u32 %s331, 4
          %s341 = int_to_ptr.vmem [resolvable:$true] %s340
          %343 = dma.hbm_to_vmem [thread:$0]  %s339, 768, %s341, %s328
        $region44: #{tpu_custom_call.1} parent=31 // pred_fallthru
          _
        // Predicated region
        $region45: #{tpu_custom_call.1} parent=31 // pred_check
          %p344 = pneg %p123
        $region46: #{tpu_custom_call.1} parent=31 // pred_check_branch
          %346 = sbr.rel (%p344) target = $region48
        $region47: #{tpu_custom_call.1} parent=31 // pred_region
          %s347 = sand.u32 %s25, 1
          %s348 = scalar_lea.sflag [#allocation6], %s347
          %s349 = sand.u32 %s113, 1
          %s350 = smul.addr %s349, 8
          %s351 = scalar_lea.vmem [#allocation5], %s350
          %353 = vsyncadd %s348, 0
          %s354 = smul.addr %s25, 8
          %s355 = scalar_lea.hbm %s3, %s354
          %s357 = sshll.u32 %s355, 4
          %s358 = int_to_ptr.hbm [resolvable:$true] %s357
          %s359 = sshll.u32 %s351, 4
          %s360 = int_to_ptr.vmem [resolvable:$true] %s359
          %362 = dma.hbm_to_vmem [thread:$0]  %s358, 128, %s360, %s348
        $region48: #{tpu_custom_call.1} parent=31 // pred_fallthru
          _
      $region32: #{tpu_custom_call.1} parent=5 // pred_fallthru
        _
      %p363 = scmp.le.s32.totalorder 1, %s25
      %p364 = scmp.lt.s32.totalorder %s25, 3
      %p365 = pnand %p363, %p364
      %p366 = pneg %p365
      // Predicated region
      $region49: #{tpu_custom_call.1} parent=5 // pred_check
        _
      $region50: #{tpu_custom_call.1} parent=5 // pred_check_branch
        %368 = sbr.rel (%p365) target = $region52
      $region51: #{tpu_custom_call.1} parent=5 // pred_region
        %s369 = ssub.s32 %s25, 1
        %s370 = sand.u32 %s90, 1
        %s371 = scalar_lea.sflag [#allocation3], %s370
        %s372 = sand.u32 %s90, 1
        %s373 = smul.addr %s372, 48
        %s374 = scalar_lea.vmem [#allocation2], %s373
        // Predicated region
        $region53: #{tpu_custom_call.1} parent=51 // pred_check
          %p375 = pneg %p103
        $region54: #{tpu_custom_call.1} parent=51 // pred_check_branch
          %377 = sbr.rel (%p375) target = $region56
        $region55: #{tpu_custom_call.1} parent=51 // pred_region
          %379 = dma.done %s371, 768
        $region56: #{tpu_custom_call.1} parent=51 // pred_fallthru
          _
        %s380 = sand.u32 %s30, 1
        %s381 = scalar_lea.sflag [#allocation6], %s380
        %s382 = sand.u32 %s116, 1
        %s383 = smul.addr %s382, 8
        %s384 = scalar_lea.vmem [#allocation5], %s383
        // Predicated region
        $region57: #{tpu_custom_call.1} parent=51 // pred_check
          %p385 = pneg %p129
        $region58: #{tpu_custom_call.1} parent=51 // pred_check_branch
          %387 = sbr.rel (%p385) target = $region60
        $region59: #{tpu_custom_call.1} parent=51 // pred_region
          %389 = dma.done %s381, 128
        $region60: #{tpu_custom_call.1} parent=51 // pred_fallthru
          _
        // Predicated region
        $region61: #{tpu_custom_call.1} parent=51 // pred_check
          %p390 = pneg %p150
        $region62: #{tpu_custom_call.1} parent=51 // pred_check_branch
          %392 = sbr.rel (%p390) target = $region64
        $region63: #{tpu_custom_call.1} parent=51 // pred_region
          %394 = dma.done [#allocation6], 36864
        $region64: #{tpu_custom_call.1} parent=51 // pred_fallthru
          _
        // Predicated region
        $region65: #{tpu_custom_call.1} parent=51 // pred_check
          %p395 = pneg %p171
        $region66: #{tpu_custom_call.1} parent=51 // pred_check_branch
          %397 = sbr.rel (%p395) target = $region68
        $region67: #{tpu_custom_call.1} parent=51 // pred_region
          %399 = dma.done [#allocation9], 96
        $region68: #{tpu_custom_call.1} parent=51 // pred_fallthru
          _
        // Predicated region
        $region69: #{tpu_custom_call.1} parent=51 // pred_check
          %p400 = pneg %p192
        $region70: #{tpu_custom_call.1} parent=51 // pred_check_branch
          %402 = sbr.rel (%p400) target = $region72
        $region71: #{tpu_custom_call.1} parent=51 // pred_region
          %404 = dma.done [#allocation9], 36864
        $region72: #{tpu_custom_call.1} parent=51 // pred_fallthru
          _
        // Predicated region
        $region73: #{tpu_custom_call.1} parent=51 // pred_check
          %p405 = pneg %p213
        $region74: #{tpu_custom_call.1} parent=51 // pred_check_branch
          %407 = sbr.rel (%p405) target = $region76
        $region75: #{tpu_custom_call.1} parent=51 // pred_region
          %409 = dma.done [#allocation12], 96
        $region76: #{tpu_custom_call.1} parent=51 // pred_fallthru
          _
        %p410 = scmp.lt.s32.totalorder %s30, 1
        %s411 = scalar_select %p410, %s30, 1
        %s412 = smul.addr %s411, 8
        %s413 = scalar_lea.vmem %s0, %s412
        %p414 = pneg %p51
        %p415 = pneg %p48
        %p416 = scmp.lt.s32.totalorder %s30, 1
        %s417 = scalar_select %p416, %s30, 1
        %s418 = smul.addr %s417, 8
        %s419 = scalar_lea.vmem %s1, %s418
        %p420 = pneg %p77
        %p421 = pneg %p74
        %s422 = sand.u32 %s90, 1
        %s423 = scalar_lea.sflag [#allocation3], %s422
        %s424 = sand.u32 %s90, 1
        %s425 = smul.addr %s424, 48
        %s426 = scalar_lea.vmem [#allocation2], %s425
        %p427 = pneg %p103
        %p428 = pneg %p100
        %s429 = sand.u32 %s30, 1
        %s430 = scalar_lea.sflag [#allocation6], %s429
        %s431 = sand.u32 %s116, 1
        %s432 = smul.addr %s431, 8
        %s433 = scalar_lea.vmem [#allocation5], %s432
        %p434 = pneg %p129
        %p435 = pneg %p126
        %p436 = pneg %p150
        %p437 = pneg %p147
        %p438 = pneg %p171
        %p439 = pneg %p168
        %p440 = pneg %p192
        %p441 = pneg %p189
        %p442 = pneg %p213
        %p443 = pneg %p210
        %p444 = pneg %p239
        %p445 = pneg %p236
        %s446 = sand.u32 %s226, 1
        %s447 = scalar_lea.sflag [#allocation4], %s446
        %s448 = sand.u32 %s226, 1
        %s449 = smul.addr %s448, 48
        %s450 = scalar_lea.vmem [#allocation13], %s449
        %p451 = scmp.lt.s32.totalorder %s30, 1
        %s452 = scalar_select %p451, %s30, 1
        %s453 = smul.addr %s452, 8
        %s454 = scalar_lea.vmem %s0, %s453
        %p455 = scmp.lt.s32.totalorder %s30, 1
        %s456 = scalar_select %p455, %s30, 1
        %s457 = smul.addr %s456, 8
        %s458 = scalar_lea.vmem %s1, %s457
        %v459 = vld [vmem:[%s454] sm:$0xff]
        %v460 = vld [vmem:[%s458] sm:$0xff]
        %v461 = vld [vmem:[%s374] sm:$0xff]
        %v462 = vld [vmem:[%s374 + $0x8] sm:$0xff]
        %v463 = vld [vmem:[%s374 + $0x10] sm:$0xff]
        %v464 = vld [vmem:[%s374 + $0x18] sm:$0xff]
        %v465 = vld [vmem:[%s374 + $0x20] sm:$0xff]
        %v466 = vld [vmem:[%s374 + $0x28] sm:$0xff]
        %v467 = vld [vmem:[%s384] sm:$0xff]
        %v468 = vld [vmem:[#allocation7] sm:$0xff]
        %v469 = vld [vmem:[#allocation7 + $0x8] sm:$0xff]
        %v470 = vld [vmem:[#allocation7 + $0x10] sm:$0xff]
        %v471 = vld [vmem:[#allocation7 + $0x18] sm:$0xff]
        %v472 = vld [vmem:[#allocation7 + $0x20] sm:$0xff]
        %v473 = vld [vmem:[#allocation7 + $0x28] sm:$0xff]
        %v474 = vld [vmem:[#allocation7 + $0x30] sm:$0xff]
        %v475 = vld [vmem:[#allocation7 + $0x38] sm:$0xff]
        %v476 = vld [vmem:[#allocation7 + $0x40] sm:$0xff]
        %v477 = vld [vmem:[#allocation7 + $0x48] sm:$0xff]
        %v478 = vld [vmem:[#allocation7 + $0x50] sm:$0xff]
        %v479 = vld [vmem:[#allocation7 + $0x58] sm:$0xff]
        %v480 = vld [vmem:[#allocation7 + $0x60] sm:$0xff]
        %v481 = vld [vmem:[#allocation7 + $0x68] sm:$0xff]
        %v482 = vld [vmem:[#allocation7 + $0x70] sm:$0xff]
        %v483 = vld [vmem:[#allocation7 + $0x78] sm:$0xff]
        %v484 = vld [vmem:[#allocation7 + $0x80] sm:$0xff]
        %v485 = vld [vmem:[#allocation7 + $0x88] sm:$0xff]
        %v486 = vld [vmem:[#allocation7 + $0x90] sm:$0xff]
        %v487 = vld [vmem:[#allocation7 + $0x98] sm:$0xff]
        %v488 = vld [vmem:[#allocation7 + $0xa0] sm:$0xff]
        %v489 = vld [vmem:[#allocation7 + $0xa8] sm:$0xff]
        %v490 = vld [vmem:[#allocation7 + $0xb0] sm:$0xff]
        %v491 = vld [vmem:[#allocation7 + $0xb8] sm:$0xff]
        %v492 = vld [vmem:[#allocation7 + $0xc0] sm:$0xff]
        %v493 = vld [vmem:[#allocation7 + $0xc8] sm:$0xff]
        %v494 = vld [vmem:[#allocation7 + $0xd0] sm:$0xff]
        %v495 = vld [vmem:[#allocation7 + $0xd8] sm:$0xff]
        %v496 = vld [vmem:[#allocation7 + $0xe0] sm:$0xff]
        %v497 = vld [vmem:[#allocation7 + $0xe8] sm:$0xff]
        %v498 = vld [vmem:[#allocation7 + $0xf0] sm:$0xff]
        %v499 = vld [vmem:[#allocation7 + $0xf8] sm:$0xff]
        %v500 = vld [vmem:[#allocation7 + $0x100] sm:$0xff]
        %v501 = vld [vmem:[#allocation7 + $0x108] sm:$0xff]
        %v502 = vld [vmem:[#allocation7 + $0x110] sm:$0xff]
        %v503 = vld [vmem:[#allocation7 + $0x118] sm:$0xff]
        %v504 = vld [vmem:[#allocation7 + $0x120] sm:$0xff]
        %v505 = vld [vmem:[#allocation7 + $0x128] sm:$0xff]
        %v506 = vld [vmem:[#allocation7 + $0x130] sm:$0xff]
        %v507 = vld [vmem:[#allocation7 + $0x138] sm:$0xff]
        %v508 = vld [vmem:[#allocation7 + $0x140] sm:$0xff]
        %v509 = vld [vmem:[#allocation7 + $0x148] sm:$0xff]
        %v510 = vld [vmem:[#allocation7 + $0x150] sm:$0xff]
        %v511 = vld [vmem:[#allocation7 + $0x158] sm:$0xff]
        %v512 = vld [vmem:[#allocation7 + $0x160] sm:$0xff]
        %v513 = vld [vmem:[#allocation7 + $0x168] sm:$0xff]
        %v514 = vld [vmem:[#allocation7 + $0x170] sm:$0xff]
        %v515 = vld [vmem:[#allocation7 + $0x178] sm:$0xff]
        %v516 = vld [vmem:[#allocation7 + $0x180] sm:$0xff]
        %v517 = vld [vmem:[#allocation7 + $0x188] sm:$0xff]
        %v518 = vld [vmem:[#allocation7 + $0x190] sm:$0xff]
        %v519 = vld [vmem:[#allocation7 + $0x198] sm:$0xff]
        %v520 = vld [vmem:[#allocation7 + $0x1a0] sm:$0xff]
        %v521 = vld [vmem:[#allocation7 + $0x1a8] sm:$0xff]
        %v522 = vld [vmem:[#allocation7 + $0x1b0] sm:$0xff]
        %v523 = vld [vmem:[#allocation7 + $0x1b8] sm:$0xff]
        %v524 = vld [vmem:[#allocation7 + $0x1c0] sm:$0xff]
        %v525 = vld [vmem:[#allocation7 + $0x1c8] sm:$0xff]
        %v526 = vld [vmem:[#allocation7 + $0x1d0] sm:$0xff]
        %v527 = vld [vmem:[#allocation7 + $0x1d8] sm:$0xff]
        %v528 = vld [vmem:[#allocation7 + $0x1e0] sm:$0xff]
        %v529 = vld [vmem:[#allocation7 + $0x1e8] sm:$0xff]
        %v530 = vld [vmem:[#allocation7 + $0x1f0] sm:$0xff]
        %v531 = vld [vmem:[#allocation7 + $0x1f8] sm:$0xff]
        %v532 = vld [vmem:[#allocation7 + $0x200] sm:$0xff]
        %v533 = vld [vmem:[#allocation7 + $0x208] sm:$0xff]
        %v534 = vld [vmem:[#allocation7 + $0x210] sm:$0xff]
        %v535 = vld [vmem:[#allocation7 + $0x218] sm:$0xff]
        %v536 = vld [vmem:[#allocation7 + $0x220] sm:$0xff]
        %v537 = vld [vmem:[#allocation7 + $0x228] sm:$0xff]
        %v538 = vld [vmem:[#allocation7 + $0x230] sm:$0xff]
        %v539 = vld [vmem:[#allocation7 + $0x238] sm:$0xff]
        %v540 = vld [vmem:[#allocation7 + $0x240] sm:$0xff]
        %v541 = vld [vmem:[#allocation7 + $0x248] sm:$0xff]
        %v542 = vld [vmem:[#allocation7 + $0x250] sm:$0xff]
        %v543 = vld [vmem:[#allocation7 + $0x258] sm:$0xff]
        %v544 = vld [vmem:[#allocation7 + $0x260] sm:$0xff]
        %v545 = vld [vmem:[#allocation7 + $0x268] sm:$0xff]
        %v546 = vld [vmem:[#allocation7 + $0x270] sm:$0xff]
        %v547 = vld [vmem:[#allocation7 + $0x278] sm:$0xff]
        %v548 = vld [vmem:[#allocation7 + $0x280] sm:$0xff]
        %v549 = vld [vmem:[#allocation7 + $0x288] sm:$0xff]
        %v550 = vld [vmem:[#allocation7 + $0x290] sm:$0xff]
        %v551 = vld [vmem:[#allocation7 + $0x298] sm:$0xff]
        %v552 = vld [vmem:[#allocation7 + $0x2a0] sm:$0xff]
        %v553 = vld [vmem:[#allocation7 + $0x2a8] sm:$0xff]
        %v554 = vld [vmem:[#allocation7 + $0x2b0] sm:$0xff]
        %v555 = vld [vmem:[#allocation7 + $0x2b8] sm:$0xff]
        %v556 = vld [vmem:[#allocation7 + $0x2c0] sm:$0xff]
        %v557 = vld [vmem:[#allocation7 + $0x2c8] sm:$0xff]
        %v558 = vld [vmem:[#allocation7 + $0x2d0] sm:$0xff]
        %v559 = vld [vmem:[#allocation7 + $0x2d8] sm:$0xff]
        %v560 = vld [vmem:[#allocation7 + $0x2e0] sm:$0xff]
        %v561 = vld [vmem:[#allocation7 + $0x2e8] sm:$0xff]
        %v562 = vld [vmem:[#allocation7 + $0x2f0] sm:$0xff]
        %v563 = vld [vmem:[#allocation7 + $0x2f8] sm:$0xff]
        %v564 = vld [vmem:[#allocation7 + $0x300] sm:$0xff]
        %v565 = vld [vmem:[#allocation7 + $0x308] sm:$0xff]
        %v566 = vld [vmem:[#allocation7 + $0x310] sm:$0xff]
        %v567 = vld [vmem:[#allocation7 + $0x318] sm:$0xff]
        %v568 = vld [vmem:[#allocation7 + $0x320] sm:$0xff]
        %v569 = vld [vmem:[#allocation7 + $0x328] sm:$0xff]
        %v570 = vld [vmem:[#allocation7 + $0x330] sm:$0xff]
        %v571 = vld [vmem:[#allocation7 + $0x338] sm:$0xff]
        %v572 = vld [vmem:[#allocation7 + $0x340] sm:$0xff]
        %v573 = vld [vmem:[#allocation7 + $0x348] sm:$0xff]
        %v574 = vld [vmem:[#allocation7 + $0x350] sm:$0xff]
        %v575 = vld [vmem:[#allocation7 + $0x358] sm:$0xff]
        %v576 = vld [vmem:[#allocation7 + $0x360] sm:$0xff]
        %v577 = vld [vmem:[#allocation7 + $0x368] sm:$0xff]
        %v578 = vld [vmem:[#allocation7 + $0x370] sm:$0xff]
        %v579 = vld [vmem:[#allocation7 + $0x378] sm:$0xff]
        %v580 = vld [vmem:[#allocation7 + $0x380] sm:$0xff]
        %v581 = vld [vmem:[#allocation7 + $0x388] sm:$0xff]
        %v582 = vld [vmem:[#allocation7 + $0x390] sm:$0xff]
        %v583 = vld [vmem:[#allocation7 + $0x398] sm:$0xff]
        %v584 = vld [vmem:[#allocation7 + $0x3a0] sm:$0xff]
        %v585 = vld [vmem:[#allocation7 + $0x3a8] sm:$0xff]
        %v586 = vld [vmem:[#allocation7 + $0x3b0] sm:$0xff]
        %v587 = vld [vmem:[#allocation7 + $0x3b8] sm:$0xff]
        %v588 = vld [vmem:[#allocation7 + $0x3c0] sm:$0xff]
        %v589 = vld [vmem:[#allocation7 + $0x3c8] sm:$0xff]
        %v590 = vld [vmem:[#allocation7 + $0x3d0] sm:$0xff]
        %v591 = vld [vmem:[#allocation7 + $0x3d8] sm:$0xff]
        %v592 = vld [vmem:[#allocation7 + $0x3e0] sm:$0xff]
        %v593 = vld [vmem:[#allocation7 + $0x3e8] sm:$0xff]
        %v594 = vld [vmem:[#allocation7 + $0x3f0] sm:$0xff]
        %v595 = vld [vmem:[#allocation7 + $0x3f8] sm:$0xff]
        %v596 = vld [vmem:[#allocation7 + $0x400] sm:$0xff]
        %v597 = vld [vmem:[#allocation7 + $0x408] sm:$0xff]
        %v598 = vld [vmem:[#allocation7 + $0x410] sm:$0xff]
        %v599 = vld [vmem:[#allocation7 + $0x418] sm:$0xff]
        %v600 = vld [vmem:[#allocation7 + $0x420] sm:$0xff]
        %v601 = vld [vmem:[#allocation7 + $0x428] sm:$0xff]
        %v602 = vld [vmem:[#allocation7 + $0x430] sm:$0xff]
        %v603 = vld [vmem:[#allocation7 + $0x438] sm:$0xff]
        %v604 = vld [vmem:[#allocation7 + $0x440] sm:$0xff]
        %v605 = vld [vmem:[#allocation7 + $0x448] sm:$0xff]
        %v606 = vld [vmem:[#allocation7 + $0x450] sm:$0xff]
        %v607 = vld [vmem:[#allocation7 + $0x458] sm:$0xff]
        %v608 = vld [vmem:[#allocation7 + $0x460] sm:$0xff]
        %v609 = vld [vmem:[#allocation7 + $0x468] sm:$0xff]
        %v610 = vld [vmem:[#allocation7 + $0x470] sm:$0xff]
        %v611 = vld [vmem:[#allocation7 + $0x478] sm:$0xff]
        %v612 = vld [vmem:[#allocation7 + $0x480] sm:$0xff]
        %v613 = vld [vmem:[#allocation7 + $0x488] sm:$0xff]
        %v614 = vld [vmem:[#allocation7 + $0x490] sm:$0xff]
        %v615 = vld [vmem:[#allocation7 + $0x498] sm:$0xff]
        %v616 = vld [vmem:[#allocation7 + $0x4a0] sm:$0xff]
        %v617 = vld [vmem:[#allocation7 + $0x4a8] sm:$0xff]
        %v618 = vld [vmem:[#allocation7 + $0x4b0] sm:$0xff]
        %v619 = vld [vmem:[#allocation7 + $0x4b8] sm:$0xff]
        %v620 = vld [vmem:[#allocation7 + $0x4c0] sm:$0xff]
        %v621 = vld [vmem:[#allocation7 + $0x4c8] sm:$0xff]
        %v622 = vld [vmem:[#allocation7 + $0x4d0] sm:$0xff]
        %v623 = vld [vmem:[#allocation7 + $0x4d8] sm:$0xff]
        %v624 = vld [vmem:[#allocation7 + $0x4e0] sm:$0xff]
        %v625 = vld [vmem:[#allocation7 + $0x4e8] sm:$0xff]
        %v626 = vld [vmem:[#allocation7 + $0x4f0] sm:$0xff]
        %v627 = vld [vmem:[#allocation7 + $0x4f8] sm:$0xff]
        %v628 = vld [vmem:[#allocation7 + $0x500] sm:$0xff]
        %v629 = vld [vmem:[#allocation7 + $0x508] sm:$0xff]
        %v630 = vld [vmem:[#allocation7 + $0x510] sm:$0xff]
        %v631 = vld [vmem:[#allocation7 + $0x518] sm:$0xff]
        %v632 = vld [vmem:[#allocation7 + $0x520] sm:$0xff]
        %v633 = vld [vmem:[#allocation7 + $0x528] sm:$0xff]
        %v634 = vld [vmem:[#allocation7 + $0x530] sm:$0xff]
        %v635 = vld [vmem:[#allocation7 + $0x538] sm:$0xff]
        %v636 = vld [vmem:[#allocation7 + $0x540] sm:$0xff]
        %v637 = vld [vmem:[#allocation7 + $0x548] sm:$0xff]
        %v638 = vld [vmem:[#allocation7 + $0x550] sm:$0xff]
        %v639 = vld [vmem:[#allocation7 + $0x558] sm:$0xff]
        %v640 = vld [vmem:[#allocation7 + $0x560] sm:$0xff]
        %v641 = vld [vmem:[#allocation7 + $0x568] sm:$0xff]
        %v642 = vld [vmem:[#allocation7 + $0x570] sm:$0xff]
        %v643 = vld [vmem:[#allocation7 + $0x578] sm:$0xff]
        %v644 = vld [vmem:[#allocation7 + $0x580] sm:$0xff]
        %v645 = vld [vmem:[#allocation7 + $0x588] sm:$0xff]
        %v646 = vld [vmem:[#allocation7 + $0x590] sm:$0xff]
        %v647 = vld [vmem:[#allocation7 + $0x598] sm:$0xff]
        %v648 = vld [vmem:[#allocation7 + $0x5a0] sm:$0xff]
        %v649 = vld [vmem:[#allocation7 + $0x5a8] sm:$0xff]
        %v650 = vld [vmem:[#allocation7 + $0x5b0] sm:$0xff]
        %v651 = vld [vmem:[#allocation7 + $0x5b8] sm:$0xff]
        %v652 = vld [vmem:[#allocation7 + $0x5c0] sm:$0xff]
        %v653 = vld [vmem:[#allocation7 + $0x5c8] sm:$0xff]
        %v654 = vld [vmem:[#allocation7 + $0x5d0] sm:$0xff]
        %v655 = vld [vmem:[#allocation7 + $0x5d8] sm:$0xff]
        %v656 = vld [vmem:[#allocation7 + $0x5e0] sm:$0xff]
        %v657 = vld [vmem:[#allocation7 + $0x5e8] sm:$0xff]
        %v658 = vld [vmem:[#allocation7 + $0x5f0] sm:$0xff]
        %v659 = vld [vmem:[#allocation7 + $0x5f8] sm:$0xff]
        %v660 = vld [vmem:[#allocation7 + $0x600] sm:$0xff]
        %v661 = vld [vmem:[#allocation7 + $0x608] sm:$0xff]
        %v662 = vld [vmem:[#allocation7 + $0x610] sm:$0xff]
        %v663 = vld [vmem:[#allocation7 + $0x618] sm:$0xff]
        %v664 = vld [vmem:[#allocation7 + $0x620] sm:$0xff]
        %v665 = vld [vmem:[#allocation7 + $0x628] sm:$0xff]
        %v666 = vld [vmem:[#allocation7 + $0x630] sm:$0xff]
        %v667 = vld [vmem:[#allocation7 + $0x638] sm:$0xff]
        %v668 = vld [vmem:[#allocation7 + $0x640] sm:$0xff]
        %v669 = vld [vmem:[#allocation7 + $0x648] sm:$0xff]
        %v670 = vld [vmem:[#allocation7 + $0x650] sm:$0xff]
        %v671 = vld [vmem:[#allocation7 + $0x658] sm:$0xff]
        %v672 = vld [vmem:[#allocation7 + $0x660] sm:$0xff]
        %v673 = vld [vmem:[#allocation7 + $0x668] sm:$0xff]
        %v674 = vld [vmem:[#allocation7 + $0x670] sm:$0xff]
        %v675 = vld [vmem:[#allocation7 + $0x678] sm:$0xff]
        %v676 = vld [vmem:[#allocation7 + $0x680] sm:$0xff]
        %v677 = vld [vmem:[#allocation7 + $0x688] sm:$0xff]
        %v678 = vld [vmem:[#allocation7 + $0x690] sm:$0xff]
        %v679 = vld [vmem:[#allocation7 + $0x698] sm:$0xff]
        %v680 = vld [vmem:[#allocation7 + $0x6a0] sm:$0xff]
        %v681 = vld [vmem:[#allocation7 + $0x6a8] sm:$0xff]
        %v682 = vld [vmem:[#allocation7 + $0x6b0] sm:$0xff]
        %v683 = vld [vmem:[#allocation7 + $0x6b8] sm:$0xff]
        %v684 = vld [vmem:[#allocation7 + $0x6c0] sm:$0xff]
        %v685 = vld [vmem:[#allocation7 + $0x6c8] sm:$0xff]
        %v686 = vld [vmem:[#allocation7 + $0x6d0] sm:$0xff]
        %v687 = vld [vmem:[#allocation7 + $0x6d8] sm:$0xff]
        %v688 = vld [vmem:[#allocation7 + $0x6e0] sm:$0xff]
        %v689 = vld [vmem:[#allocation7 + $0x6e8] sm:$0xff]
        %v690 = vld [vmem:[#allocation7 + $0x6f0] sm:$0xff]
        %v691 = vld [vmem:[#allocation7 + $0x6f8] sm:$0xff]
        %v692 = vld [vmem:[#allocation7 + $0x700] sm:$0xff]
        %v693 = vld [vmem:[#allocation7 + $0x708] sm:$0xff]
        %v694 = vld [vmem:[#allocation7 + $0x710] sm:$0xff]
        %v695 = vld [vmem:[#allocation7 + $0x718] sm:$0xff]
        %v696 = vld [vmem:[#allocation7 + $0x720] sm:$0xff]
        %v697 = vld [vmem:[#allocation7 + $0x728] sm:$0xff]
        %v698 = vld [vmem:[#allocation7 + $0x730] sm:$0xff]
        %v699 = vld [vmem:[#allocation7 + $0x738] sm:$0xff]
        %v700 = vld [vmem:[#allocation7 + $0x740] sm:$0xff]
        %v701 = vld [vmem:[#allocation7 + $0x748] sm:$0xff]
        %v702 = vld [vmem:[#allocation7 + $0x750] sm:$0xff]
        %v703 = vld [vmem:[#allocation7 + $0x758] sm:$0xff]
        %v704 = vld [vmem:[#allocation7 + $0x760] sm:$0xff]
        %v705 = vld [vmem:[#allocation7 + $0x768] sm:$0xff]
        %v706 = vld [vmem:[#allocation7 + $0x770] sm:$0xff]
        %v707 = vld [vmem:[#allocation7 + $0x778] sm:$0xff]
        %v708 = vld [vmem:[#allocation7 + $0x780] sm:$0xff]
        %v709 = vld [vmem:[#allocation7 + $0x788] sm:$0xff]
        %v710 = vld [vmem:[#allocation7 + $0x790] sm:$0xff]
        %v711 = vld [vmem:[#allocation7 + $0x798] sm:$0xff]
        %v712 = vld [vmem:[#allocation7 + $0x7a0] sm:$0xff]
        %v713 = vld [vmem:[#allocation7 + $0x7a8] sm:$0xff]
        %v714 = vld [vmem:[#allocation7 + $0x7b0] sm:$0xff]
        %v715 = vld [vmem:[#allocation7 + $0x7b8] sm:$0xff]
        %v716 = vld [vmem:[#allocation7 + $0x7c0] sm:$0xff]
        %v717 = vld [vmem:[#allocation7 + $0x7c8] sm:$0xff]
        %v718 = vld [vmem:[#allocation7 + $0x7d0] sm:$0xff]
        %v719 = vld [vmem:[#allocation7 + $0x7d8] sm:$0xff]
        %v720 = vld [vmem:[#allocation7 + $0x7e0] sm:$0xff]
        %v721 = vld [vmem:[#allocation7 + $0x7e8] sm:$0xff]
        %v722 = vld [vmem:[#allocation7 + $0x7f0] sm:$0xff]
        %v723 = vld [vmem:[#allocation7 + $0x7f8] sm:$0xff]
        %v724 = vld [vmem:[#allocation7 + $0x800] sm:$0xff]
        %v725 = vld [vmem:[#allocation7 + $0x808] sm:$0xff]
        %v726 = vld [vmem:[#allocation7 + $0x810] sm:$0xff]
        %v727 = vld [vmem:[#allocation7 + $0x818] sm:$0xff]
        %v728 = vld [vmem:[#allocation7 + $0x820] sm:$0xff]
        %v729 = vld [vmem:[#allocation7 + $0x828] sm:$0xff]
        %v730 = vld [vmem:[#allocation7 + $0x830] sm:$0xff]
        %v731 = vld [vmem:[#allocation7 + $0x838] sm:$0xff]
        %v732 = vld [vmem:[#allocation7 + $0x840] sm:$0xff]
        %v733 = vld [vmem:[#allocation7 + $0x848] sm:$0xff]
        %v734 = vld [vmem:[#allocation7 + $0x850] sm:$0xff]
        %v735 = vld [vmem:[#allocation7 + $0x858] sm:$0xff]
        %v736 = vld [vmem:[#allocation7 + $0x860] sm:$0xff]
        %v737 = vld [vmem:[#allocation7 + $0x868] sm:$0xff]
        %v738 = vld [vmem:[#allocation7 + $0x870] sm:$0xff]
        %v739 = vld [vmem:[#allocation7 + $0x878] sm:$0xff]
        %v740 = vld [vmem:[#allocation7 + $0x880] sm:$0xff]
        %v741 = vld [vmem:[#allocation7 + $0x888] sm:$0xff]
        %v742 = vld [vmem:[#allocation7 + $0x890] sm:$0xff]
        %v743 = vld [vmem:[#allocation7 + $0x898] sm:$0xff]
        %v744 = vld [vmem:[#allocation7 + $0x8a0] sm:$0xff]
        %v745 = vld [vmem:[#allocation7 + $0x8a8] sm:$0xff]
        %v746 = vld [vmem:[#allocation7 + $0x8b0] sm:$0xff]
        %v747 = vld [vmem:[#allocation7 + $0x8b8] sm:$0xff]
        %v748 = vld [vmem:[#allocation7 + $0x8c0] sm:$0xff]
        %v749 = vld [vmem:[#allocation7 + $0x8c8] sm:$0xff]
        %v750 = vld [vmem:[#allocation7 + $0x8d0] sm:$0xff]
        %v751 = vld [vmem:[#allocation7 + $0x8d8] sm:$0xff]
        %v752 = vld [vmem:[#allocation7 + $0x8e0] sm:$0xff]
        %v753 = vld [vmem:[#allocation7 + $0x8e8] sm:$0xff]
        %v754 = vld [vmem:[#allocation7 + $0x8f0] sm:$0xff]
        %v755 = vld [vmem:[#allocation7 + $0x8f8] sm:$0xff]
        %v756 = vld [vmem:[#allocation8] sm:$0x3f]
        %v757 = vld [vmem:[#allocation10] sm:$0xff]
        %v758 = vld [vmem:[#allocation10 + $0x8] sm:$0xff]
        %v759 = vld [vmem:[#allocation10 + $0x10] sm:$0xff]
        %v760 = vld [vmem:[#allocation10 + $0x18] sm:$0xff]
        %v761 = vld [vmem:[#allocation10 + $0x20] sm:$0xff]
        %v762 = vld [vmem:[#allocation10 + $0x28] sm:$0xff]
        %v763 = vld [vmem:[#allocation10 + $0x30] sm:$0xff]
        %v764 = vld [vmem:[#allocation10 + $0x38] sm:$0xff]
        %v765 = vld [vmem:[#allocation10 + $0x40] sm:$0xff]
        %v766 = vld [vmem:[#allocation10 + $0x48] sm:$0xff]
        %v767 = vld [vmem:[#allocation10 + $0x50] sm:$0xff]
        %v768 = vld [vmem:[#allocation10 + $0x58] sm:$0xff]
        %v769 = vld [vmem:[#allocation10 + $0x60] sm:$0xff]
        %v770 = vld [vmem:[#allocation10 + $0x68] sm:$0xff]
        %v771 = vld [vmem:[#allocation10 + $0x70] sm:$0xff]
        %v772 = vld [vmem:[#allocation10 + $0x78] sm:$0xff]
        %v773 = vld [vmem:[#allocation10 + $0x80] sm:$0xff]
        %v774 = vld [vmem:[#allocation10 + $0x88] sm:$0xff]
        %v775 = vld [vmem:[#allocation10 + $0x90] sm:$0xff]
        %v776 = vld [vmem:[#allocation10 + $0x98] sm:$0xff]
        %v777 = vld [vmem:[#allocation10 + $0xa0] sm:$0xff]
        %v778 = vld [vmem:[#allocation10 + $0xa8] sm:$0xff]
        %v779 = vld [vmem:[#allocation10 + $0xb0] sm:$0xff]
        %v780 = vld [vmem:[#allocation10 + $0xb8] sm:$0xff]
        %v781 = vld [vmem:[#allocation10 + $0xc0] sm:$0xff]
        %v782 = vld [vmem:[#allocation10 + $0xc8] sm:$0xff]
        %v783 = vld [vmem:[#allocation10 + $0xd0] sm:$0xff]
        %v784 = vld [vmem:[#allocation10 + $0xd8] sm:$0xff]
        %v785 = vld [vmem:[#allocation10 + $0xe0] sm:$0xff]
        %v786 = vld [vmem:[#allocation10 + $0xe8] sm:$0xff]
        %v787 = vld [vmem:[#allocation10 + $0xf0] sm:$0xff]
        %v788 = vld [vmem:[#allocation10 + $0xf8] sm:$0xff]
        %v789 = vld [vmem:[#allocation10 + $0x100] sm:$0xff]
        %v790 = vld [vmem:[#allocation10 + $0x108] sm:$0xff]
        %v791 = vld [vmem:[#allocation10 + $0x110] sm:$0xff]
        %v792 = vld [vmem:[#allocation10 + $0x118] sm:$0xff]
        %v793 = vld [vmem:[#allocation10 + $0x120] sm:$0xff]
        %v794 = vld [vmem:[#allocation10 + $0x128] sm:$0xff]
        %v795 = vld [vmem:[#allocation10 + $0x130] sm:$0xff]
        %v796 = vld [vmem:[#allocation10 + $0x138] sm:$0xff]
        %v797 = vld [vmem:[#allocation10 + $0x140] sm:$0xff]
        %v798 = vld [vmem:[#allocation10 + $0x148] sm:$0xff]
        %v799 = vld [vmem:[#allocation10 + $0x150] sm:$0xff]
        %v800 = vld [vmem:[#allocation10 + $0x158] sm:$0xff]
        %v801 = vld [vmem:[#allocation10 + $0x160] sm:$0xff]
        %v802 = vld [vmem:[#allocation10 + $0x168] sm:$0xff]
        %v803 = vld [vmem:[#allocation10 + $0x170] sm:$0xff]
        %v804 = vld [vmem:[#allocation10 + $0x178] sm:$0xff]
        %v805 = vld [vmem:[#allocation10 + $0x180] sm:$0xff]
        %v806 = vld [vmem:[#allocation10 + $0x188] sm:$0xff]
        %v807 = vld [vmem:[#allocation10 + $0x190] sm:$0xff]
        %v808 = vld [vmem:[#allocation10 + $0x198] sm:$0xff]
        %v809 = vld [vmem:[#allocation10 + $0x1a0] sm:$0xff]
        %v810 = vld [vmem:[#allocation10 + $0x1a8] sm:$0xff]
        %v811 = vld [vmem:[#allocation10 + $0x1b0] sm:$0xff]
        %v812 = vld [vmem:[#allocation10 + $0x1b8] sm:$0xff]
        %v813 = vld [vmem:[#allocation10 + $0x1c0] sm:$0xff]
        %v814 = vld [vmem:[#allocation10 + $0x1c8] sm:$0xff]
        %v815 = vld [vmem:[#allocation10 + $0x1d0] sm:$0xff]
        %v816 = vld [vmem:[#allocation10 + $0x1d8] sm:$0xff]
        %v817 = vld [vmem:[#allocation10 + $0x1e0] sm:$0xff]
        %v818 = vld [vmem:[#allocation10 + $0x1e8] sm:$0xff]
        %v819 = vld [vmem:[#allocation10 + $0x1f0] sm:$0xff]
        %v820 = vld [vmem:[#allocation10 + $0x1f8] sm:$0xff]
        %v821 = vld [vmem:[#allocation10 + $0x200] sm:$0xff]
        %v822 = vld [vmem:[#allocation10 + $0x208] sm:$0xff]
        %v823 = vld [vmem:[#allocation10 + $0x210] sm:$0xff]
        %v824 = vld [vmem:[#allocation10 + $0x218] sm:$0xff]
        %v825 = vld [vmem:[#allocation10 + $0x220] sm:$0xff]
        %v826 = vld [vmem:[#allocation10 + $0x228] sm:$0xff]
        %v827 = vld [vmem:[#allocation10 + $0x230] sm:$0xff]
        %v828 = vld [vmem:[#allocation10 + $0x238] sm:$0xff]
        %v829 = vld [vmem:[#allocation10 + $0x240] sm:$0xff]
        %v830 = vld [vmem:[#allocation10 + $0x248] sm:$0xff]
        %v831 = vld [vmem:[#allocation10 + $0x250] sm:$0xff]
        %v832 = vld [vmem:[#allocation10 + $0x258] sm:$0xff]
        %v833 = vld [vmem:[#allocation10 + $0x260] sm:$0xff]
        %v834 = vld [vmem:[#allocation10 + $0x268] sm:$0xff]
        %v835 = vld [vmem:[#allocation10 + $0x270] sm:$0xff]
        %v836 = vld [vmem:[#allocation10 + $0x278] sm:$0xff]
        %v837 = vld [vmem:[#allocation10 + $0x280] sm:$0xff]
        %v838 = vld [vmem:[#allocation10 + $0x288] sm:$0xff]
        %v839 = vld [vmem:[#allocation10 + $0x290] sm:$0xff]
        %v840 = vld [vmem:[#allocation10 + $0x298] sm:$0xff]
        %v841 = vld [vmem:[#allocation10 + $0x2a0] sm:$0xff]
        %v842 = vld [vmem:[#allocation10 + $0x2a8] sm:$0xff]
        %v843 = vld [vmem:[#allocation10 + $0x2b0] sm:$0xff]
        %v844 = vld [vmem:[#allocation10 + $0x2b8] sm:$0xff]
        %v845 = vld [vmem:[#allocation10 + $0x2c0] sm:$0xff]
        %v846 = vld [vmem:[#allocation10 + $0x2c8] sm:$0xff]
        %v847 = vld [vmem:[#allocation10 + $0x2d0] sm:$0xff]
        %v848 = vld [vmem:[#allocation10 + $0x2d8] sm:$0xff]
        %v849 = vld [vmem:[#allocation10 + $0x2e0] sm:$0xff]
        %v850 = vld [vmem:[#allocation10 + $0x2e8] sm:$0xff]
        %v851 = vld [vmem:[#allocation10 + $0x2f0] sm:$0xff]
        %v852 = vld [vmem:[#allocation10 + $0x2f8] sm:$0xff]
        %v853 = vld [vmem:[#allocation10 + $0x300] sm:$0xff]
        %v854 = vld [vmem:[#allocation10 + $0x308] sm:$0xff]
        %v855 = vld [vmem:[#allocation10 + $0x310] sm:$0xff]
        %v856 = vld [vmem:[#allocation10 + $0x318] sm:$0xff]
        %v857 = vld [vmem:[#allocation10 + $0x320] sm:$0xff]
        %v858 = vld [vmem:[#allocation10 + $0x328] sm:$0xff]
        %v859 = vld [vmem:[#allocation10 + $0x330] sm:$0xff]
        %v860 = vld [vmem:[#allocation10 + $0x338] sm:$0xff]
        %v861 = vld [vmem:[#allocation10 + $0x340] sm:$0xff]
        %v862 = vld [vmem:[#allocation10 + $0x348] sm:$0xff]
        %v863 = vld [vmem:[#allocation10 + $0x350] sm:$0xff]
        %v864 = vld [vmem:[#allocation10 + $0x358] sm:$0xff]
        %v865 = vld [vmem:[#allocation10 + $0x360] sm:$0xff]
        %v866 = vld [vmem:[#allocation10 + $0x368] sm:$0xff]
        %v867 = vld [vmem:[#allocation10 + $0x370] sm:$0xff]
        %v868 = vld [vmem:[#allocation10 + $0x378] sm:$0xff]
        %v869 = vld [vmem:[#allocation10 + $0x380] sm:$0xff]
        %v870 = vld [vmem:[#allocation10 + $0x388] sm:$0xff]
        %v871 = vld [vmem:[#allocation10 + $0x390] sm:$0xff]
        %v872 = vld [vmem:[#allocation10 + $0x398] sm:$0xff]
        %v873 = vld [vmem:[#allocation10 + $0x3a0] sm:$0xff]
        %v874 = vld [vmem:[#allocation10 + $0x3a8] sm:$0xff]
        %v875 = vld [vmem:[#allocation10 + $0x3b0] sm:$0xff]
        %v876 = vld [vmem:[#allocation10 + $0x3b8] sm:$0xff]
        %v877 = vld [vmem:[#allocation10 + $0x3c0] sm:$0xff]
        %v878 = vld [vmem:[#allocation10 + $0x3c8] sm:$0xff]
        %v879 = vld [vmem:[#allocation10 + $0x3d0] sm:$0xff]
        %v880 = vld [vmem:[#allocation10 + $0x3d8] sm:$0xff]
        %v881 = vld [vmem:[#allocation10 + $0x3e0] sm:$0xff]
        %v882 = vld [vmem:[#allocation10 + $0x3e8] sm:$0xff]
        %v883 = vld [vmem:[#allocation10 + $0x3f0] sm:$0xff]
        %v884 = vld [vmem:[#allocation10 + $0x3f8] sm:$0xff]
        %v885 = vld [vmem:[#allocation10 + $0x400] sm:$0xff]
        %v886 = vld [vmem:[#allocation10 + $0x408] sm:$0xff]
        %v887 = vld [vmem:[#allocation10 + $0x410] sm:$0xff]
        %v888 = vld [vmem:[#allocation10 + $0x418] sm:$0xff]
        %v889 = vld [vmem:[#allocation10 + $0x420] sm:$0xff]
        %v890 = vld [vmem:[#allocation10 + $0x428] sm:$0xff]
        %v891 = vld [vmem:[#allocation10 + $0x430] sm:$0xff]
        %v892 = vld [vmem:[#allocation10 + $0x438] sm:$0xff]
        %v893 = vld [vmem:[#allocation10 + $0x440] sm:$0xff]
        %v894 = vld [vmem:[#allocation10 + $0x448] sm:$0xff]
        %v895 = vld [vmem:[#allocation10 + $0x450] sm:$0xff]
        %v896 = vld [vmem:[#allocation10 + $0x458] sm:$0xff]
        %v897 = vld [vmem:[#allocation10 + $0x460] sm:$0xff]
        %v898 = vld [vmem:[#allocation10 + $0x468] sm:$0xff]
        %v899 = vld [vmem:[#allocation10 + $0x470] sm:$0xff]
        %v900 = vld [vmem:[#allocation10 + $0x478] sm:$0xff]
        %v901 = vld [vmem:[#allocation10 + $0x480] sm:$0xff]
        %v902 = vld [vmem:[#allocation10 + $0x488] sm:$0xff]
        %v903 = vld [vmem:[#allocation10 + $0x490] sm:$0xff]
        %v904 = vld [vmem:[#allocation10 + $0x498] sm:$0xff]
        %v905 = vld [vmem:[#allocation10 + $0x4a0] sm:$0xff]
        %v906 = vld [vmem:[#allocation10 + $0x4a8] sm:$0xff]
        %v907 = vld [vmem:[#allocation10 + $0x4b0] sm:$0xff]
        %v908 = vld [vmem:[#allocation10 + $0x4b8] sm:$0xff]
        %v909 = vld [vmem:[#allocation10 + $0x4c0] sm:$0xff]
        %v910 = vld [vmem:[#allocation10 + $0x4c8] sm:$0xff]
        %v911 = vld [vmem:[#allocation10 + $0x4d0] sm:$0xff]
        %v912 = vld [vmem:[#allocation10 + $0x4d8] sm:$0xff]
        %v913 = vld [vmem:[#allocation10 + $0x4e0] sm:$0xff]
        %v914 = vld [vmem:[#allocation10 + $0x4e8] sm:$0xff]
        %v915 = vld [vmem:[#allocation10 + $0x4f0] sm:$0xff]
        %v916 = vld [vmem:[#allocation10 + $0x4f8] sm:$0xff]
        %v917 = vld [vmem:[#allocation10 + $0x500] sm:$0xff]
        %v918 = vld [vmem:[#allocation10 + $0x508] sm:$0xff]
        %v919 = vld [vmem:[#allocation10 + $0x510] sm:$0xff]
        %v920 = vld [vmem:[#allocation10 + $0x518] sm:$0xff]
        %v921 = vld [vmem:[#allocation10 + $0x520] sm:$0xff]
        %v922 = vld [vmem:[#allocation10 + $0x528] sm:$0xff]
        %v923 = vld [vmem:[#allocation10 + $0x530] sm:$0xff]
        %v924 = vld [vmem:[#allocation10 + $0x538] sm:$0xff]
        %v925 = vld [vmem:[#allocation10 + $0x540] sm:$0xff]
        %v926 = vld [vmem:[#allocation10 + $0x548] sm:$0xff]
        %v927 = vld [vmem:[#allocation10 + $0x550] sm:$0xff]
        %v928 = vld [vmem:[#allocation10 + $0x558] sm:$0xff]
        %v929 = vld [vmem:[#allocation10 + $0x560] sm:$0xff]
        %v930 = vld [vmem:[#allocation10 + $0x568] sm:$0xff]
        %v931 = vld [vmem:[#allocation10 + $0x570] sm:$0xff]
        %v932 = vld [vmem:[#allocation10 + $0x578] sm:$0xff]
        %v933 = vld [vmem:[#allocation10 + $0x580] sm:$0xff]
        %v934 = vld [vmem:[#allocation10 + $0x588] sm:$0xff]
        %v935 = vld [vmem:[#allocation10 + $0x590] sm:$0xff]
        %v936 = vld [vmem:[#allocation10 + $0x598] sm:$0xff]
        %v937 = vld [vmem:[#allocation10 + $0x5a0] sm:$0xff]
        %v938 = vld [vmem:[#allocation10 + $0x5a8] sm:$0xff]
        %v939 = vld [vmem:[#allocation10 + $0x5b0] sm:$0xff]
        %v940 = vld [vmem:[#allocation10 + $0x5b8] sm:$0xff]
        %v941 = vld [vmem:[#allocation10 + $0x5c0] sm:$0xff]
        %v942 = vld [vmem:[#allocation10 + $0x5c8] sm:$0xff]
        %v943 = vld [vmem:[#allocation10 + $0x5d0] sm:$0xff]
        %v944 = vld [vmem:[#allocation10 + $0x5d8] sm:$0xff]
        %v945 = vld [vmem:[#allocation10 + $0x5e0] sm:$0xff]
        %v946 = vld [vmem:[#allocation10 + $0x5e8] sm:$0xff]
        %v947 = vld [vmem:[#allocation10 + $0x5f0] sm:$0xff]
        %v948 = vld [vmem:[#allocation10 + $0x5f8] sm:$0xff]
        %v949 = vld [vmem:[#allocation10 + $0x600] sm:$0xff]
        %v950 = vld [vmem:[#allocation10 + $0x608] sm:$0xff]
        %v951 = vld [vmem:[#allocation10 + $0x610] sm:$0xff]
        %v952 = vld [vmem:[#allocation10 + $0x618] sm:$0xff]
        %v953 = vld [vmem:[#allocation10 + $0x620] sm:$0xff]
        %v954 = vld [vmem:[#allocation10 + $0x628] sm:$0xff]
        %v955 = vld [vmem:[#allocation10 + $0x630] sm:$0xff]
        %v956 = vld [vmem:[#allocation10 + $0x638] sm:$0xff]
        %v957 = vld [vmem:[#allocation10 + $0x640] sm:$0xff]
        %v958 = vld [vmem:[#allocation10 + $0x648] sm:$0xff]
        %v959 = vld [vmem:[#allocation10 + $0x650] sm:$0xff]
        %v960 = vld [vmem:[#allocation10 + $0x658] sm:$0xff]
        %v961 = vld [vmem:[#allocation10 + $0x660] sm:$0xff]
        %v962 = vld [vmem:[#allocation10 + $0x668] sm:$0xff]
        %v963 = vld [vmem:[#allocation10 + $0x670] sm:$0xff]
        %v964 = vld [vmem:[#allocation10 + $0x678] sm:$0xff]
        %v965 = vld [vmem:[#allocation10 + $0x680] sm:$0xff]
        %v966 = vld [vmem:[#allocation10 + $0x688] sm:$0xff]
        %v967 = vld [vmem:[#allocation10 + $0x690] sm:$0xff]
        %v968 = vld [vmem:[#allocation10 + $0x698] sm:$0xff]
        %v969 = vld [vmem:[#allocation10 + $0x6a0] sm:$0xff]
        %v970 = vld [vmem:[#allocation10 + $0x6a8] sm:$0xff]
        %v971 = vld [vmem:[#allocation10 + $0x6b0] sm:$0xff]
        %v972 = vld [vmem:[#allocation10 + $0x6b8] sm:$0xff]
        %v973 = vld [vmem:[#allocation10 + $0x6c0] sm:$0xff]
        %v974 = vld [vmem:[#allocation10 + $0x6c8] sm:$0xff]
        %v975 = vld [vmem:[#allocation10 + $0x6d0] sm:$0xff]
        %v976 = vld [vmem:[#allocation10 + $0x6d8] sm:$0xff]
        %v977 = vld [vmem:[#allocation10 + $0x6e0] sm:$0xff]
        %v978 = vld [vmem:[#allocation10 + $0x6e8] sm:$0xff]
        %v979 = vld [vmem:[#allocation10 + $0x6f0] sm:$0xff]
        %v980 = vld [vmem:[#allocation10 + $0x6f8] sm:$0xff]
        %v981 = vld [vmem:[#allocation10 + $0x700] sm:$0xff]
        %v982 = vld [vmem:[#allocation10 + $0x708] sm:$0xff]
        %v983 = vld [vmem:[#allocation10 + $0x710] sm:$0xff]
        %v984 = vld [vmem:[#allocation10 + $0x718] sm:$0xff]
        %v985 = vld [vmem:[#allocation10 + $0x720] sm:$0xff]
        %v986 = vld [vmem:[#allocation10 + $0x728] sm:$0xff]
        %v987 = vld [vmem:[#allocation10 + $0x730] sm:$0xff]
        %v988 = vld [vmem:[#allocation10 + $0x738] sm:$0xff]
        %v989 = vld [vmem:[#allocation10 + $0x740] sm:$0xff]
        %v990 = vld [vmem:[#allocation10 + $0x748] sm:$0xff]
        %v991 = vld [vmem:[#allocation10 + $0x750] sm:$0xff]
        %v992 = vld [vmem:[#allocation10 + $0x758] sm:$0xff]
        %v993 = vld [vmem:[#allocation10 + $0x760] sm:$0xff]
        %v994 = vld [vmem:[#allocation10 + $0x768] sm:$0xff]
        %v995 = vld [vmem:[#allocation10 + $0x770] sm:$0xff]
        %v996 = vld [vmem:[#allocation10 + $0x778] sm:$0xff]
        %v997 = vld [vmem:[#allocation10 + $0x780] sm:$0xff]
        %v998 = vld [vmem:[#allocation10 + $0x788] sm:$0xff]
        %v999 = vld [vmem:[#allocation10 + $0x790] sm:$0xff]
        %v1000 = vld [vmem:[#allocation10 + $0x798] sm:$0xff]
        %v1001 = vld [vmem:[#allocation10 + $0x7a0] sm:$0xff]
        %v1002 = vld [vmem:[#allocation10 + $0x7a8] sm:$0xff]
        %v1003 = vld [vmem:[#allocation10 + $0x7b0] sm:$0xff]
        %v1004 = vld [vmem:[#allocation10 + $0x7b8] sm:$0xff]
        %v1005 = vld [vmem:[#allocation10 + $0x7c0] sm:$0xff]
        %v1006 = vld [vmem:[#allocation10 + $0x7c8] sm:$0xff]
        %v1007 = vld [vmem:[#allocation10 + $0x7d0] sm:$0xff]
        %v1008 = vld [vmem:[#allocation10 + $0x7d8] sm:$0xff]
        %v1009 = vld [vmem:[#allocation10 + $0x7e0] sm:$0xff]
        %v1010 = vld [vmem:[#allocation10 + $0x7e8] sm:$0xff]
        %v1011 = vld [vmem:[#allocation10 + $0x7f0] sm:$0xff]
        %v1012 = vld [vmem:[#allocation10 + $0x7f8] sm:$0xff]
        %v1013 = vld [vmem:[#allocation10 + $0x800] sm:$0xff]
        %v1014 = vld [vmem:[#allocation10 + $0x808] sm:$0xff]
        %v1015 = vld [vmem:[#allocation10 + $0x810] sm:$0xff]
        %v1016 = vld [vmem:[#allocation10 + $0x818] sm:$0xff]
        %v1017 = vld [vmem:[#allocation10 + $0x820] sm:$0xff]
        %v1018 = vld [vmem:[#allocation10 + $0x828] sm:$0xff]
        %v1019 = vld [vmem:[#allocation10 + $0x830] sm:$0xff]
        %v1020 = vld [vmem:[#allocation10 + $0x838] sm:$0xff]
        %v1021 = vld [vmem:[#allocation10 + $0x840] sm:$0xff]
        %v1022 = vld [vmem:[#allocation10 + $0x848] sm:$0xff]
        %v1023 = vld [vmem:[#allocation10 + $0x850] sm:$0xff]
        %v1024 = vld [vmem:[#allocation10 + $0x858] sm:$0xff]
        %v1025 = vld [vmem:[#allocation10 + $0x860] sm:$0xff]
        %v1026 = vld [vmem:[#allocation10 + $0x868] sm:$0xff]
        %v1027 = vld [vmem:[#allocation10 + $0x870] sm:$0xff]
        %v1028 = vld [vmem:[#allocation10 + $0x878] sm:$0xff]
        %v1029 = vld [vmem:[#allocation10 + $0x880] sm:$0xff]
        %v1030 = vld [vmem:[#allocation10 + $0x888] sm:$0xff]
        %v1031 = vld [vmem:[#allocation10 + $0x890] sm:$0xff]
        %v1032 = vld [vmem:[#allocation10 + $0x898] sm:$0xff]
        %v1033 = vld [vmem:[#allocation10 + $0x8a0] sm:$0xff]
        %v1034 = vld [vmem:[#allocation10 + $0x8a8] sm:$0xff]
        %v1035 = vld [vmem:[#allocation10 + $0x8b0] sm:$0xff]
        %v1036 = vld [vmem:[#allocation10 + $0x8b8] sm:$0xff]
        %v1037 = vld [vmem:[#allocation10 + $0x8c0] sm:$0xff]
        %v1038 = vld [vmem:[#allocation10 + $0x8c8] sm:$0xff]
        %v1039 = vld [vmem:[#allocation10 + $0x8d0] sm:$0xff]
        %v1040 = vld [vmem:[#allocation10 + $0x8d8] sm:$0xff]
        %v1041 = vld [vmem:[#allocation10 + $0x8e0] sm:$0xff]
        %v1042 = vld [vmem:[#allocation10 + $0x8e8] sm:$0xff]
        %v1043 = vld [vmem:[#allocation10 + $0x8f0] sm:$0xff]
        %v1044 = vld [vmem:[#allocation10 + $0x8f8] sm:$0xff]
        %v1045 = vld [vmem:[#allocation11] sm:$0x3f]
        %vm1046 = vcmask 64512
        %v1047 = vsel %vm1046, %v467, 0.0
        %1048 = vadd.xlane.f32.xlu0 %v1047
        %v1049 = vpop.xlane.xlu0 %1048
        %v1050 = vadd.f32 %v1049, 1.0
        %v1051 = vrcp.pop %v1050
        %v1052 = vmul.f32 %v467, %v1051
        %1054 = vset.pattern.permute.xlu0 0
        %1055 = vperm.xlu0 %1054, %v459
        %v1056 = vpop.permute.xlu0 %1055
        %v1058 = vmul.f32 %v461, %v1056
        %v1059 = vmul.f32 %v462, %v1056
        %v1060 = vmul.f32 %v463, %v1056
        %v1061 = vmul.f32 %v464, %v1056
        %v1062 = vmul.f32 %v465, %v1056
        %v1063 = vmul.f32 %v466, %v1056
        %v1064 = vpack.c.bf16 %v1058, %v1058
        %v1065 = vpack.c.bf16 %v1059, %v1059
        %v1066 = vpack.c.bf16 %v1060, %v1060
        %v1067 = vpack.c.bf16 %v1061, %v1061
        %v1068 = vpack.c.bf16 %v1062, %v1062
        %v1069 = vpack.c.bf16 %v1063, %v1063
        %v1358 = vunpack.c.l.b16 %v468
        %v1359 = vunpack.c.h.b16 %v468
        %v1360 = vunpack.c.l.b16 %v469
        %v1361 = vunpack.c.h.b16 %v469
        %v1362 = vunpack.c.l.b16 %v470
        %v1363 = vunpack.c.h.b16 %v470
        %v1364 = vunpack.c.l.b16 %v471
        %v1365 = vunpack.c.h.b16 %v471
        %v1366 = vunpack.c.l.b16 %v472
        %v1367 = vunpack.c.h.b16 %v472
        %v1368 = vunpack.c.l.b16 %v473
        %v1369 = vunpack.c.h.b16 %v473
        %v1370 = vunpack.c.l.b16 %v474
        %v1371 = vunpack.c.h.b16 %v474
        %v1372 = vunpack.c.l.b16 %v475
        %v1373 = vunpack.c.h.b16 %v475
        %v1374 = vunpack.c.l.b16 %v476
        %v1375 = vunpack.c.h.b16 %v476
        %v1376 = vunpack.c.l.b16 %v477
        %v1377 = vunpack.c.h.b16 %v477
        %v1378 = vunpack.c.l.b16 %v478
        %v1379 = vunpack.c.h.b16 %v478
        %v1380 = vunpack.c.l.b16 %v479
        %v1381 = vunpack.c.h.b16 %v479
        %v1382 = vunpack.c.l.b16 %v480
        %v1383 = vunpack.c.h.b16 %v480
        %v1384 = vunpack.c.l.b16 %v481
        %v1385 = vunpack.c.h.b16 %v481
        %v1386 = vunpack.c.l.b16 %v482
        %v1387 = vunpack.c.h.b16 %v482
        %v1388 = vunpack.c.l.b16 %v483
        %v1389 = vunpack.c.h.b16 %v483
        %v1390 = vunpack.c.l.b16 %v484
        %v1391 = vunpack.c.h.b16 %v484
        %v1392 = vunpack.c.l.b16 %v485
        %v1393 = vunpack.c.h.b16 %v485
        %v1394 = vunpack.c.l.b16 %v486
        %v1395 = vunpack.c.h.b16 %v486
        %v1396 = vunpack.c.l.b16 %v487
        %v1397 = vunpack.c.h.b16 %v487
        %v1398 = vunpack.c.l.b16 %v488
        %v1399 = vunpack.c.h.b16 %v488
        %v1400 = vunpack.c.l.b16 %v489
        %v1401 = vunpack.c.h.b16 %v489
        %v1402 = vunpack.c.l.b16 %v490
        %v1403 = vunpack.c.h.b16 %v490
        %v1404 = vunpack.c.l.b16 %v491
        %v1405 = vunpack.c.h.b16 %v491
        %v1406 = vunpack.c.l.b16 %v492
        %v1407 = vunpack.c.h.b16 %v492
        %v1408 = vunpack.c.l.b16 %v493
        %v1409 = vunpack.c.h.b16 %v493
        %v1410 = vunpack.c.l.b16 %v494
        %v1411 = vunpack.c.h.b16 %v494
        %v1412 = vunpack.c.l.b16 %v495
        %v1413 = vunpack.c.h.b16 %v495
        %v1414 = vunpack.c.l.b16 %v496
        %v1415 = vunpack.c.h.b16 %v496
        %v1416 = vunpack.c.l.b16 %v497
        %v1417 = vunpack.c.h.b16 %v497
        %v1418 = vunpack.c.l.b16 %v498
        %v1419 = vunpack.c.h.b16 %v498
        %v1420 = vunpack.c.l.b16 %v499
        %v1421 = vunpack.c.h.b16 %v499
        %v1422 = vunpack.c.l.b16 %v500
        %v1423 = vunpack.c.h.b16 %v500
        %v1424 = vunpack.c.l.b16 %v501
        %v1425 = vunpack.c.h.b16 %v501
        %v1426 = vunpack.c.l.b16 %v502
        %v1427 = vunpack.c.h.b16 %v502
        %v1428 = vunpack.c.l.b16 %v503
        %v1429 = vunpack.c.h.b16 %v503
        %v1430 = vunpack.c.l.b16 %v504
        %v1431 = vunpack.c.h.b16 %v504
        %v1432 = vunpack.c.l.b16 %v505
        %v1433 = vunpack.c.h.b16 %v505
        %v1434 = vunpack.c.l.b16 %v506
        %v1435 = vunpack.c.h.b16 %v506
        %v1436 = vunpack.c.l.b16 %v507
        %v1437 = vunpack.c.h.b16 %v507
        %v1438 = vunpack.c.l.b16 %v508
        %v1439 = vunpack.c.h.b16 %v508
        %v1440 = vunpack.c.l.b16 %v509
        %v1441 = vunpack.c.h.b16 %v509
        %v1442 = vunpack.c.l.b16 %v510
        %v1443 = vunpack.c.h.b16 %v510
        %v1444 = vunpack.c.l.b16 %v511
        %v1445 = vunpack.c.h.b16 %v511
        %v1446 = vunpack.c.l.b16 %v512
        %v1447 = vunpack.c.h.b16 %v512
        %v1448 = vunpack.c.l.b16 %v513
        %v1449 = vunpack.c.h.b16 %v513
        %v1450 = vunpack.c.l.b16 %v514
        %v1451 = vunpack.c.h.b16 %v514
        %v1452 = vunpack.c.l.b16 %v515
        %v1453 = vunpack.c.h.b16 %v515
        %v1454 = vunpack.c.l.b16 %v516
        %v1455 = vunpack.c.h.b16 %v516
        %v1456 = vunpack.c.l.b16 %v517
        %v1457 = vunpack.c.h.b16 %v517
        %v1458 = vunpack.c.l.b16 %v518
        %v1459 = vunpack.c.h.b16 %v518
        %v1460 = vunpack.c.l.b16 %v519
        %v1461 = vunpack.c.h.b16 %v519
        %v1462 = vunpack.c.l.b16 %v520
        %v1463 = vunpack.c.h.b16 %v520
        %v1464 = vunpack.c.l.b16 %v521
        %v1465 = vunpack.c.h.b16 %v521
        %v1466 = vunpack.c.l.b16 %v522
        %v1467 = vunpack.c.h.b16 %v522
        %v1468 = vunpack.c.l.b16 %v523
        %v1469 = vunpack.c.h.b16 %v523
        %v1470 = vunpack.c.l.b16 %v524
        %v1471 = vunpack.c.h.b16 %v524
        %v1472 = vunpack.c.l.b16 %v525
        %v1473 = vunpack.c.h.b16 %v525
        %v1474 = vunpack.c.l.b16 %v526
        %v1475 = vunpack.c.h.b16 %v526
        %v1476 = vunpack.c.l.b16 %v527
        %v1477 = vunpack.c.h.b16 %v527
        %v1478 = vunpack.c.l.b16 %v528
        %v1479 = vunpack.c.h.b16 %v528
        %v1480 = vunpack.c.l.b16 %v529
        %v1481 = vunpack.c.h.b16 %v529
        %v1482 = vunpack.c.l.b16 %v530
        %v1483 = vunpack.c.h.b16 %v530
        %v1484 = vunpack.c.l.b16 %v531
        %v1485 = vunpack.c.h.b16 %v531
        %v1486 = vunpack.c.l.b16 %v532
        %v1487 = vunpack.c.h.b16 %v532
        %v1488 = vunpack.c.l.b16 %v533
        %v1489 = vunpack.c.h.b16 %v533
        %v1490 = vunpack.c.l.b16 %v534
        %v1491 = vunpack.c.h.b16 %v534
        %v1492 = vunpack.c.l.b16 %v535
        %v1493 = vunpack.c.h.b16 %v535
        %v1494 = vunpack.c.l.b16 %v536
        %v1495 = vunpack.c.h.b16 %v536
        %v1496 = vunpack.c.l.b16 %v537
        %v1497 = vunpack.c.h.b16 %v537
        %v1498 = vunpack.c.l.b16 %v538
        %v1499 = vunpack.c.h.b16 %v538
        %v1500 = vunpack.c.l.b16 %v539
        %v1501 = vunpack.c.h.b16 %v539
        %v1502 = vunpack.c.l.b16 %v540
        %v1503 = vunpack.c.h.b16 %v540
        %v1504 = vunpack.c.l.b16 %v541
        %v1505 = vunpack.c.h.b16 %v541
        %v1506 = vunpack.c.l.b16 %v542
        %v1507 = vunpack.c.h.b16 %v542
        %v1508 = vunpack.c.l.b16 %v543
        %v1509 = vunpack.c.h.b16 %v543
        %v1510 = vunpack.c.l.b16 %v544
        %v1511 = vunpack.c.h.b16 %v544
        %v1512 = vunpack.c.l.b16 %v545
        %v1513 = vunpack.c.h.b16 %v545
        %v1514 = vunpack.c.l.b16 %v546
        %v1515 = vunpack.c.h.b16 %v546
        %v1516 = vunpack.c.l.b16 %v547
        %v1517 = vunpack.c.h.b16 %v547
        %v1518 = vunpack.c.l.b16 %v548
        %v1519 = vunpack.c.h.b16 %v548
        %v1520 = vunpack.c.l.b16 %v549
        %v1521 = vunpack.c.h.b16 %v549
        %v1522 = vunpack.c.l.b16 %v550
        %v1523 = vunpack.c.h.b16 %v550
        %v1524 = vunpack.c.l.b16 %v551
        %v1525 = vunpack.c.h.b16 %v551
        %v1526 = vunpack.c.l.b16 %v552
        %v1527 = vunpack.c.h.b16 %v552
        %v1528 = vunpack.c.l.b16 %v553
        %v1529 = vunpack.c.h.b16 %v553
        %v1530 = vunpack.c.l.b16 %v554
        %v1531 = vunpack.c.h.b16 %v554
        %v1532 = vunpack.c.l.b16 %v555
        %v1533 = vunpack.c.h.b16 %v555
        %v1534 = vunpack.c.l.b16 %v556
        %v1535 = vunpack.c.h.b16 %v556
        %v1536 = vunpack.c.l.b16 %v557
        %v1537 = vunpack.c.h.b16 %v557
        %v1538 = vunpack.c.l.b16 %v558
        %v1539 = vunpack.c.h.b16 %v558
        %v1540 = vunpack.c.l.b16 %v559
        %v1541 = vunpack.c.h.b16 %v559
        %v1542 = vunpack.c.l.b16 %v560
        %v1543 = vunpack.c.h.b16 %v560
        %v1544 = vunpack.c.l.b16 %v561
        %v1545 = vunpack.c.h.b16 %v561
        %v1546 = vunpack.c.l.b16 %v562
        %v1547 = vunpack.c.h.b16 %v562
        %v1548 = vunpack.c.l.b16 %v563
        %v1549 = vunpack.c.h.b16 %v563
        %v1550 = vunpack.c.l.b16 %v564
        %v1551 = vunpack.c.h.b16 %v564
        %v1552 = vunpack.c.l.b16 %v565
        %v1553 = vunpack.c.h.b16 %v565
        %v1554 = vunpack.c.l.b16 %v566
        %v1555 = vunpack.c.h.b16 %v566
        %v1556 = vunpack.c.l.b16 %v567
        %v1557 = vunpack.c.h.b16 %v567
        %v1558 = vunpack.c.l.b16 %v568
        %v1559 = vunpack.c.h.b16 %v568
        %v1560 = vunpack.c.l.b16 %v569
        %v1561 = vunpack.c.h.b16 %v569
        %v1562 = vunpack.c.l.b16 %v570
        %v1563 = vunpack.c.h.b16 %v570
        %v1564 = vunpack.c.l.b16 %v571
        %v1565 = vunpack.c.h.b16 %v571
        %v1566 = vunpack.c.l.b16 %v572
        %v1567 = vunpack.c.h.b16 %v572
        %v1568 = vunpack.c.l.b16 %v573
        %v1569 = vunpack.c.h.b16 %v573
        %v1570 = vunpack.c.l.b16 %v574
        %v1571 = vunpack.c.h.b16 %v574
        %v1572 = vunpack.c.l.b16 %v575
        %v1573 = vunpack.c.h.b16 %v575
        %v1574 = vunpack.c.l.b16 %v576
        %v1575 = vunpack.c.h.b16 %v576
        %v1576 = vunpack.c.l.b16 %v577
        %v1577 = vunpack.c.h.b16 %v577
        %v1578 = vunpack.c.l.b16 %v578
        %v1579 = vunpack.c.h.b16 %v578
        %v1580 = vunpack.c.l.b16 %v579
        %v1581 = vunpack.c.h.b16 %v579
        %v1582 = vunpack.c.l.b16 %v580
        %v1583 = vunpack.c.h.b16 %v580
        %v1584 = vunpack.c.l.b16 %v581
        %v1585 = vunpack.c.h.b16 %v581
        %v1586 = vunpack.c.l.b16 %v582
        %v1587 = vunpack.c.h.b16 %v582
        %v1588 = vunpack.c.l.b16 %v583
        %v1589 = vunpack.c.h.b16 %v583
        %v1590 = vunpack.c.l.b16 %v584
        %v1591 = vunpack.c.h.b16 %v584
        %v1592 = vunpack.c.l.b16 %v585
        %v1593 = vunpack.c.h.b16 %v585
        %v1594 = vunpack.c.l.b16 %v586
        %v1595 = vunpack.c.h.b16 %v586
        %v1596 = vunpack.c.l.b16 %v587
        %v1597 = vunpack.c.h.b16 %v587
        %v1598 = vunpack.c.l.b16 %v588
        %v1599 = vunpack.c.h.b16 %v588
        %v1600 = vunpack.c.l.b16 %v589
        %v1601 = vunpack.c.h.b16 %v589
        %v1602 = vunpack.c.l.b16 %v590
        %v1603 = vunpack.c.h.b16 %v590
        %v1604 = vunpack.c.l.b16 %v591
        %v1605 = vunpack.c.h.b16 %v591
        %v1606 = vunpack.c.l.b16 %v592
        %v1607 = vunpack.c.h.b16 %v592
        %v1608 = vunpack.c.l.b16 %v593
        %v1609 = vunpack.c.h.b16 %v593
        %v1610 = vunpack.c.l.b16 %v594
        %v1611 = vunpack.c.h.b16 %v594
        %v1612 = vunpack.c.l.b16 %v595
        %v1613 = vunpack.c.h.b16 %v595
        %v1614 = vunpack.c.l.b16 %v596
        %v1615 = vunpack.c.h.b16 %v596
        %v1616 = vunpack.c.l.b16 %v597
        %v1617 = vunpack.c.h.b16 %v597
        %v1618 = vunpack.c.l.b16 %v598
        %v1619 = vunpack.c.h.b16 %v598
        %v1620 = vunpack.c.l.b16 %v599
        %v1621 = vunpack.c.h.b16 %v599
        %v1622 = vunpack.c.l.b16 %v600
        %v1623 = vunpack.c.h.b16 %v600
        %v1624 = vunpack.c.l.b16 %v601
        %v1625 = vunpack.c.h.b16 %v601
        %v1626 = vunpack.c.l.b16 %v602
        %v1627 = vunpack.c.h.b16 %v602
        %v1628 = vunpack.c.l.b16 %v603
        %v1629 = vunpack.c.h.b16 %v603
        %v1630 = vunpack.c.l.b16 %v604
        %v1631 = vunpack.c.h.b16 %v604
        %v1632 = vunpack.c.l.b16 %v605
        %v1633 = vunpack.c.h.b16 %v605
        %v1634 = vunpack.c.l.b16 %v606
        %v1635 = vunpack.c.h.b16 %v606
        %v1636 = vunpack.c.l.b16 %v607
        %v1637 = vunpack.c.h.b16 %v607
        %v1638 = vunpack.c.l.b16 %v608
        %v1639 = vunpack.c.h.b16 %v608
        %v1640 = vunpack.c.l.b16 %v609
        %v1641 = vunpack.c.h.b16 %v609
        %v1642 = vunpack.c.l.b16 %v610
        %v1643 = vunpack.c.h.b16 %v610
        %v1644 = vunpack.c.l.b16 %v611
        %v1645 = vunpack.c.h.b16 %v611
        %v1646 = vunpack.c.l.b16 %v612
        %v1647 = vunpack.c.h.b16 %v612
        %v1648 = vunpack.c.l.b16 %v613
        %v1649 = vunpack.c.h.b16 %v613
        %v1650 = vunpack.c.l.b16 %v614
        %v1651 = vunpack.c.h.b16 %v614
        %v1652 = vunpack.c.l.b16 %v615
        %v1653 = vunpack.c.h.b16 %v615
        %v1654 = vunpack.c.l.b16 %v616
        %v1655 = vunpack.c.h.b16 %v616
        %v1656 = vunpack.c.l.b16 %v617
        %v1657 = vunpack.c.h.b16 %v617
        %v1658 = vunpack.c.l.b16 %v618
        %v1659 = vunpack.c.h.b16 %v618
        %v1660 = vunpack.c.l.b16 %v619
        %v1661 = vunpack.c.h.b16 %v619
        %v1662 = vunpack.c.l.b16 %v620
        %v1663 = vunpack.c.h.b16 %v620
        %v1664 = vunpack.c.l.b16 %v621
        %v1665 = vunpack.c.h.b16 %v621
        %v1666 = vunpack.c.l.b16 %v622
        %v1667 = vunpack.c.h.b16 %v622
        %v1668 = vunpack.c.l.b16 %v623
        %v1669 = vunpack.c.h.b16 %v623
        %v1670 = vunpack.c.l.b16 %v624
        %v1671 = vunpack.c.h.b16 %v624
        %v1672 = vunpack.c.l.b16 %v625
        %v1673 = vunpack.c.h.b16 %v625
        %v1674 = vunpack.c.l.b16 %v626
        %v1675 = vunpack.c.h.b16 %v626
        %v1676 = vunpack.c.l.b16 %v627
        %v1677 = vunpack.c.h.b16 %v627
        %v1678 = vunpack.c.l.b16 %v628
        %v1679 = vunpack.c.h.b16 %v628
        %v1680 = vunpack.c.l.b16 %v629
        %v1681 = vunpack.c.h.b16 %v629
        %v1682 = vunpack.c.l.b16 %v630
        %v1683 = vunpack.c.h.b16 %v630
        %v1684 = vunpack.c.l.b16 %v631
        %v1685 = vunpack.c.h.b16 %v631
        %v1686 = vunpack.c.l.b16 %v632
        %v1687 = vunpack.c.h.b16 %v632
        %v1688 = vunpack.c.l.b16 %v633
        %v1689 = vunpack.c.h.b16 %v633
        %v1690 = vunpack.c.l.b16 %v634
        %v1691 = vunpack.c.h.b16 %v634
        %v1692 = vunpack.c.l.b16 %v635
        %v1693 = vunpack.c.h.b16 %v635
        %v1694 = vunpack.c.l.b16 %v636
        %v1695 = vunpack.c.h.b16 %v636
        %v1696 = vunpack.c.l.b16 %v637
        %v1697 = vunpack.c.h.b16 %v637
        %v1698 = vunpack.c.l.b16 %v638
        %v1699 = vunpack.c.h.b16 %v638
        %v1700 = vunpack.c.l.b16 %v639
        %v1701 = vunpack.c.h.b16 %v639
        %v1702 = vunpack.c.l.b16 %v640
        %v1703 = vunpack.c.h.b16 %v640
        %v1704 = vunpack.c.l.b16 %v641
        %v1705 = vunpack.c.h.b16 %v641
        %v1706 = vunpack.c.l.b16 %v642
        %v1707 = vunpack.c.h.b16 %v642
        %v1708 = vunpack.c.l.b16 %v643
        %v1709 = vunpack.c.h.b16 %v643
        %v1710 = vunpack.c.l.b16 %v644
        %v1711 = vunpack.c.h.b16 %v644
        %v1712 = vunpack.c.l.b16 %v645
        %v1713 = vunpack.c.h.b16 %v645
        %v1714 = vunpack.c.l.b16 %v646
        %v1715 = vunpack.c.h.b16 %v646
        %v1716 = vunpack.c.l.b16 %v647
        %v1717 = vunpack.c.h.b16 %v647
        %v1718 = vunpack.c.l.b16 %v648
        %v1719 = vunpack.c.h.b16 %v648
        %v1720 = vunpack.c.l.b16 %v649
        %v1721 = vunpack.c.h.b16 %v649
        %v1722 = vunpack.c.l.b16 %v650
        %v1723 = vunpack.c.h.b16 %v650
        %v1724 = vunpack.c.l.b16 %v651
        %v1725 = vunpack.c.h.b16 %v651
        %v1726 = vunpack.c.l.b16 %v652
        %v1727 = vunpack.c.h.b16 %v652
        %v1728 = vunpack.c.l.b16 %v653
        %v1729 = vunpack.c.h.b16 %v653
        %v1730 = vunpack.c.l.b16 %v654
        %v1731 = vunpack.c.h.b16 %v654
        %v1732 = vunpack.c.l.b16 %v655
        %v1733 = vunpack.c.h.b16 %v655
        %v1734 = vunpack.c.l.b16 %v656
        %v1735 = vunpack.c.h.b16 %v656
        %v1736 = vunpack.c.l.b16 %v657
        %v1737 = vunpack.c.h.b16 %v657
        %v1738 = vunpack.c.l.b16 %v658
        %v1739 = vunpack.c.h.b16 %v658
        %v1740 = vunpack.c.l.b16 %v659
        %v1741 = vunpack.c.h.b16 %v659
        %v1742 = vunpack.c.l.b16 %v660
        %v1743 = vunpack.c.h.b16 %v660
        %v1744 = vunpack.c.l.b16 %v661
        %v1745 = vunpack.c.h.b16 %v661
        %v1746 = vunpack.c.l.b16 %v662
        %v1747 = vunpack.c.h.b16 %v662
        %v1748 = vunpack.c.l.b16 %v663
        %v1749 = vunpack.c.h.b16 %v663
        %v1750 = vunpack.c.l.b16 %v664
        %v1751 = vunpack.c.h.b16 %v664
        %v1752 = vunpack.c.l.b16 %v665
        %v1753 = vunpack.c.h.b16 %v665
        %v1754 = vunpack.c.l.b16 %v666
        %v1755 = vunpack.c.h.b16 %v666
        %v1756 = vunpack.c.l.b16 %v667
        %v1757 = vunpack.c.h.b16 %v667
        %v1758 = vunpack.c.l.b16 %v668
        %v1759 = vunpack.c.h.b16 %v668
        %v1760 = vunpack.c.l.b16 %v669
        %v1761 = vunpack.c.h.b16 %v669
        %v1762 = vunpack.c.l.b16 %v670
        %v1763 = vunpack.c.h.b16 %v670
        %v1764 = vunpack.c.l.b16 %v671
        %v1765 = vunpack.c.h.b16 %v671
        %v1766 = vunpack.c.l.b16 %v672
        %v1767 = vunpack.c.h.b16 %v672
        %v1768 = vunpack.c.l.b16 %v673
        %v1769 = vunpack.c.h.b16 %v673
        %v1770 = vunpack.c.l.b16 %v674
        %v1771 = vunpack.c.h.b16 %v674
        %v1772 = vunpack.c.l.b16 %v675
        %v1773 = vunpack.c.h.b16 %v675
        %v1774 = vunpack.c.l.b16 %v676
        %v1775 = vunpack.c.h.b16 %v676
        %v1776 = vunpack.c.l.b16 %v677
        %v1777 = vunpack.c.h.b16 %v677
        %v1778 = vunpack.c.l.b16 %v678
        %v1779 = vunpack.c.h.b16 %v678
        %v1780 = vunpack.c.l.b16 %v679
        %v1781 = vunpack.c.h.b16 %v679
        %v1782 = vunpack.c.l.b16 %v680
        %v1783 = vunpack.c.h.b16 %v680
        %v1784 = vunpack.c.l.b16 %v681
        %v1785 = vunpack.c.h.b16 %v681
        %v1786 = vunpack.c.l.b16 %v682
        %v1787 = vunpack.c.h.b16 %v682
        %v1788 = vunpack.c.l.b16 %v683
        %v1789 = vunpack.c.h.b16 %v683
        %v1790 = vunpack.c.l.b16 %v684
        %v1791 = vunpack.c.h.b16 %v684
        %v1792 = vunpack.c.l.b16 %v685
        %v1793 = vunpack.c.h.b16 %v685
        %v1794 = vunpack.c.l.b16 %v686
        %v1795 = vunpack.c.h.b16 %v686
        %v1796 = vunpack.c.l.b16 %v687
        %v1797 = vunpack.c.h.b16 %v687
        %v1798 = vunpack.c.l.b16 %v688
        %v1799 = vunpack.c.h.b16 %v688
        %v1800 = vunpack.c.l.b16 %v689
        %v1801 = vunpack.c.h.b16 %v689
        %v1802 = vunpack.c.l.b16 %v690
        %v1803 = vunpack.c.h.b16 %v690
        %v1804 = vunpack.c.l.b16 %v691
        %v1805 = vunpack.c.h.b16 %v691
        %v1806 = vunpack.c.l.b16 %v692
        %v1807 = vunpack.c.h.b16 %v692
        %v1808 = vunpack.c.l.b16 %v693
        %v1809 = vunpack.c.h.b16 %v693
        %v1810 = vunpack.c.l.b16 %v694
        %v1811 = vunpack.c.h.b16 %v694
        %v1812 = vunpack.c.l.b16 %v695
        %v1813 = vunpack.c.h.b16 %v695
        %v1814 = vunpack.c.l.b16 %v696
        %v1815 = vunpack.c.h.b16 %v696
        %v1816 = vunpack.c.l.b16 %v697
        %v1817 = vunpack.c.h.b16 %v697
        %v1818 = vunpack.c.l.b16 %v698
        %v1819 = vunpack.c.h.b16 %v698
        %v1820 = vunpack.c.l.b16 %v699
        %v1821 = vunpack.c.h.b16 %v699
        %v1822 = vunpack.c.l.b16 %v700
        %v1823 = vunpack.c.h.b16 %v700
        %v1824 = vunpack.c.l.b16 %v701
        %v1825 = vunpack.c.h.b16 %v701
        %v1826 = vunpack.c.l.b16 %v702
        %v1827 = vunpack.c.h.b16 %v702
        %v1828 = vunpack.c.l.b16 %v703
        %v1829 = vunpack.c.h.b16 %v703
        %v1830 = vunpack.c.l.b16 %v704
        %v1831 = vunpack.c.h.b16 %v704
        %v1832 = vunpack.c.l.b16 %v705
        %v1833 = vunpack.c.h.b16 %v705
        %v1834 = vunpack.c.l.b16 %v706
        %v1835 = vunpack.c.h.b16 %v706
        %v1836 = vunpack.c.l.b16 %v707
        %v1837 = vunpack.c.h.b16 %v707
        %v1838 = vunpack.c.l.b16 %v708
        %v1839 = vunpack.c.h.b16 %v708
        %v1840 = vunpack.c.l.b16 %v709
        %v1841 = vunpack.c.h.b16 %v709
        %v1842 = vunpack.c.l.b16 %v710
        %v1843 = vunpack.c.h.b16 %v710
        %v1844 = vunpack.c.l.b16 %v711
        %v1845 = vunpack.c.h.b16 %v711
        %v1846 = vunpack.c.l.b16 %v712
        %v1847 = vunpack.c.h.b16 %v712
        %v1848 = vunpack.c.l.b16 %v713
        %v1849 = vunpack.c.h.b16 %v713
        %v1850 = vunpack.c.l.b16 %v714
        %v1851 = vunpack.c.h.b16 %v714
        %v1852 = vunpack.c.l.b16 %v715
        %v1853 = vunpack.c.h.b16 %v715
        %v1854 = vunpack.c.l.b16 %v716
        %v1855 = vunpack.c.h.b16 %v716
        %v1856 = vunpack.c.l.b16 %v717
        %v1857 = vunpack.c.h.b16 %v717
        %v1858 = vunpack.c.l.b16 %v718
        %v1859 = vunpack.c.h.b16 %v718
        %v1860 = vunpack.c.l.b16 %v719
        %v1861 = vunpack.c.h.b16 %v719
        %v1862 = vunpack.c.l.b16 %v720
        %v1863 = vunpack.c.h.b16 %v720
        %v1864 = vunpack.c.l.b16 %v721
        %v1865 = vunpack.c.h.b16 %v721
        %v1866 = vunpack.c.l.b16 %v722
        %v1867 = vunpack.c.h.b16 %v722
        %v1868 = vunpack.c.l.b16 %v723
        %v1869 = vunpack.c.h.b16 %v723
        %v1870 = vunpack.c.l.b16 %v724
        %v1871 = vunpack.c.h.b16 %v724
        %v1872 = vunpack.c.l.b16 %v725
        %v1873 = vunpack.c.h.b16 %v725
        %v1874 = vunpack.c.l.b16 %v726
        %v1875 = vunpack.c.h.b16 %v726
        %v1876 = vunpack.c.l.b16 %v727
        %v1877 = vunpack.c.h.b16 %v727
        %v1878 = vunpack.c.l.b16 %v728
        %v1879 = vunpack.c.h.b16 %v728
        %v1880 = vunpack.c.l.b16 %v729
        %v1881 = vunpack.c.h.b16 %v729
        %v1882 = vunpack.c.l.b16 %v730
        %v1883 = vunpack.c.h.b16 %v730
        %v1884 = vunpack.c.l.b16 %v731
        %v1885 = vunpack.c.h.b16 %v731
        %v1886 = vunpack.c.l.b16 %v732
        %v1887 = vunpack.c.h.b16 %v732
        %v1888 = vunpack.c.l.b16 %v733
        %v1889 = vunpack.c.h.b16 %v733
        %v1890 = vunpack.c.l.b16 %v734
        %v1891 = vunpack.c.h.b16 %v734
        %v1892 = vunpack.c.l.b16 %v735
        %v1893 = vunpack.c.h.b16 %v735
        %v1894 = vunpack.c.l.b16 %v736
        %v1895 = vunpack.c.h.b16 %v736
        %v1896 = vunpack.c.l.b16 %v737
        %v1897 = vunpack.c.h.b16 %v737
        %v1898 = vunpack.c.l.b16 %v738
        %v1899 = vunpack.c.h.b16 %v738
        %v1900 = vunpack.c.l.b16 %v739
        %v1901 = vunpack.c.h.b16 %v739
        %v1902 = vunpack.c.l.b16 %v740
        %v1903 = vunpack.c.h.b16 %v740
        %v1904 = vunpack.c.l.b16 %v741
        %v1905 = vunpack.c.h.b16 %v741
        %v1906 = vunpack.c.l.b16 %v742
        %v1907 = vunpack.c.h.b16 %v742
        %v1908 = vunpack.c.l.b16 %v743
        %v1909 = vunpack.c.h.b16 %v743
        %v1910 = vunpack.c.l.b16 %v744
        %v1911 = vunpack.c.h.b16 %v744
        %v1912 = vunpack.c.l.b16 %v745
        %v1913 = vunpack.c.h.b16 %v745
        %v1914 = vunpack.c.l.b16 %v746
        %v1915 = vunpack.c.h.b16 %v746
        %v1916 = vunpack.c.l.b16 %v747
        %v1917 = vunpack.c.h.b16 %v747
        %v1918 = vunpack.c.l.b16 %v748
        %v1919 = vunpack.c.h.b16 %v748
        %v1920 = vunpack.c.l.b16 %v749
        %v1921 = vunpack.c.h.b16 %v749
        %v1922 = vunpack.c.l.b16 %v750
        %v1923 = vunpack.c.h.b16 %v750
        %v1924 = vunpack.c.l.b16 %v751
        %v1925 = vunpack.c.h.b16 %v751
        %v1926 = vunpack.c.l.b16 %v752
        %v1927 = vunpack.c.h.b16 %v752
        %v1928 = vunpack.c.l.b16 %v753
        %v1929 = vunpack.c.h.b16 %v753
        %v1930 = vunpack.c.l.b16 %v754
        %v1931 = vunpack.c.h.b16 %v754
        %v1932 = vunpack.c.l.b16 %v755
        %v1933 = vunpack.c.h.b16 %v755
        %v1934 = vpack.c.b16 %v1364, %v1358
        %v1935 = vpack.c.b16 %v1365, %v1359
        %v1936 = vpack.c.b16 %v1366, %v1360
        %v1937 = vpack.c.b16 %v1367, %v1361
        %v1938 = vpack.c.b16 %v1368, %v1362
        %v1939 = vpack.c.b16 %v1369, %v1363
        %v1940 = vpack.c.b16 %v1376, %v1370
        %v1941 = vpack.c.b16 %v1377, %v1371
        %v1942 = vpack.c.b16 %v1378, %v1372
        %v1943 = vpack.c.b16 %v1379, %v1373
        %v1944 = vpack.c.b16 %v1380, %v1374
        %v1945 = vpack.c.b16 %v1381, %v1375
        %v1946 = vpack.c.b16 %v1388, %v1382
        %v1947 = vpack.c.b16 %v1389, %v1383
        %v1948 = vpack.c.b16 %v1390, %v1384
        %v1949 = vpack.c.b16 %v1391, %v1385
        %v1950 = vpack.c.b16 %v1392, %v1386
        %v1951 = vpack.c.b16 %v1393, %v1387
        %v1952 = vpack.c.b16 %v1400, %v1394
        %v1953 = vpack.c.b16 %v1401, %v1395
        %v1954 = vpack.c.b16 %v1402, %v1396
        %v1955 = vpack.c.b16 %v1403, %v1397
        %v1956 = vpack.c.b16 %v1404, %v1398
        %v1957 = vpack.c.b16 %v1405, %v1399
        %v1958 = vpack.c.b16 %v1412, %v1406
        %v1959 = vpack.c.b16 %v1413, %v1407
        %v1960 = vpack.c.b16 %v1414, %v1408
        %v1961 = vpack.c.b16 %v1415, %v1409
        %v1962 = vpack.c.b16 %v1416, %v1410
        %v1963 = vpack.c.b16 %v1417, %v1411
        %v1964 = vpack.c.b16 %v1424, %v1418
        %v1965 = vpack.c.b16 %v1425, %v1419
        %v1966 = vpack.c.b16 %v1426, %v1420
        %v1967 = vpack.c.b16 %v1427, %v1421
        %v1968 = vpack.c.b16 %v1428, %v1422
        %v1969 = vpack.c.b16 %v1429, %v1423
        %v1970 = vpack.c.b16 %v1436, %v1430
        %v1971 = vpack.c.b16 %v1437, %v1431
        %v1972 = vpack.c.b16 %v1438, %v1432
        %v1973 = vpack.c.b16 %v1439, %v1433
        %v1974 = vpack.c.b16 %v1440, %v1434
        %v1975 = vpack.c.b16 %v1441, %v1435
        %v1976 = vpack.c.b16 %v1448, %v1442
        %v1977 = vpack.c.b16 %v1449, %v1443
        %v1978 = vpack.c.b16 %v1450, %v1444
        %v1979 = vpack.c.b16 %v1451, %v1445
        %v1980 = vpack.c.b16 %v1452, %v1446
        %v1981 = vpack.c.b16 %v1453, %v1447
        %v1982 = vpack.c.b16 %v1460, %v1454
        %v1983 = vpack.c.b16 %v1461, %v1455
        %v1984 = vpack.c.b16 %v1462, %v1456
        %v1985 = vpack.c.b16 %v1463, %v1457
        %v1986 = vpack.c.b16 %v1464, %v1458
        %v1987 = vpack.c.b16 %v1465, %v1459
        %v1988 = vpack.c.b16 %v1472, %v1466
        %v1989 = vpack.c.b16 %v1473, %v1467
        %v1990 = vpack.c.b16 %v1474, %v1468
        %v1991 = vpack.c.b16 %v1475, %v1469
        %v1992 = vpack.c.b16 %v1476, %v1470
        %v1993 = vpack.c.b16 %v1477, %v1471
        %v1994 = vpack.c.b16 %v1484, %v1478
        %v1995 = vpack.c.b16 %v1485, %v1479
        %v1996 = vpack.c.b16 %v1486, %v1480
        %v1997 = vpack.c.b16 %v1487, %v1481
        %v1998 = vpack.c.b16 %v1488, %v1482
        %v1999 = vpack.c.b16 %v1489, %v1483
        %v2000 = vpack.c.b16 %v1496, %v1490
        %v2001 = vpack.c.b16 %v1497, %v1491
        %v2002 = vpack.c.b16 %v1498, %v1492
        %v2003 = vpack.c.b16 %v1499, %v1493
        %v2004 = vpack.c.b16 %v1500, %v1494
        %v2005 = vpack.c.b16 %v1501, %v1495
        %v2006 = vpack.c.b16 %v1508, %v1502
        %v2007 = vpack.c.b16 %v1509, %v1503
        %v2008 = vpack.c.b16 %v1510, %v1504
        %v2009 = vpack.c.b16 %v1511, %v1505
        %v2010 = vpack.c.b16 %v1512, %v1506
        %v2011 = vpack.c.b16 %v1513, %v1507
        %v2012 = vpack.c.b16 %v1520, %v1514
        %v2013 = vpack.c.b16 %v1521, %v1515
        %v2014 = vpack.c.b16 %v1522, %v1516
        %v2015 = vpack.c.b16 %v1523, %v1517
        %v2016 = vpack.c.b16 %v1524, %v1518
        %v2017 = vpack.c.b16 %v1525, %v1519
        %v2018 = vpack.c.b16 %v1532, %v1526
        %v2019 = vpack.c.b16 %v1533, %v1527
        %v2020 = vpack.c.b16 %v1534, %v1528
        %v2021 = vpack.c.b16 %v1535, %v1529
        %v2022 = vpack.c.b16 %v1536, %v1530
        %v2023 = vpack.c.b16 %v1537, %v1531
        %v2024 = vpack.c.b16 %v1544, %v1538
        %v2025 = vpack.c.b16 %v1545, %v1539
        %v2026 = vpack.c.b16 %v1546, %v1540
        %v2027 = vpack.c.b16 %v1547, %v1541
        %v2028 = vpack.c.b16 %v1548, %v1542
        %v2029 = vpack.c.b16 %v1549, %v1543
        %v2030 = vpack.c.b16 %v1556, %v1550
        %v2031 = vpack.c.b16 %v1557, %v1551
        %v2032 = vpack.c.b16 %v1558, %v1552
        %v2033 = vpack.c.b16 %v1559, %v1553
        %v2034 = vpack.c.b16 %v1560, %v1554
        %v2035 = vpack.c.b16 %v1561, %v1555
        %v2036 = vpack.c.b16 %v1568, %v1562
        %v2037 = vpack.c.b16 %v1569, %v1563
        %v2038 = vpack.c.b16 %v1570, %v1564
        %v2039 = vpack.c.b16 %v1571, %v1565
        %v2040 = vpack.c.b16 %v1572, %v1566
        %v2041 = vpack.c.b16 %v1573, %v1567
        %v2042 = vpack.c.b16 %v1580, %v1574
        %v2043 = vpack.c.b16 %v1581, %v1575
        %v2044 = vpack.c.b16 %v1582, %v1576
        %v2045 = vpack.c.b16 %v1583, %v1577
        %v2046 = vpack.c.b16 %v1584, %v1578
        %v2047 = vpack.c.b16 %v1585, %v1579
        %v2048 = vpack.c.b16 %v1592, %v1586
        %v2049 = vpack.c.b16 %v1593, %v1587
        %v2050 = vpack.c.b16 %v1594, %v1588
        %v2051 = vpack.c.b16 %v1595, %v1589
        %v2052 = vpack.c.b16 %v1596, %v1590
        %v2053 = vpack.c.b16 %v1597, %v1591
        %v2054 = vpack.c.b16 %v1604, %v1598
        %v2055 = vpack.c.b16 %v1605, %v1599
        %v2056 = vpack.c.b16 %v1606, %v1600
        %v2057 = vpack.c.b16 %v1607, %v1601
        %v2058 = vpack.c.b16 %v1608, %v1602
        %v2059 = vpack.c.b16 %v1609, %v1603
        %v2060 = vpack.c.b16 %v1616, %v1610
        %v2061 = vpack.c.b16 %v1617, %v1611
        %v2062 = vpack.c.b16 %v1618, %v1612
        %v2063 = vpack.c.b16 %v1619, %v1613
        %v2064 = vpack.c.b16 %v1620, %v1614
        %v2065 = vpack.c.b16 %v1621, %v1615
        %v2066 = vpack.c.b16 %v1628, %v1622
        %v2067 = vpack.c.b16 %v1629, %v1623
        %v2068 = vpack.c.b16 %v1630, %v1624
        %v2069 = vpack.c.b16 %v1631, %v1625
        %v2070 = vpack.c.b16 %v1632, %v1626
        %v2071 = vpack.c.b16 %v1633, %v1627
        %v2072 = vpack.c.b16 %v1640, %v1634
        %v2073 = vpack.c.b16 %v1641, %v1635
        %v2074 = vpack.c.b16 %v1642, %v1636
        %v2075 = vpack.c.b16 %v1643, %v1637
        %v2076 = vpack.c.b16 %v1644, %v1638
        %v2077 = vpack.c.b16 %v1645, %v1639
        %v2078 = vpack.c.b16 %v1652, %v1646
        %v2079 = vpack.c.b16 %v1653, %v1647
        %v2080 = vpack.c.b16 %v1654, %v1648
        %v2081 = vpack.c.b16 %v1655, %v1649
        %v2082 = vpack.c.b16 %v1656, %v1650
        %v2083 = vpack.c.b16 %v1657, %v1651
        %v2084 = vpack.c.b16 %v1664, %v1658
        %v2085 = vpack.c.b16 %v1665, %v1659
        %v2086 = vpack.c.b16 %v1666, %v1660
        %v2087 = vpack.c.b16 %v1667, %v1661
        %v2088 = vpack.c.b16 %v1668, %v1662
        %v2089 = vpack.c.b16 %v1669, %v1663
        %v2090 = vpack.c.b16 %v1676, %v1670
        %v2091 = vpack.c.b16 %v1677, %v1671
        %v2092 = vpack.c.b16 %v1678, %v1672
        %v2093 = vpack.c.b16 %v1679, %v1673
        %v2094 = vpack.c.b16 %v1680, %v1674
        %v2095 = vpack.c.b16 %v1681, %v1675
        %v2096 = vpack.c.b16 %v1688, %v1682
        %v2097 = vpack.c.b16 %v1689, %v1683
        %v2098 = vpack.c.b16 %v1690, %v1684
        %v2099 = vpack.c.b16 %v1691, %v1685
        %v2100 = vpack.c.b16 %v1692, %v1686
        %v2101 = vpack.c.b16 %v1693, %v1687
        %v2102 = vpack.c.b16 %v1700, %v1694
        %v2103 = vpack.c.b16 %v1701, %v1695
        %v2104 = vpack.c.b16 %v1702, %v1696
        %v2105 = vpack.c.b16 %v1703, %v1697
        %v2106 = vpack.c.b16 %v1704, %v1698
        %v2107 = vpack.c.b16 %v1705, %v1699
        %v2108 = vpack.c.b16 %v1712, %v1706
        %v2109 = vpack.c.b16 %v1713, %v1707
        %v2110 = vpack.c.b16 %v1714, %v1708
        %v2111 = vpack.c.b16 %v1715, %v1709
        %v2112 = vpack.c.b16 %v1716, %v1710
        %v2113 = vpack.c.b16 %v1717, %v1711
        %v2114 = vpack.c.b16 %v1724, %v1718
        %v2115 = vpack.c.b16 %v1725, %v1719
        %v2116 = vpack.c.b16 %v1726, %v1720
        %v2117 = vpack.c.b16 %v1727, %v1721
        %v2118 = vpack.c.b16 %v1728, %v1722
        %v2119 = vpack.c.b16 %v1729, %v1723
        %v2120 = vpack.c.b16 %v1736, %v1730
        %v2121 = vpack.c.b16 %v1737, %v1731
        %v2122 = vpack.c.b16 %v1738, %v1732
        %v2123 = vpack.c.b16 %v1739, %v1733
        %v2124 = vpack.c.b16 %v1740, %v1734
        %v2125 = vpack.c.b16 %v1741, %v1735
        %v2126 = vpack.c.b16 %v1748, %v1742
        %v2127 = vpack.c.b16 %v1749, %v1743
        %v2128 = vpack.c.b16 %v1750, %v1744
        %v2129 = vpack.c.b16 %v1751, %v1745
        %v2130 = vpack.c.b16 %v1752, %v1746
        %v2131 = vpack.c.b16 %v1753, %v1747
        %v2132 = vpack.c.b16 %v1760, %v1754
        %v2133 = vpack.c.b16 %v1761, %v1755
        %v2134 = vpack.c.b16 %v1762, %v1756
        %v2135 = vpack.c.b16 %v1763, %v1757
        %v2136 = vpack.c.b16 %v1764, %v1758
        %v2137 = vpack.c.b16 %v1765, %v1759
        %v2138 = vpack.c.b16 %v1772, %v1766
        %v2139 = vpack.c.b16 %v1773, %v1767
        %v2140 = vpack.c.b16 %v1774, %v1768
        %v2141 = vpack.c.b16 %v1775, %v1769
        %v2142 = vpack.c.b16 %v1776, %v1770
        %v2143 = vpack.c.b16 %v1777, %v1771
        %v2144 = vpack.c.b16 %v1784, %v1778
        %v2145 = vpack.c.b16 %v1785, %v1779
        %v2146 = vpack.c.b16 %v1786, %v1780
        %v2147 = vpack.c.b16 %v1787, %v1781
        %v2148 = vpack.c.b16 %v1788, %v1782
        %v2149 = vpack.c.b16 %v1789, %v1783
        %v2150 = vpack.c.b16 %v1796, %v1790
        %v2151 = vpack.c.b16 %v1797, %v1791
        %v2152 = vpack.c.b16 %v1798, %v1792
        %v2153 = vpack.c.b16 %v1799, %v1793
        %v2154 = vpack.c.b16 %v1800, %v1794
        %v2155 = vpack.c.b16 %v1801, %v1795
        %v2156 = vpack.c.b16 %v1808, %v1802
        %v2157 = vpack.c.b16 %v1809, %v1803
        %v2158 = vpack.c.b16 %v1810, %v1804
        %v2159 = vpack.c.b16 %v1811, %v1805
        %v2160 = vpack.c.b16 %v1812, %v1806
        %v2161 = vpack.c.b16 %v1813, %v1807
        %v2162 = vpack.c.b16 %v1820, %v1814
        %v2163 = vpack.c.b16 %v1821, %v1815
        %v2164 = vpack.c.b16 %v1822, %v1816
        %v2165 = vpack.c.b16 %v1823, %v1817
        %v2166 = vpack.c.b16 %v1824, %v1818
        %v2167 = vpack.c.b16 %v1825, %v1819
        %v2168 = vpack.c.b16 %v1832, %v1826
        %v2169 = vpack.c.b16 %v1833, %v1827
        %v2170 = vpack.c.b16 %v1834, %v1828
        %v2171 = vpack.c.b16 %v1835, %v1829
        %v2172 = vpack.c.b16 %v1836, %v1830
        %v2173 = vpack.c.b16 %v1837, %v1831
        %v2174 = vpack.c.b16 %v1844, %v1838
        %v2175 = vpack.c.b16 %v1845, %v1839
        %v2176 = vpack.c.b16 %v1846, %v1840
        %v2177 = vpack.c.b16 %v1847, %v1841
        %v2178 = vpack.c.b16 %v1848, %v1842
        %v2179 = vpack.c.b16 %v1849, %v1843
        %v2180 = vpack.c.b16 %v1856, %v1850
        %v2181 = vpack.c.b16 %v1857, %v1851
        %v2182 = vpack.c.b16 %v1858, %v1852
        %v2183 = vpack.c.b16 %v1859, %v1853
        %v2184 = vpack.c.b16 %v1860, %v1854
        %v2185 = vpack.c.b16 %v1861, %v1855
        %v2186 = vpack.c.b16 %v1868, %v1862
        %v2187 = vpack.c.b16 %v1869, %v1863
        %v2188 = vpack.c.b16 %v1870, %v1864
        %v2189 = vpack.c.b16 %v1871, %v1865
        %v2190 = vpack.c.b16 %v1872, %v1866
        %v2191 = vpack.c.b16 %v1873, %v1867
        %v2192 = vpack.c.b16 %v1880, %v1874
        %v2193 = vpack.c.b16 %v1881, %v1875
        %v2194 = vpack.c.b16 %v1882, %v1876
        %v2195 = vpack.c.b16 %v1883, %v1877
        %v2196 = vpack.c.b16 %v1884, %v1878
        %v2197 = vpack.c.b16 %v1885, %v1879
        %v2198 = vpack.c.b16 %v1892, %v1886
        %v2199 = vpack.c.b16 %v1893, %v1887
        %v2200 = vpack.c.b16 %v1894, %v1888
        %v2201 = vpack.c.b16 %v1895, %v1889
        %v2202 = vpack.c.b16 %v1896, %v1890
        %v2203 = vpack.c.b16 %v1897, %v1891
        %v2204 = vpack.c.b16 %v1904, %v1898
        %v2205 = vpack.c.b16 %v1905, %v1899
        %v2206 = vpack.c.b16 %v1906, %v1900
        %v2207 = vpack.c.b16 %v1907, %v1901
        %v2208 = vpack.c.b16 %v1908, %v1902
        %v2209 = vpack.c.b16 %v1909, %v1903
        %v2210 = vpack.c.b16 %v1916, %v1910
        %v2211 = vpack.c.b16 %v1917, %v1911
        %v2212 = vpack.c.b16 %v1918, %v1912
        %v2213 = vpack.c.b16 %v1919, %v1913
        %v2214 = vpack.c.b16 %v1920, %v1914
        %v2215 = vpack.c.b16 %v1921, %v1915
        %v2216 = vpack.c.b16 %v1928, %v1922
        %v2217 = vpack.c.b16 %v1929, %v1923
        %v2218 = vpack.c.b16 %v1930, %v1924
        %v2219 = vpack.c.b16 %v1931, %v1925
        %v2220 = vpack.c.b16 %v1932, %v1926
        %v2221 = vpack.c.b16 %v1933, %v1927
        %2510 = vmatpush.bf16.msra.mxu0 %v1976
        %2511 = vmatpush.bf16.msra.mxu0 %v1970
        %2512 = vmatpush.bf16.msra.mxu0 %v1964
        %2513 = vmatpush.bf16.msra.mxu0 %v1958
        %2514 = vmatpush.bf16.msra.mxu0 %v1952
        %2515 = vmatpush.bf16.msra.mxu0 %v1946
        %2516 = vmatpush.bf16.msra.mxu0 %v1940
        %2517 = vmatpush.bf16.msra.mxu0 %v1934
        %2518 = vmatmul.bf16.gmra.mxu0 %v1064
        %v2519 = vpop.f32.mrf.mxu0
        %v2520 = vadd.f32 0.0, %v2519
        %v2521 = vpop.f32.mrf.mxu0
        %2522 = vdwg.mxu0
        %2523 = vmatpush.bf16.msra.mxu0 %v2024
        %2524 = vmatpush.bf16.msra.mxu0 %v2018
        %2525 = vmatpush.bf16.msra.mxu0 %v2012
        %2526 = vmatpush.bf16.msra.mxu0 %v2006
        %2527 = vmatpush.bf16.msra.mxu0 %v2000
        %2528 = vmatpush.bf16.msra.mxu0 %v1994
        %2529 = vmatpush.bf16.msra.mxu0 %v1988
        %2530 = vmatpush.bf16.msra.mxu0 %v1982
        %2531 = vmatmul.bf16.gmra.mxu0 %v1065
        %v2532 = vpop.f32.mrf.mxu0
        %v2533 = vadd.f32 %v2520, %v2532
        %v2534 = vpop.f32.mrf.mxu0
        %2535 = vdwg.mxu0
        %2536 = vmatpush.bf16.msra.mxu0 %v2072
        %2537 = vmatpush.bf16.msra.mxu0 %v2066
        %2538 = vmatpush.bf16.msra.mxu0 %v2060
        %2539 = vmatpush.bf16.msra.mxu0 %v2054
        %2540 = vmatpush.bf16.msra.mxu0 %v2048
        %2541 = vmatpush.bf16.msra.mxu0 %v2042
        %2542 = vmatpush.bf16.msra.mxu0 %v2036
        %2543 = vmatpush.bf16.msra.mxu0 %v2030
        %2544 = vmatmul.bf16.gmra.mxu0 %v1066
        %v2545 = vpop.f32.mrf.mxu0
        %v2546 = vadd.f32 %v2533, %v2545
        %v2547 = vpop.f32.mrf.mxu0
        %2548 = vdwg.mxu0
        %2549 = vmatpush.bf16.msra.mxu0 %v2120
        %2550 = vmatpush.bf16.msra.mxu0 %v2114
        %2551 = vmatpush.bf16.msra.mxu0 %v2108
        %2552 = vmatpush.bf16.msra.mxu0 %v2102
        %2553 = vmatpush.bf16.msra.mxu0 %v2096
        %2554 = vmatpush.bf16.msra.mxu0 %v2090
        %2555 = vmatpush.bf16.msra.mxu0 %v2084
        %2556 = vmatpush.bf16.msra.mxu0 %v2078
        %2557 = vmatmul.bf16.gmra.mxu0 %v1067
        %v2558 = vpop.f32.mrf.mxu0
        %v2559 = vadd.f32 %v2546, %v2558
        %v2560 = vpop.f32.mrf.mxu0
        %2561 = vdwg.mxu0
        %2562 = vmatpush.bf16.msra.mxu0 %v2168
        %2563 = vmatpush.bf16.msra.mxu0 %v2162
        %2564 = vmatpush.bf16.msra.mxu0 %v2156
        %2565 = vmatpush.bf16.msra.mxu0 %v2150
        %2566 = vmatpush.bf16.msra.mxu0 %v2144
        %2567 = vmatpush.bf16.msra.mxu0 %v2138
        %2568 = vmatpush.bf16.msra.mxu0 %v2132
        %2569 = vmatpush.bf16.msra.mxu0 %v2126
        %2570 = vmatmul.bf16.gmra.mxu0 %v1068
        %v2571 = vpop.f32.mrf.mxu0
        %v2572 = vadd.f32 %v2559, %v2571
        %v2573 = vpop.f32.mrf.mxu0
        %2574 = vdwg.mxu0
        %2575 = vmatpush.bf16.msra.mxu0 %v2216
        %2576 = vmatpush.bf16.msra.mxu0 %v2210
        %2577 = vmatpush.bf16.msra.mxu0 %v2204
        %2578 = vmatpush.bf16.msra.mxu0 %v2198
        %2579 = vmatpush.bf16.msra.mxu0 %v2192
        %2580 = vmatpush.bf16.msra.mxu0 %v2186
        %2581 = vmatpush.bf16.msra.mxu0 %v2180
        %2582 = vmatpush.bf16.msra.mxu0 %v2174
        %2583 = vmatmul.bf16.gmra.mxu0 %v1069
        %v2584 = vpop.f32.mrf.mxu0
        %v2585 = vadd.f32 %v2572, %v2584
        %v2586 = vpop.f32.mrf.mxu0
        %2587 = vdwg.mxu0
        %2588 = vmatpush.bf16.msra.mxu0 %v1977
        %2589 = vmatpush.bf16.msra.mxu0 %v1971
        %2590 = vmatpush.bf16.msra.mxu0 %v1965
        %2591 = vmatpush.bf16.msra.mxu0 %v1959
        %2592 = vmatpush.bf16.msra.mxu0 %v1953
        %2593 = vmatpush.bf16.msra.mxu0 %v1947
        %2594 = vmatpush.bf16.msra.mxu0 %v1941
        %2595 = vmatpush.bf16.msra.mxu0 %v1935
        %2596 = vmatmul.bf16.gmra.mxu0 %v1064
        %v2597 = vpop.f32.mrf.mxu0
        %v2598 = vadd.f32 0.0, %v2597
        %v2599 = vpop.f32.mrf.mxu0
        %2600 = vdwg.mxu0
        %2601 = vmatpush.bf16.msra.mxu0 %v2025
        %2602 = vmatpush.bf16.msra.mxu0 %v2019
        %2603 = vmatpush.bf16.msra.mxu0 %v2013
        %2604 = vmatpush.bf16.msra.mxu0 %v2007
        %2605 = vmatpush.bf16.msra.mxu0 %v2001
        %2606 = vmatpush.bf16.msra.mxu0 %v1995
        %2607 = vmatpush.bf16.msra.mxu0 %v1989
        %2608 = vmatpush.bf16.msra.mxu0 %v1983
        %2609 = vmatmul.bf16.gmra.mxu0 %v1065
        %v2610 = vpop.f32.mrf.mxu0
        %v2611 = vadd.f32 %v2598, %v2610
        %v2612 = vpop.f32.mrf.mxu0
        %2613 = vdwg.mxu0
        %2614 = vmatpush.bf16.msra.mxu0 %v2073
        %2615 = vmatpush.bf16.msra.mxu0 %v2067
        %2616 = vmatpush.bf16.msra.mxu0 %v2061
        %2617 = vmatpush.bf16.msra.mxu0 %v2055
        %2618 = vmatpush.bf16.msra.mxu0 %v2049
        %2619 = vmatpush.bf16.msra.mxu0 %v2043
        %2620 = vmatpush.bf16.msra.mxu0 %v2037
        %2621 = vmatpush.bf16.msra.mxu0 %v2031
        %2622 = vmatmul.bf16.gmra.mxu0 %v1066
        %v2623 = vpop.f32.mrf.mxu0
        %v2624 = vadd.f32 %v2611, %v2623
        %v2625 = vpop.f32.mrf.mxu0
        %2626 = vdwg.mxu0
        %2627 = vmatpush.bf16.msra.mxu0 %v2121
        %2628 = vmatpush.bf16.msra.mxu0 %v2115
        %2629 = vmatpush.bf16.msra.mxu0 %v2109
        %2630 = vmatpush.bf16.msra.mxu0 %v2103
        %2631 = vmatpush.bf16.msra.mxu0 %v2097
        %2632 = vmatpush.bf16.msra.mxu0 %v2091
        %2633 = vmatpush.bf16.msra.mxu0 %v2085
        %2634 = vmatpush.bf16.msra.mxu0 %v2079
        %2635 = vmatmul.bf16.gmra.mxu0 %v1067
        %v2636 = vpop.f32.mrf.mxu0
        %v2637 = vadd.f32 %v2624, %v2636
        %v2638 = vpop.f32.mrf.mxu0
        %2639 = vdwg.mxu0
        %2640 = vmatpush.bf16.msra.mxu0 %v2169
        %2641 = vmatpush.bf16.msra.mxu0 %v2163
        %2642 = vmatpush.bf16.msra.mxu0 %v2157
        %2643 = vmatpush.bf16.msra.mxu0 %v2151
        %2644 = vmatpush.bf16.msra.mxu0 %v2145
        %2645 = vmatpush.bf16.msra.mxu0 %v2139
        %2646 = vmatpush.bf16.msra.mxu0 %v2133
        %2647 = vmatpush.bf16.msra.mxu0 %v2127
        %2648 = vmatmul.bf16.gmra.mxu0 %v1068
        %v2649 = vpop.f32.mrf.mxu0
        %v2650 = vadd.f32 %v2637, %v2649
        %v2651 = vpop.f32.mrf.mxu0
        %2652 = vdwg.mxu0
        %2653 = vmatpush.bf16.msra.mxu0 %v2217
        %2654 = vmatpush.bf16.msra.mxu0 %v2211
        %2655 = vmatpush.bf16.msra.mxu0 %v2205
        %2656 = vmatpush.bf16.msra.mxu0 %v2199
        %2657 = vmatpush.bf16.msra.mxu0 %v2193
        %2658 = vmatpush.bf16.msra.mxu0 %v2187
        %2659 = vmatpush.bf16.msra.mxu0 %v2181
        %2660 = vmatpush.bf16.msra.mxu0 %v2175
        %2661 = vmatmul.bf16.gmra.mxu0 %v1069
        %v2662 = vpop.f32.mrf.mxu0
        %v2663 = vadd.f32 %v2650, %v2662
        %v2664 = vpop.f32.mrf.mxu0
        %2665 = vdwg.mxu0
        %2666 = vmatpush.bf16.msra.mxu0 %v1978
        %2667 = vmatpush.bf16.msra.mxu0 %v1972
        %2668 = vmatpush.bf16.msra.mxu0 %v1966
        %2669 = vmatpush.bf16.msra.mxu0 %v1960
        %2670 = vmatpush.bf16.msra.mxu0 %v1954
        %2671 = vmatpush.bf16.msra.mxu0 %v1948
        %2672 = vmatpush.bf16.msra.mxu0 %v1942
        %2673 = vmatpush.bf16.msra.mxu0 %v1936
        %2674 = vmatmul.bf16.gmra.mxu0 %v1064
        %v2675 = vpop.f32.mrf.mxu0
        %v2676 = vadd.f32 0.0, %v2675
        %v2677 = vpop.f32.mrf.mxu0
        %2678 = vdwg.mxu0
        %2679 = vmatpush.bf16.msra.mxu0 %v2026
        %2680 = vmatpush.bf16.msra.mxu0 %v2020
        %2681 = vmatpush.bf16.msra.mxu0 %v2014
        %2682 = vmatpush.bf16.msra.mxu0 %v2008
        %2683 = vmatpush.bf16.msra.mxu0 %v2002
        %2684 = vmatpush.bf16.msra.mxu0 %v1996
        %2685 = vmatpush.bf16.msra.mxu0 %v1990
        %2686 = vmatpush.bf16.msra.mxu0 %v1984
        %2687 = vmatmul.bf16.gmra.mxu0 %v1065
        %v2688 = vpop.f32.mrf.mxu0
        %v2689 = vadd.f32 %v2676, %v2688
        %v2690 = vpop.f32.mrf.mxu0
        %2691 = vdwg.mxu0
        %2692 = vmatpush.bf16.msra.mxu0 %v2074
        %2693 = vmatpush.bf16.msra.mxu0 %v2068
        %2694 = vmatpush.bf16.msra.mxu0 %v2062
        %2695 = vmatpush.bf16.msra.mxu0 %v2056
        %2696 = vmatpush.bf16.msra.mxu0 %v2050
        %2697 = vmatpush.bf16.msra.mxu0 %v2044
        %2698 = vmatpush.bf16.msra.mxu0 %v2038
        %2699 = vmatpush.bf16.msra.mxu0 %v2032
        %2700 = vmatmul.bf16.gmra.mxu0 %v1066
        %v2701 = vpop.f32.mrf.mxu0
        %v2702 = vadd.f32 %v2689, %v2701
        %v2703 = vpop.f32.mrf.mxu0
        %2704 = vdwg.mxu0
        %2705 = vmatpush.bf16.msra.mxu0 %v2122
        %2706 = vmatpush.bf16.msra.mxu0 %v2116
        %2707 = vmatpush.bf16.msra.mxu0 %v2110
        %2708 = vmatpush.bf16.msra.mxu0 %v2104
        %2709 = vmatpush.bf16.msra.mxu0 %v2098
        %2710 = vmatpush.bf16.msra.mxu0 %v2092
        %2711 = vmatpush.bf16.msra.mxu0 %v2086
        %2712 = vmatpush.bf16.msra.mxu0 %v2080
        %2713 = vmatmul.bf16.gmra.mxu0 %v1067
        %v2714 = vpop.f32.mrf.mxu0
        %v2715 = vadd.f32 %v2702, %v2714
        %v2716 = vpop.f32.mrf.mxu0
        %2717 = vdwg.mxu0
        %2718 = vmatpush.bf16.msra.mxu0 %v2170
        %2719 = vmatpush.bf16.msra.mxu0 %v2164
        %2720 = vmatpush.bf16.msra.mxu0 %v2158
        %2721 = vmatpush.bf16.msra.mxu0 %v2152
        %2722 = vmatpush.bf16.msra.mxu0 %v2146
        %2723 = vmatpush.bf16.msra.mxu0 %v2140
        %2724 = vmatpush.bf16.msra.mxu0 %v2134
        %2725 = vmatpush.bf16.msra.mxu0 %v2128
        %2726 = vmatmul.bf16.gmra.mxu0 %v1068
        %v2727 = vpop.f32.mrf.mxu0
        %v2728 = vadd.f32 %v2715, %v2727
        %v2729 = vpop.f32.mrf.mxu0
        %2730 = vdwg.mxu0
        %2731 = vmatpush.bf16.msra.mxu0 %v2218
        %2732 = vmatpush.bf16.msra.mxu0 %v2212
        %2733 = vmatpush.bf16.msra.mxu0 %v2206
        %2734 = vmatpush.bf16.msra.mxu0 %v2200
        %2735 = vmatpush.bf16.msra.mxu0 %v2194
        %2736 = vmatpush.bf16.msra.mxu0 %v2188
        %2737 = vmatpush.bf16.msra.mxu0 %v2182
        %2738 = vmatpush.bf16.msra.mxu0 %v2176
        %2739 = vmatmul.bf16.gmra.mxu0 %v1069
        %v2740 = vpop.f32.mrf.mxu0
        %v2741 = vadd.f32 %v2728, %v2740
        %v2742 = vpop.f32.mrf.mxu0
        %2743 = vdwg.mxu0
        %2744 = vmatpush.bf16.msra.mxu0 %v1979
        %2745 = vmatpush.bf16.msra.mxu0 %v1973
        %2746 = vmatpush.bf16.msra.mxu0 %v1967
        %2747 = vmatpush.bf16.msra.mxu0 %v1961
        %2748 = vmatpush.bf16.msra.mxu0 %v1955
        %2749 = vmatpush.bf16.msra.mxu0 %v1949
        %2750 = vmatpush.bf16.msra.mxu0 %v1943
        %2751 = vmatpush.bf16.msra.mxu0 %v1937
        %2752 = vmatmul.bf16.gmra.mxu0 %v1064
        %v2753 = vpop.f32.mrf.mxu0
        %v2754 = vadd.f32 0.0, %v2753
        %v2755 = vpop.f32.mrf.mxu0
        %2756 = vdwg.mxu0
        %2757 = vmatpush.bf16.msra.mxu0 %v2027
        %2758 = vmatpush.bf16.msra.mxu0 %v2021
        %2759 = vmatpush.bf16.msra.mxu0 %v2015
        %2760 = vmatpush.bf16.msra.mxu0 %v2009
        %2761 = vmatpush.bf16.msra.mxu0 %v2003
        %2762 = vmatpush.bf16.msra.mxu0 %v1997
        %2763 = vmatpush.bf16.msra.mxu0 %v1991
        %2764 = vmatpush.bf16.msra.mxu0 %v1985
        %2765 = vmatmul.bf16.gmra.mxu0 %v1065
        %v2766 = vpop.f32.mrf.mxu0
        %v2767 = vadd.f32 %v2754, %v2766
        %v2768 = vpop.f32.mrf.mxu0
        %2769 = vdwg.mxu0
        %2770 = vmatpush.bf16.msra.mxu0 %v2075
        %2771 = vmatpush.bf16.msra.mxu0 %v2069
        %2772 = vmatpush.bf16.msra.mxu0 %v2063
        %2773 = vmatpush.bf16.msra.mxu0 %v2057
        %2774 = vmatpush.bf16.msra.mxu0 %v2051
        %2775 = vmatpush.bf16.msra.mxu0 %v2045
        %2776 = vmatpush.bf16.msra.mxu0 %v2039
        %2777 = vmatpush.bf16.msra.mxu0 %v2033
        %2778 = vmatmul.bf16.gmra.mxu0 %v1066
        %v2779 = vpop.f32.mrf.mxu0
        %v2780 = vadd.f32 %v2767, %v2779
        %v2781 = vpop.f32.mrf.mxu0
        %2782 = vdwg.mxu0
        %2783 = vmatpush.bf16.msra.mxu0 %v2123
        %2784 = vmatpush.bf16.msra.mxu0 %v2117
        %2785 = vmatpush.bf16.msra.mxu0 %v2111
        %2786 = vmatpush.bf16.msra.mxu0 %v2105
        %2787 = vmatpush.bf16.msra.mxu0 %v2099
        %2788 = vmatpush.bf16.msra.mxu0 %v2093
        %2789 = vmatpush.bf16.msra.mxu0 %v2087
        %2790 = vmatpush.bf16.msra.mxu0 %v2081
        %2791 = vmatmul.bf16.gmra.mxu0 %v1067
        %v2792 = vpop.f32.mrf.mxu0
        %v2793 = vadd.f32 %v2780, %v2792
        %v2794 = vpop.f32.mrf.mxu0
        %2795 = vdwg.mxu0
        %2796 = vmatpush.bf16.msra.mxu0 %v2171
        %2797 = vmatpush.bf16.msra.mxu0 %v2165
        %2798 = vmatpush.bf16.msra.mxu0 %v2159
        %2799 = vmatpush.bf16.msra.mxu0 %v2153
        %2800 = vmatpush.bf16.msra.mxu0 %v2147
        %2801 = vmatpush.bf16.msra.mxu0 %v2141
        %2802 = vmatpush.bf16.msra.mxu0 %v2135
        %2803 = vmatpush.bf16.msra.mxu0 %v2129
        %2804 = vmatmul.bf16.gmra.mxu0 %v1068
        %v2805 = vpop.f32.mrf.mxu0
        %v2806 = vadd.f32 %v2793, %v2805
        %v2807 = vpop.f32.mrf.mxu0
        %2808 = vdwg.mxu0
        %2809 = vmatpush.bf16.msra.mxu0 %v2219
        %2810 = vmatpush.bf16.msra.mxu0 %v2213
        %2811 = vmatpush.bf16.msra.mxu0 %v2207
        %2812 = vmatpush.bf16.msra.mxu0 %v2201
        %2813 = vmatpush.bf16.msra.mxu0 %v2195
        %2814 = vmatpush.bf16.msra.mxu0 %v2189
        %2815 = vmatpush.bf16.msra.mxu0 %v2183
        %2816 = vmatpush.bf16.msra.mxu0 %v2177
        %2817 = vmatmul.bf16.gmra.mxu0 %v1069
        %v2818 = vpop.f32.mrf.mxu0
        %v2819 = vadd.f32 %v2806, %v2818
        %v2820 = vpop.f32.mrf.mxu0
        %2821 = vdwg.mxu0
        %2822 = vmatpush.bf16.msra.mxu0 %v1980
        %2823 = vmatpush.bf16.msra.mxu0 %v1974
        %2824 = vmatpush.bf16.msra.mxu0 %v1968
        %2825 = vmatpush.bf16.msra.mxu0 %v1962
        %2826 = vmatpush.bf16.msra.mxu0 %v1956
        %2827 = vmatpush.bf16.msra.mxu0 %v1950
        %2828 = vmatpush.bf16.msra.mxu0 %v1944
        %2829 = vmatpush.bf16.msra.mxu0 %v1938
        %2830 = vmatmul.bf16.gmra.mxu0 %v1064
        %v2831 = vpop.f32.mrf.mxu0
        %v2832 = vadd.f32 0.0, %v2831
        %v2833 = vpop.f32.mrf.mxu0
        %2834 = vdwg.mxu0
        %2835 = vmatpush.bf16.msra.mxu0 %v2028
        %2836 = vmatpush.bf16.msra.mxu0 %v2022
        %2837 = vmatpush.bf16.msra.mxu0 %v2016
        %2838 = vmatpush.bf16.msra.mxu0 %v2010
        %2839 = vmatpush.bf16.msra.mxu0 %v2004
        %2840 = vmatpush.bf16.msra.mxu0 %v1998
        %2841 = vmatpush.bf16.msra.mxu0 %v1992
        %2842 = vmatpush.bf16.msra.mxu0 %v1986
        %2843 = vmatmul.bf16.gmra.mxu0 %v1065
        %v2844 = vpop.f32.mrf.mxu0
        %v2845 = vadd.f32 %v2832, %v2844
        %v2846 = vpop.f32.mrf.mxu0
        %2847 = vdwg.mxu0
        %2848 = vmatpush.bf16.msra.mxu0 %v2076
        %2849 = vmatpush.bf16.msra.mxu0 %v2070
        %2850 = vmatpush.bf16.msra.mxu0 %v2064
        %2851 = vmatpush.bf16.msra.mxu0 %v2058
        %2852 = vmatpush.bf16.msra.mxu0 %v2052
        %2853 = vmatpush.bf16.msra.mxu0 %v2046
        %2854 = vmatpush.bf16.msra.mxu0 %v2040
        %2855 = vmatpush.bf16.msra.mxu0 %v2034
        %2856 = vmatmul.bf16.gmra.mxu0 %v1066
        %v2857 = vpop.f32.mrf.mxu0
        %v2858 = vadd.f32 %v2845, %v2857
        %v2859 = vpop.f32.mrf.mxu0
        %2860 = vdwg.mxu0
        %2861 = vmatpush.bf16.msra.mxu0 %v2124
        %2862 = vmatpush.bf16.msra.mxu0 %v2118
        %2863 = vmatpush.bf16.msra.mxu0 %v2112
        %2864 = vmatpush.bf16.msra.mxu0 %v2106
        %2865 = vmatpush.bf16.msra.mxu0 %v2100
        %2866 = vmatpush.bf16.msra.mxu0 %v2094
        %2867 = vmatpush.bf16.msra.mxu0 %v2088
        %2868 = vmatpush.bf16.msra.mxu0 %v2082
        %2869 = vmatmul.bf16.gmra.mxu0 %v1067
        %v2870 = vpop.f32.mrf.mxu0
        %v2871 = vadd.f32 %v2858, %v2870
        %v2872 = vpop.f32.mrf.mxu0
        %2873 = vdwg.mxu0
        %2874 = vmatpush.bf16.msra.mxu0 %v2172
        %2875 = vmatpush.bf16.msra.mxu0 %v2166
        %2876 = vmatpush.bf16.msra.mxu0 %v2160
        %2877 = vmatpush.bf16.msra.mxu0 %v2154
        %2878 = vmatpush.bf16.msra.mxu0 %v2148
        %2879 = vmatpush.bf16.msra.mxu0 %v2142
        %2880 = vmatpush.bf16.msra.mxu0 %v2136
        %2881 = vmatpush.bf16.msra.mxu0 %v2130
        %2882 = vmatmul.bf16.gmra.mxu0 %v1068
        %v2883 = vpop.f32.mrf.mxu0
        %v2884 = vadd.f32 %v2871, %v2883
        %v2885 = vpop.f32.mrf.mxu0
        %2886 = vdwg.mxu0
        %2887 = vmatpush.bf16.msra.mxu0 %v2220
        %2888 = vmatpush.bf16.msra.mxu0 %v2214
        %2889 = vmatpush.bf16.msra.mxu0 %v2208
        %2890 = vmatpush.bf16.msra.mxu0 %v2202
        %2891 = vmatpush.bf16.msra.mxu0 %v2196
        %2892 = vmatpush.bf16.msra.mxu0 %v2190
        %2893 = vmatpush.bf16.msra.mxu0 %v2184
        %2894 = vmatpush.bf16.msra.mxu0 %v2178
        %2895 = vmatmul.bf16.gmra.mxu0 %v1069
        %v2896 = vpop.f32.mrf.mxu0
        %v2897 = vadd.f32 %v2884, %v2896
        %v2898 = vpop.f32.mrf.mxu0
        %2899 = vdwg.mxu0
        %2900 = vmatpush.bf16.msra.mxu0 %v1981
        %2901 = vmatpush.bf16.msra.mxu0 %v1975
        %2902 = vmatpush.bf16.msra.mxu0 %v1969
        %2903 = vmatpush.bf16.msra.mxu0 %v1963
        %2904 = vmatpush.bf16.msra.mxu0 %v1957
        %2905 = vmatpush.bf16.msra.mxu0 %v1951
        %2906 = vmatpush.bf16.msra.mxu0 %v1945
        %2907 = vmatpush.bf16.msra.mxu0 %v1939
        %2908 = vmatmul.bf16.gmra.mxu0 %v1064
        %v2909 = vpop.f32.mrf.mxu0
        %v2910 = vadd.f32 0.0, %v2909
        %v2911 = vpop.f32.mrf.mxu0
        %2912 = vdwg.mxu0
        %2913 = vmatpush.bf16.msra.mxu0 %v2029
        %2914 = vmatpush.bf16.msra.mxu0 %v2023
        %2915 = vmatpush.bf16.msra.mxu0 %v2017
        %2916 = vmatpush.bf16.msra.mxu0 %v2011
        %2917 = vmatpush.bf16.msra.mxu0 %v2005
        %2918 = vmatpush.bf16.msra.mxu0 %v1999
        %2919 = vmatpush.bf16.msra.mxu0 %v1993
        %2920 = vmatpush.bf16.msra.mxu0 %v1987
        %2921 = vmatmul.bf16.gmra.mxu0 %v1065
        %v2922 = vpop.f32.mrf.mxu0
        %v2923 = vadd.f32 %v2910, %v2922
        %v2924 = vpop.f32.mrf.mxu0
        %2925 = vdwg.mxu0
        %2926 = vmatpush.bf16.msra.mxu0 %v2077
        %2927 = vmatpush.bf16.msra.mxu0 %v2071
        %2928 = vmatpush.bf16.msra.mxu0 %v2065
        %2929 = vmatpush.bf16.msra.mxu0 %v2059
        %2930 = vmatpush.bf16.msra.mxu0 %v2053
        %2931 = vmatpush.bf16.msra.mxu0 %v2047
        %2932 = vmatpush.bf16.msra.mxu0 %v2041
        %2933 = vmatpush.bf16.msra.mxu0 %v2035
        %2934 = vmatmul.bf16.gmra.mxu0 %v1066
        %v2935 = vpop.f32.mrf.mxu0
        %v2936 = vadd.f32 %v2923, %v2935
        %v2937 = vpop.f32.mrf.mxu0
        %2938 = vdwg.mxu0
        %2939 = vmatpush.bf16.msra.mxu0 %v2125
        %2940 = vmatpush.bf16.msra.mxu0 %v2119
        %2941 = vmatpush.bf16.msra.mxu0 %v2113
        %2942 = vmatpush.bf16.msra.mxu0 %v2107
        %2943 = vmatpush.bf16.msra.mxu0 %v2101
        %2944 = vmatpush.bf16.msra.mxu0 %v2095
        %2945 = vmatpush.bf16.msra.mxu0 %v2089
        %2946 = vmatpush.bf16.msra.mxu0 %v2083
        %2947 = vmatmul.bf16.gmra.mxu0 %v1067
        %v2948 = vpop.f32.mrf.mxu0
        %v2949 = vadd.f32 %v2936, %v2948
        %v2950 = vpop.f32.mrf.mxu0
        %2951 = vdwg.mxu0
        %2952 = vmatpush.bf16.msra.mxu0 %v2173
        %2953 = vmatpush.bf16.msra.mxu0 %v2167
        %2954 = vmatpush.bf16.msra.mxu0 %v2161
        %2955 = vmatpush.bf16.msra.mxu0 %v2155
        %2956 = vmatpush.bf16.msra.mxu0 %v2149
        %2957 = vmatpush.bf16.msra.mxu0 %v2143
        %2958 = vmatpush.bf16.msra.mxu0 %v2137
        %2959 = vmatpush.bf16.msra.mxu0 %v2131
        %2960 = vmatmul.bf16.gmra.mxu0 %v1068
        %v2961 = vpop.f32.mrf.mxu0
        %v2962 = vadd.f32 %v2949, %v2961
        %v2963 = vpop.f32.mrf.mxu0
        %2964 = vdwg.mxu0
        %2965 = vmatpush.bf16.msra.mxu0 %v2221
        %2966 = vmatpush.bf16.msra.mxu0 %v2215
        %2967 = vmatpush.bf16.msra.mxu0 %v2209
        %2968 = vmatpush.bf16.msra.mxu0 %v2203
        %2969 = vmatpush.bf16.msra.mxu0 %v2197
        %2970 = vmatpush.bf16.msra.mxu0 %v2191
        %2971 = vmatpush.bf16.msra.mxu0 %v2185
        %2972 = vmatpush.bf16.msra.mxu0 %v2179
        %2973 = vmatmul.bf16.gmra.mxu0 %v1069
        %v2974 = vpop.f32.mrf.mxu0
        %v2975 = vadd.f32 %v2962, %v2974
        %v2976 = vpop.f32.mrf.mxu0
        %2977 = vdwg.mxu0
        %v2979 = vperm.slane %v756, 0
        %v2980 = vperm.slane %v756, 1
        %v2981 = vperm.slane %v756, 2
        %v2982 = vperm.slane %v756, 3
        %v2983 = vperm.slane %v756, 4
        %v2984 = vperm.slane %v756, 5
        %v2992 = vsel %vm1046, %v1052, 0
        %2994 = vmatpush.msra.mxu0 0.0
        %2995 = vmatpush.msra.mxu0 0.0
        %2996 = vmatpush.msra.mxu0 0.0
        %2997 = vmatpush.msra.mxu0 0.0
        %2998 = vmatpush.msra.mxu0 0.0
        %2999 = vmatpush.msra.mxu0 0.0
        %3000 = vmatpush.msra.mxu0 0.0
        %3001 = vmatpush.msra.mxu0 0.0
        %3002 = vmatpush.msra.mxu0 0.0
        %3003 = vmatpush.msra.mxu0 0.0
        %3004 = vmatpush.msra.mxu0 0.0
        %3005 = vmatpush.msra.mxu0 0.0
        %3006 = vmatpush.msra.mxu0 0.0
        %3007 = vmatpush.msra.mxu0 0.0
        %3008 = vmatpush.msra.mxu0 0.0
        %3009 = vmatpush.msra.mxu0 %v2585
        %3010 = vmatmul.f32.gmra.mxu0 %v2992
        %v3011 = vpop.f32.mrf.mxu0
        %v3012 = vadd.f32 %v2979, %v3011
        %3013 = vdwg.mxu0
        %3014 = vmatpush.msra.mxu0 0.0
        %3015 = vmatpush.msra.mxu0 0.0
        %3016 = vmatpush.msra.mxu0 0.0
        %3017 = vmatpush.msra.mxu0 0.0
        %3018 = vmatpush.msra.mxu0 0.0
        %3019 = vmatpush.msra.mxu0 0.0
        %3020 = vmatpush.msra.mxu0 0.0
        %3021 = vmatpush.msra.mxu0 0.0
        %3022 = vmatpush.msra.mxu0 0.0
        %3023 = vmatpush.msra.mxu0 0.0
        %3024 = vmatpush.msra.mxu0 0.0
        %3025 = vmatpush.msra.mxu0 0.0
        %3026 = vmatpush.msra.mxu0 0.0
        %3027 = vmatpush.msra.mxu0 0.0
        %3028 = vmatpush.msra.mxu0 0.0
        %3029 = vmatpush.msra.mxu0 %v2663
        %3030 = vmatmul.f32.gmra.mxu0 %v2992
        %v3031 = vpop.f32.mrf.mxu0
        %v3032 = vadd.f32 %v2980, %v3031
        %3033 = vdwg.mxu0
        %3034 = vmatpush.msra.mxu0 0.0
        %3035 = vmatpush.msra.mxu0 0.0
        %3036 = vmatpush.msra.mxu0 0.0
        %3037 = vmatpush.msra.mxu0 0.0
        %3038 = vmatpush.msra.mxu0 0.0
        %3039 = vmatpush.msra.mxu0 0.0
        %3040 = vmatpush.msra.mxu0 0.0
        %3041 = vmatpush.msra.mxu0 0.0
        %3042 = vmatpush.msra.mxu0 0.0
        %3043 = vmatpush.msra.mxu0 0.0
        %3044 = vmatpush.msra.mxu0 0.0
        %3045 = vmatpush.msra.mxu0 0.0
        %3046 = vmatpush.msra.mxu0 0.0
        %3047 = vmatpush.msra.mxu0 0.0
        %3048 = vmatpush.msra.mxu0 0.0
        %3049 = vmatpush.msra.mxu0 %v2741
        %3050 = vmatmul.f32.gmra.mxu0 %v2992
        %v3051 = vpop.f32.mrf.mxu0
        %v3052 = vadd.f32 %v2981, %v3051
        %3053 = vdwg.mxu0
        %3054 = vmatpush.msra.mxu0 0.0
        %3055 = vmatpush.msra.mxu0 0.0
        %3056 = vmatpush.msra.mxu0 0.0
        %3057 = vmatpush.msra.mxu0 0.0
        %3058 = vmatpush.msra.mxu0 0.0
        %3059 = vmatpush.msra.mxu0 0.0
        %3060 = vmatpush.msra.mxu0 0.0
        %3061 = vmatpush.msra.mxu0 0.0
        %3062 = vmatpush.msra.mxu0 0.0
        %3063 = vmatpush.msra.mxu0 0.0
        %3064 = vmatpush.msra.mxu0 0.0
        %3065 = vmatpush.msra.mxu0 0.0
        %3066 = vmatpush.msra.mxu0 0.0
        %3067 = vmatpush.msra.mxu0 0.0
        %3068 = vmatpush.msra.mxu0 0.0
        %3069 = vmatpush.msra.mxu0 %v2819
        %3070 = vmatmul.f32.gmra.mxu0 %v2992
        %v3071 = vpop.f32.mrf.mxu0
        %v3072 = vadd.f32 %v2982, %v3071
        %3073 = vdwg.mxu0
        %3074 = vmatpush.msra.mxu0 0.0
        %3075 = vmatpush.msra.mxu0 0.0
        %3076 = vmatpush.msra.mxu0 0.0
        %3077 = vmatpush.msra.mxu0 0.0
        %3078 = vmatpush.msra.mxu0 0.0
        %3079 = vmatpush.msra.mxu0 0.0
        %3080 = vmatpush.msra.mxu0 0.0
        %3081 = vmatpush.msra.mxu0 0.0
        %3082 = vmatpush.msra.mxu0 0.0
        %3083 = vmatpush.msra.mxu0 0.0
        %3084 = vmatpush.msra.mxu0 0.0
        %3085 = vmatpush.msra.mxu0 0.0
        %3086 = vmatpush.msra.mxu0 0.0
        %3087 = vmatpush.msra.mxu0 0.0
        %3088 = vmatpush.msra.mxu0 0.0
        %3089 = vmatpush.msra.mxu0 %v2897
        %3090 = vmatmul.f32.gmra.mxu0 %v2992
        %v3091 = vpop.f32.mrf.mxu0
        %v3092 = vadd.f32 %v2983, %v3091
        %3093 = vdwg.mxu0
        %3094 = vmatpush.msra.mxu0 0.0
        %3095 = vmatpush.msra.mxu0 0.0
        %3096 = vmatpush.msra.mxu0 0.0
        %3097 = vmatpush.msra.mxu0 0.0
        %3098 = vmatpush.msra.mxu0 0.0
        %3099 = vmatpush.msra.mxu0 0.0
        %3100 = vmatpush.msra.mxu0 0.0
        %3101 = vmatpush.msra.mxu0 0.0
        %3102 = vmatpush.msra.mxu0 0.0
        %3103 = vmatpush.msra.mxu0 0.0
        %3104 = vmatpush.msra.mxu0 0.0
        %3105 = vmatpush.msra.mxu0 0.0
        %3106 = vmatpush.msra.mxu0 0.0
        %3107 = vmatpush.msra.mxu0 0.0
        %3108 = vmatpush.msra.mxu0 0.0
        %3109 = vmatpush.msra.mxu0 %v2975
        %3110 = vmatmul.f32.gmra.mxu0 %v2992
        %v3111 = vpop.f32.mrf.mxu0
        %v3112 = vadd.f32 %v2984, %v3111
        %3113 = vdwg.mxu0
        %v3114 = vmax.f32 %v3012, 0.0
        %v3115 = vmax.f32 %v3032, 0.0
        %v3116 = vmax.f32 %v3052, 0.0
        %v3117 = vmax.f32 %v3072, 0.0
        %v3118 = vmax.f32 %v3092, 0.0
        %v3119 = vmax.f32 %v3112, 0.0
        %v3120 = vmul.f32 %v3114, %v1056
        %v3121 = vmul.f32 %v3115, %v1056
        %v3122 = vmul.f32 %v3116, %v1056
        %v3123 = vmul.f32 %v3117, %v1056
        %v3124 = vmul.f32 %v3118, %v1056
        %v3125 = vmul.f32 %v3119, %v1056
        %v3126 = vpack.c.bf16 %v3120, %v3120
        %v3127 = vpack.c.bf16 %v3121, %v3121
        %v3128 = vpack.c.bf16 %v3122, %v3122
        %v3129 = vpack.c.bf16 %v3123, %v3123
        %v3130 = vpack.c.bf16 %v3124, %v3124
        %v3131 = vpack.c.bf16 %v3125, %v3125
        %v3420 = vunpack.c.l.b16 %v757
        %v3421 = vunpack.c.h.b16 %v757
        %v3422 = vunpack.c.l.b16 %v758
        %v3423 = vunpack.c.h.b16 %v758
        %v3424 = vunpack.c.l.b16 %v759
        %v3425 = vunpack.c.h.b16 %v759
        %v3426 = vunpack.c.l.b16 %v760
        %v3427 = vunpack.c.h.b16 %v760
        %v3428 = vunpack.c.l.b16 %v761
        %v3429 = vunpack.c.h.b16 %v761
        %v3430 = vunpack.c.l.b16 %v762
        %v3431 = vunpack.c.h.b16 %v762
        %v3432 = vunpack.c.l.b16 %v763
        %v3433 = vunpack.c.h.b16 %v763
        %v3434 = vunpack.c.l.b16 %v764
        %v3435 = vunpack.c.h.b16 %v764
        %v3436 = vunpack.c.l.b16 %v765
        %v3437 = vunpack.c.h.b16 %v765
        %v3438 = vunpack.c.l.b16 %v766
        %v3439 = vunpack.c.h.b16 %v766
        %v3440 = vunpack.c.l.b16 %v767
        %v3441 = vunpack.c.h.b16 %v767
        %v3442 = vunpack.c.l.b16 %v768
        %v3443 = vunpack.c.h.b16 %v768
        %v3444 = vunpack.c.l.b16 %v769
        %v3445 = vunpack.c.h.b16 %v769
        %v3446 = vunpack.c.l.b16 %v770
        %v3447 = vunpack.c.h.b16 %v770
        %v3448 = vunpack.c.l.b16 %v771
        %v3449 = vunpack.c.h.b16 %v771
        %v3450 = vunpack.c.l.b16 %v772
        %v3451 = vunpack.c.h.b16 %v772
        %v3452 = vunpack.c.l.b16 %v773
        %v3453 = vunpack.c.h.b16 %v773
        %v3454 = vunpack.c.l.b16 %v774
        %v3455 = vunpack.c.h.b16 %v774
        %v3456 = vunpack.c.l.b16 %v775
        %v3457 = vunpack.c.h.b16 %v775
        %v3458 = vunpack.c.l.b16 %v776
        %v3459 = vunpack.c.h.b16 %v776
        %v3460 = vunpack.c.l.b16 %v777
        %v3461 = vunpack.c.h.b16 %v777
        %v3462 = vunpack.c.l.b16 %v778
        %v3463 = vunpack.c.h.b16 %v778
        %v3464 = vunpack.c.l.b16 %v779
        %v3465 = vunpack.c.h.b16 %v779
        %v3466 = vunpack.c.l.b16 %v780
        %v3467 = vunpack.c.h.b16 %v780
        %v3468 = vunpack.c.l.b16 %v781
        %v3469 = vunpack.c.h.b16 %v781
        %v3470 = vunpack.c.l.b16 %v782
        %v3471 = vunpack.c.h.b16 %v782
        %v3472 = vunpack.c.l.b16 %v783
        %v3473 = vunpack.c.h.b16 %v783
        %v3474 = vunpack.c.l.b16 %v784
        %v3475 = vunpack.c.h.b16 %v784
        %v3476 = vunpack.c.l.b16 %v785
        %v3477 = vunpack.c.h.b16 %v785
        %v3478 = vunpack.c.l.b16 %v786
        %v3479 = vunpack.c.h.b16 %v786
        %v3480 = vunpack.c.l.b16 %v787
        %v3481 = vunpack.c.h.b16 %v787
        %v3482 = vunpack.c.l.b16 %v788
        %v3483 = vunpack.c.h.b16 %v788
        %v3484 = vunpack.c.l.b16 %v789
        %v3485 = vunpack.c.h.b16 %v789
        %v3486 = vunpack.c.l.b16 %v790
        %v3487 = vunpack.c.h.b16 %v790
        %v3488 = vunpack.c.l.b16 %v791
        %v3489 = vunpack.c.h.b16 %v791
        %v3490 = vunpack.c.l.b16 %v792
        %v3491 = vunpack.c.h.b16 %v792
        %v3492 = vunpack.c.l.b16 %v793
        %v3493 = vunpack.c.h.b16 %v793
        %v3494 = vunpack.c.l.b16 %v794
        %v3495 = vunpack.c.h.b16 %v794
        %v3496 = vunpack.c.l.b16 %v795
        %v3497 = vunpack.c.h.b16 %v795
        %v3498 = vunpack.c.l.b16 %v796
        %v3499 = vunpack.c.h.b16 %v796
        %v3500 = vunpack.c.l.b16 %v797
        %v3501 = vunpack.c.h.b16 %v797
        %v3502 = vunpack.c.l.b16 %v798
        %v3503 = vunpack.c.h.b16 %v798
        %v3504 = vunpack.c.l.b16 %v799
        %v3505 = vunpack.c.h.b16 %v799
        %v3506 = vunpack.c.l.b16 %v800
        %v3507 = vunpack.c.h.b16 %v800
        %v3508 = vunpack.c.l.b16 %v801
        %v3509 = vunpack.c.h.b16 %v801
        %v3510 = vunpack.c.l.b16 %v802
        %v3511 = vunpack.c.h.b16 %v802
        %v3512 = vunpack.c.l.b16 %v803
        %v3513 = vunpack.c.h.b16 %v803
        %v3514 = vunpack.c.l.b16 %v804
        %v3515 = vunpack.c.h.b16 %v804
        %v3516 = vunpack.c.l.b16 %v805
        %v3517 = vunpack.c.h.b16 %v805
        %v3518 = vunpack.c.l.b16 %v806
        %v3519 = vunpack.c.h.b16 %v806
        %v3520 = vunpack.c.l.b16 %v807
        %v3521 = vunpack.c.h.b16 %v807
        %v3522 = vunpack.c.l.b16 %v808
        %v3523 = vunpack.c.h.b16 %v808
        %v3524 = vunpack.c.l.b16 %v809
        %v3525 = vunpack.c.h.b16 %v809
        %v3526 = vunpack.c.l.b16 %v810
        %v3527 = vunpack.c.h.b16 %v810
        %v3528 = vunpack.c.l.b16 %v811
        %v3529 = vunpack.c.h.b16 %v811
        %v3530 = vunpack.c.l.b16 %v812
        %v3531 = vunpack.c.h.b16 %v812
        %v3532 = vunpack.c.l.b16 %v813
        %v3533 = vunpack.c.h.b16 %v813
        %v3534 = vunpack.c.l.b16 %v814
        %v3535 = vunpack.c.h.b16 %v814
        %v3536 = vunpack.c.l.b16 %v815
        %v3537 = vunpack.c.h.b16 %v815
        %v3538 = vunpack.c.l.b16 %v816
        %v3539 = vunpack.c.h.b16 %v816
        %v3540 = vunpack.c.l.b16 %v817
        %v3541 = vunpack.c.h.b16 %v817
        %v3542 = vunpack.c.l.b16 %v818
        %v3543 = vunpack.c.h.b16 %v818
        %v3544 = vunpack.c.l.b16 %v819
        %v3545 = vunpack.c.h.b16 %v819
        %v3546 = vunpack.c.l.b16 %v820
        %v3547 = vunpack.c.h.b16 %v820
        %v3548 = vunpack.c.l.b16 %v821
        %v3549 = vunpack.c.h.b16 %v821
        %v3550 = vunpack.c.l.b16 %v822
        %v3551 = vunpack.c.h.b16 %v822
        %v3552 = vunpack.c.l.b16 %v823
        %v3553 = vunpack.c.h.b16 %v823
        %v3554 = vunpack.c.l.b16 %v824
        %v3555 = vunpack.c.h.b16 %v824
        %v3556 = vunpack.c.l.b16 %v825
        %v3557 = vunpack.c.h.b16 %v825
        %v3558 = vunpack.c.l.b16 %v826
        %v3559 = vunpack.c.h.b16 %v826
        %v3560 = vunpack.c.l.b16 %v827
        %v3561 = vunpack.c.h.b16 %v827
        %v3562 = vunpack.c.l.b16 %v828
        %v3563 = vunpack.c.h.b16 %v828
        %v3564 = vunpack.c.l.b16 %v829
        %v3565 = vunpack.c.h.b16 %v829
        %v3566 = vunpack.c.l.b16 %v830
        %v3567 = vunpack.c.h.b16 %v830
        %v3568 = vunpack.c.l.b16 %v831
        %v3569 = vunpack.c.h.b16 %v831
        %v3570 = vunpack.c.l.b16 %v832
        %v3571 = vunpack.c.h.b16 %v832
        %v3572 = vunpack.c.l.b16 %v833
        %v3573 = vunpack.c.h.b16 %v833
        %v3574 = vunpack.c.l.b16 %v834
        %v3575 = vunpack.c.h.b16 %v834
        %v3576 = vunpack.c.l.b16 %v835
        %v3577 = vunpack.c.h.b16 %v835
        %v3578 = vunpack.c.l.b16 %v836
        %v3579 = vunpack.c.h.b16 %v836
        %v3580 = vunpack.c.l.b16 %v837
        %v3581 = vunpack.c.h.b16 %v837
        %v3582 = vunpack.c.l.b16 %v838
        %v3583 = vunpack.c.h.b16 %v838
        %v3584 = vunpack.c.l.b16 %v839
        %v3585 = vunpack.c.h.b16 %v839
        %v3586 = vunpack.c.l.b16 %v840
        %v3587 = vunpack.c.h.b16 %v840
        %v3588 = vunpack.c.l.b16 %v841
        %v3589 = vunpack.c.h.b16 %v841
        %v3590 = vunpack.c.l.b16 %v842
        %v3591 = vunpack.c.h.b16 %v842
        %v3592 = vunpack.c.l.b16 %v843
        %v3593 = vunpack.c.h.b16 %v843
        %v3594 = vunpack.c.l.b16 %v844
        %v3595 = vunpack.c.h.b16 %v844
        %v3596 = vunpack.c.l.b16 %v845
        %v3597 = vunpack.c.h.b16 %v845
        %v3598 = vunpack.c.l.b16 %v846
        %v3599 = vunpack.c.h.b16 %v846
        %v3600 = vunpack.c.l.b16 %v847
        %v3601 = vunpack.c.h.b16 %v847
        %v3602 = vunpack.c.l.b16 %v848
        %v3603 = vunpack.c.h.b16 %v848
        %v3604 = vunpack.c.l.b16 %v849
        %v3605 = vunpack.c.h.b16 %v849
        %v3606 = vunpack.c.l.b16 %v850
        %v3607 = vunpack.c.h.b16 %v850
        %v3608 = vunpack.c.l.b16 %v851
        %v3609 = vunpack.c.h.b16 %v851
        %v3610 = vunpack.c.l.b16 %v852
        %v3611 = vunpack.c.h.b16 %v852
        %v3612 = vunpack.c.l.b16 %v853
        %v3613 = vunpack.c.h.b16 %v853
        %v3614 = vunpack.c.l.b16 %v854
        %v3615 = vunpack.c.h.b16 %v854
        %v3616 = vunpack.c.l.b16 %v855
        %v3617 = vunpack.c.h.b16 %v855
        %v3618 = vunpack.c.l.b16 %v856
        %v3619 = vunpack.c.h.b16 %v856
        %v3620 = vunpack.c.l.b16 %v857
        %v3621 = vunpack.c.h.b16 %v857
        %v3622 = vunpack.c.l.b16 %v858
        %v3623 = vunpack.c.h.b16 %v858
        %v3624 = vunpack.c.l.b16 %v859
        %v3625 = vunpack.c.h.b16 %v859
        %v3626 = vunpack.c.l.b16 %v860
        %v3627 = vunpack.c.h.b16 %v860
        %v3628 = vunpack.c.l.b16 %v861
        %v3629 = vunpack.c.h.b16 %v861
        %v3630 = vunpack.c.l.b16 %v862
        %v3631 = vunpack.c.h.b16 %v862
        %v3632 = vunpack.c.l.b16 %v863
        %v3633 = vunpack.c.h.b16 %v863
        %v3634 = vunpack.c.l.b16 %v864
        %v3635 = vunpack.c.h.b16 %v864
        %v3636 = vunpack.c.l.b16 %v865
        %v3637 = vunpack.c.h.b16 %v865
        %v3638 = vunpack.c.l.b16 %v866
        %v3639 = vunpack.c.h.b16 %v866
        %v3640 = vunpack.c.l.b16 %v867
        %v3641 = vunpack.c.h.b16 %v867
        %v3642 = vunpack.c.l.b16 %v868
        %v3643 = vunpack.c.h.b16 %v868
        %v3644 = vunpack.c.l.b16 %v869
        %v3645 = vunpack.c.h.b16 %v869
        %v3646 = vunpack.c.l.b16 %v870
        %v3647 = vunpack.c.h.b16 %v870
        %v3648 = vunpack.c.l.b16 %v871
        %v3649 = vunpack.c.h.b16 %v871
        %v3650 = vunpack.c.l.b16 %v872
        %v3651 = vunpack.c.h.b16 %v872
        %v3652 = vunpack.c.l.b16 %v873
        %v3653 = vunpack.c.h.b16 %v873
        %v3654 = vunpack.c.l.b16 %v874
        %v3655 = vunpack.c.h.b16 %v874
        %v3656 = vunpack.c.l.b16 %v875
        %v3657 = vunpack.c.h.b16 %v875
        %v3658 = vunpack.c.l.b16 %v876
        %v3659 = vunpack.c.h.b16 %v876
        %v3660 = vunpack.c.l.b16 %v877
        %v3661 = vunpack.c.h.b16 %v877
        %v3662 = vunpack.c.l.b16 %v878
        %v3663 = vunpack.c.h.b16 %v878
        %v3664 = vunpack.c.l.b16 %v879
        %v3665 = vunpack.c.h.b16 %v879
        %v3666 = vunpack.c.l.b16 %v880
        %v3667 = vunpack.c.h.b16 %v880
        %v3668 = vunpack.c.l.b16 %v881
        %v3669 = vunpack.c.h.b16 %v881
        %v3670 = vunpack.c.l.b16 %v882
        %v3671 = vunpack.c.h.b16 %v882
        %v3672 = vunpack.c.l.b16 %v883
        %v3673 = vunpack.c.h.b16 %v883
        %v3674 = vunpack.c.l.b16 %v884
        %v3675 = vunpack.c.h.b16 %v884
        %v3676 = vunpack.c.l.b16 %v885
        %v3677 = vunpack.c.h.b16 %v885
        %v3678 = vunpack.c.l.b16 %v886
        %v3679 = vunpack.c.h.b16 %v886
        %v3680 = vunpack.c.l.b16 %v887
        %v3681 = vunpack.c.h.b16 %v887
        %v3682 = vunpack.c.l.b16 %v888
        %v3683 = vunpack.c.h.b16 %v888
        %v3684 = vunpack.c.l.b16 %v889
        %v3685 = vunpack.c.h.b16 %v889
        %v3686 = vunpack.c.l.b16 %v890
        %v3687 = vunpack.c.h.b16 %v890
        %v3688 = vunpack.c.l.b16 %v891
        %v3689 = vunpack.c.h.b16 %v891
        %v3690 = vunpack.c.l.b16 %v892
        %v3691 = vunpack.c.h.b16 %v892
        %v3692 = vunpack.c.l.b16 %v893
        %v3693 = vunpack.c.h.b16 %v893
        %v3694 = vunpack.c.l.b16 %v894
        %v3695 = vunpack.c.h.b16 %v894
        %v3696 = vunpack.c.l.b16 %v895
        %v3697 = vunpack.c.h.b16 %v895
        %v3698 = vunpack.c.l.b16 %v896
        %v3699 = vunpack.c.h.b16 %v896
        %v3700 = vunpack.c.l.b16 %v897
        %v3701 = vunpack.c.h.b16 %v897
        %v3702 = vunpack.c.l.b16 %v898
        %v3703 = vunpack.c.h.b16 %v898
        %v3704 = vunpack.c.l.b16 %v899
        %v3705 = vunpack.c.h.b16 %v899
        %v3706 = vunpack.c.l.b16 %v900
        %v3707 = vunpack.c.h.b16 %v900
        %v3708 = vunpack.c.l.b16 %v901
        %v3709 = vunpack.c.h.b16 %v901
        %v3710 = vunpack.c.l.b16 %v902
        %v3711 = vunpack.c.h.b16 %v902
        %v3712 = vunpack.c.l.b16 %v903
        %v3713 = vunpack.c.h.b16 %v903
        %v3714 = vunpack.c.l.b16 %v904
        %v3715 = vunpack.c.h.b16 %v904
        %v3716 = vunpack.c.l.b16 %v905
        %v3717 = vunpack.c.h.b16 %v905
        %v3718 = vunpack.c.l.b16 %v906
        %v3719 = vunpack.c.h.b16 %v906
        %v3720 = vunpack.c.l.b16 %v907
        %v3721 = vunpack.c.h.b16 %v907
        %v3722 = vunpack.c.l.b16 %v908
        %v3723 = vunpack.c.h.b16 %v908
        %v3724 = vunpack.c.l.b16 %v909
        %v3725 = vunpack.c.h.b16 %v909
        %v3726 = vunpack.c.l.b16 %v910
        %v3727 = vunpack.c.h.b16 %v910
        %v3728 = vunpack.c.l.b16 %v911
        %v3729 = vunpack.c.h.b16 %v911
        %v3730 = vunpack.c.l.b16 %v912
        %v3731 = vunpack.c.h.b16 %v912
        %v3732 = vunpack.c.l.b16 %v913
        %v3733 = vunpack.c.h.b16 %v913
        %v3734 = vunpack.c.l.b16 %v914
        %v3735 = vunpack.c.h.b16 %v914
        %v3736 = vunpack.c.l.b16 %v915
        %v3737 = vunpack.c.h.b16 %v915
        %v3738 = vunpack.c.l.b16 %v916
        %v3739 = vunpack.c.h.b16 %v916
        %v3740 = vunpack.c.l.b16 %v917
        %v3741 = vunpack.c.h.b16 %v917
        %v3742 = vunpack.c.l.b16 %v918
        %v3743 = vunpack.c.h.b16 %v918
        %v3744 = vunpack.c.l.b16 %v919
        %v3745 = vunpack.c.h.b16 %v919
        %v3746 = vunpack.c.l.b16 %v920
        %v3747 = vunpack.c.h.b16 %v920
        %v3748 = vunpack.c.l.b16 %v921
        %v3749 = vunpack.c.h.b16 %v921
        %v3750 = vunpack.c.l.b16 %v922
        %v3751 = vunpack.c.h.b16 %v922
        %v3752 = vunpack.c.l.b16 %v923
        %v3753 = vunpack.c.h.b16 %v923
        %v3754 = vunpack.c.l.b16 %v924
        %v3755 = vunpack.c.h.b16 %v924
        %v3756 = vunpack.c.l.b16 %v925
        %v3757 = vunpack.c.h.b16 %v925
        %v3758 = vunpack.c.l.b16 %v926
        %v3759 = vunpack.c.h.b16 %v926
        %v3760 = vunpack.c.l.b16 %v927
        %v3761 = vunpack.c.h.b16 %v927
        %v3762 = vunpack.c.l.b16 %v928
        %v3763 = vunpack.c.h.b16 %v928
        %v3764 = vunpack.c.l.b16 %v929
        %v3765 = vunpack.c.h.b16 %v929
        %v3766 = vunpack.c.l.b16 %v930
        %v3767 = vunpack.c.h.b16 %v930
        %v3768 = vunpack.c.l.b16 %v931
        %v3769 = vunpack.c.h.b16 %v931
        %v3770 = vunpack.c.l.b16 %v932
        %v3771 = vunpack.c.h.b16 %v932
        %v3772 = vunpack.c.l.b16 %v933
        %v3773 = vunpack.c.h.b16 %v933
        %v3774 = vunpack.c.l.b16 %v934
        %v3775 = vunpack.c.h.b16 %v934
        %v3776 = vunpack.c.l.b16 %v935
        %v3777 = vunpack.c.h.b16 %v935
        %v3778 = vunpack.c.l.b16 %v936
        %v3779 = vunpack.c.h.b16 %v936
        %v3780 = vunpack.c.l.b16 %v937
        %v3781 = vunpack.c.h.b16 %v937
        %v3782 = vunpack.c.l.b16 %v938
        %v3783 = vunpack.c.h.b16 %v938
        %v3784 = vunpack.c.l.b16 %v939
        %v3785 = vunpack.c.h.b16 %v939
        %v3786 = vunpack.c.l.b16 %v940
        %v3787 = vunpack.c.h.b16 %v940
        %v3788 = vunpack.c.l.b16 %v941
        %v3789 = vunpack.c.h.b16 %v941
        %v3790 = vunpack.c.l.b16 %v942
        %v3791 = vunpack.c.h.b16 %v942
        %v3792 = vunpack.c.l.b16 %v943
        %v3793 = vunpack.c.h.b16 %v943
        %v3794 = vunpack.c.l.b16 %v944
        %v3795 = vunpack.c.h.b16 %v944
        %v3796 = vunpack.c.l.b16 %v945
        %v3797 = vunpack.c.h.b16 %v945
        %v3798 = vunpack.c.l.b16 %v946
        %v3799 = vunpack.c.h.b16 %v946
        %v3800 = vunpack.c.l.b16 %v947
        %v3801 = vunpack.c.h.b16 %v947
        %v3802 = vunpack.c.l.b16 %v948
        %v3803 = vunpack.c.h.b16 %v948
        %v3804 = vunpack.c.l.b16 %v949
        %v3805 = vunpack.c.h.b16 %v949
        %v3806 = vunpack.c.l.b16 %v950
        %v3807 = vunpack.c.h.b16 %v950
        %v3808 = vunpack.c.l.b16 %v951
        %v3809 = vunpack.c.h.b16 %v951
        %v3810 = vunpack.c.l.b16 %v952
        %v3811 = vunpack.c.h.b16 %v952
        %v3812 = vunpack.c.l.b16 %v953
        %v3813 = vunpack.c.h.b16 %v953
        %v3814 = vunpack.c.l.b16 %v954
        %v3815 = vunpack.c.h.b16 %v954
        %v3816 = vunpack.c.l.b16 %v955
        %v3817 = vunpack.c.h.b16 %v955
        %v3818 = vunpack.c.l.b16 %v956
        %v3819 = vunpack.c.h.b16 %v956
        %v3820 = vunpack.c.l.b16 %v957
        %v3821 = vunpack.c.h.b16 %v957
        %v3822 = vunpack.c.l.b16 %v958
        %v3823 = vunpack.c.h.b16 %v958
        %v3824 = vunpack.c.l.b16 %v959
        %v3825 = vunpack.c.h.b16 %v959
        %v3826 = vunpack.c.l.b16 %v960
        %v3827 = vunpack.c.h.b16 %v960
        %v3828 = vunpack.c.l.b16 %v961
        %v3829 = vunpack.c.h.b16 %v961
        %v3830 = vunpack.c.l.b16 %v962
        %v3831 = vunpack.c.h.b16 %v962
        %v3832 = vunpack.c.l.b16 %v963
        %v3833 = vunpack.c.h.b16 %v963
        %v3834 = vunpack.c.l.b16 %v964
        %v3835 = vunpack.c.h.b16 %v964
        %v3836 = vunpack.c.l.b16 %v965
        %v3837 = vunpack.c.h.b16 %v965
        %v3838 = vunpack.c.l.b16 %v966
        %v3839 = vunpack.c.h.b16 %v966
        %v3840 = vunpack.c.l.b16 %v967
        %v3841 = vunpack.c.h.b16 %v967
        %v3842 = vunpack.c.l.b16 %v968
        %v3843 = vunpack.c.h.b16 %v968
        %v3844 = vunpack.c.l.b16 %v969
        %v3845 = vunpack.c.h.b16 %v969
        %v3846 = vunpack.c.l.b16 %v970
        %v3847 = vunpack.c.h.b16 %v970
        %v3848 = vunpack.c.l.b16 %v971
        %v3849 = vunpack.c.h.b16 %v971
        %v3850 = vunpack.c.l.b16 %v972
        %v3851 = vunpack.c.h.b16 %v972
        %v3852 = vunpack.c.l.b16 %v973
        %v3853 = vunpack.c.h.b16 %v973
        %v3854 = vunpack.c.l.b16 %v974
        %v3855 = vunpack.c.h.b16 %v974
        %v3856 = vunpack.c.l.b16 %v975
        %v3857 = vunpack.c.h.b16 %v975
        %v3858 = vunpack.c.l.b16 %v976
        %v3859 = vunpack.c.h.b16 %v976
        %v3860 = vunpack.c.l.b16 %v977
        %v3861 = vunpack.c.h.b16 %v977
        %v3862 = vunpack.c.l.b16 %v978
        %v3863 = vunpack.c.h.b16 %v978
        %v3864 = vunpack.c.l.b16 %v979
        %v3865 = vunpack.c.h.b16 %v979
        %v3866 = vunpack.c.l.b16 %v980
        %v3867 = vunpack.c.h.b16 %v980
        %v3868 = vunpack.c.l.b16 %v981
        %v3869 = vunpack.c.h.b16 %v981
        %v3870 = vunpack.c.l.b16 %v982
        %v3871 = vunpack.c.h.b16 %v982
        %v3872 = vunpack.c.l.b16 %v983
        %v3873 = vunpack.c.h.b16 %v983
        %v3874 = vunpack.c.l.b16 %v984
        %v3875 = vunpack.c.h.b16 %v984
        %v3876 = vunpack.c.l.b16 %v985
        %v3877 = vunpack.c.h.b16 %v985
        %v3878 = vunpack.c.l.b16 %v986
        %v3879 = vunpack.c.h.b16 %v986
        %v3880 = vunpack.c.l.b16 %v987
        %v3881 = vunpack.c.h.b16 %v987
        %v3882 = vunpack.c.l.b16 %v988
        %v3883 = vunpack.c.h.b16 %v988
        %v3884 = vunpack.c.l.b16 %v989
        %v3885 = vunpack.c.h.b16 %v989
        %v3886 = vunpack.c.l.b16 %v990
        %v3887 = vunpack.c.h.b16 %v990
        %v3888 = vunpack.c.l.b16 %v991
        %v3889 = vunpack.c.h.b16 %v991
        %v3890 = vunpack.c.l.b16 %v992
        %v3891 = vunpack.c.h.b16 %v992
        %v3892 = vunpack.c.l.b16 %v993
        %v3893 = vunpack.c.h.b16 %v993
        %v3894 = vunpack.c.l.b16 %v994
        %v3895 = vunpack.c.h.b16 %v994
        %v3896 = vunpack.c.l.b16 %v995
        %v3897 = vunpack.c.h.b16 %v995
        %v3898 = vunpack.c.l.b16 %v996
        %v3899 = vunpack.c.h.b16 %v996
        %v3900 = vunpack.c.l.b16 %v997
        %v3901 = vunpack.c.h.b16 %v997
        %v3902 = vunpack.c.l.b16 %v998
        %v3903 = vunpack.c.h.b16 %v998
        %v3904 = vunpack.c.l.b16 %v999
        %v3905 = vunpack.c.h.b16 %v999
        %v3906 = vunpack.c.l.b16 %v1000
        %v3907 = vunpack.c.h.b16 %v1000
        %v3908 = vunpack.c.l.b16 %v1001
        %v3909 = vunpack.c.h.b16 %v1001
        %v3910 = vunpack.c.l.b16 %v1002
        %v3911 = vunpack.c.h.b16 %v1002
        %v3912 = vunpack.c.l.b16 %v1003
        %v3913 = vunpack.c.h.b16 %v1003
        %v3914 = vunpack.c.l.b16 %v1004
        %v3915 = vunpack.c.h.b16 %v1004
        %v3916 = vunpack.c.l.b16 %v1005
        %v3917 = vunpack.c.h.b16 %v1005
        %v3918 = vunpack.c.l.b16 %v1006
        %v3919 = vunpack.c.h.b16 %v1006
        %v3920 = vunpack.c.l.b16 %v1007
        %v3921 = vunpack.c.h.b16 %v1007
        %v3922 = vunpack.c.l.b16 %v1008
        %v3923 = vunpack.c.h.b16 %v1008
        %v3924 = vunpack.c.l.b16 %v1009
        %v3925 = vunpack.c.h.b16 %v1009
        %v3926 = vunpack.c.l.b16 %v1010
        %v3927 = vunpack.c.h.b16 %v1010
        %v3928 = vunpack.c.l.b16 %v1011
        %v3929 = vunpack.c.h.b16 %v1011
        %v3930 = vunpack.c.l.b16 %v1012
        %v3931 = vunpack.c.h.b16 %v1012
        %v3932 = vunpack.c.l.b16 %v1013
        %v3933 = vunpack.c.h.b16 %v1013
        %v3934 = vunpack.c.l.b16 %v1014
        %v3935 = vunpack.c.h.b16 %v1014
        %v3936 = vunpack.c.l.b16 %v1015
        %v3937 = vunpack.c.h.b16 %v1015
        %v3938 = vunpack.c.l.b16 %v1016
        %v3939 = vunpack.c.h.b16 %v1016
        %v3940 = vunpack.c.l.b16 %v1017
        %v3941 = vunpack.c.h.b16 %v1017
        %v3942 = vunpack.c.l.b16 %v1018
        %v3943 = vunpack.c.h.b16 %v1018
        %v3944 = vunpack.c.l.b16 %v1019
        %v3945 = vunpack.c.h.b16 %v1019
        %v3946 = vunpack.c.l.b16 %v1020
        %v3947 = vunpack.c.h.b16 %v1020
        %v3948 = vunpack.c.l.b16 %v1021
        %v3949 = vunpack.c.h.b16 %v1021
        %v3950 = vunpack.c.l.b16 %v1022
        %v3951 = vunpack.c.h.b16 %v1022
        %v3952 = vunpack.c.l.b16 %v1023
        %v3953 = vunpack.c.h.b16 %v1023
        %v3954 = vunpack.c.l.b16 %v1024
        %v3955 = vunpack.c.h.b16 %v1024
        %v3956 = vunpack.c.l.b16 %v1025
        %v3957 = vunpack.c.h.b16 %v1025
        %v3958 = vunpack.c.l.b16 %v1026
        %v3959 = vunpack.c.h.b16 %v1026
        %v3960 = vunpack.c.l.b16 %v1027
        %v3961 = vunpack.c.h.b16 %v1027
        %v3962 = vunpack.c.l.b16 %v1028
        %v3963 = vunpack.c.h.b16 %v1028
        %v3964 = vunpack.c.l.b16 %v1029
        %v3965 = vunpack.c.h.b16 %v1029
        %v3966 = vunpack.c.l.b16 %v1030
        %v3967 = vunpack.c.h.b16 %v1030
        %v3968 = vunpack.c.l.b16 %v1031
        %v3969 = vunpack.c.h.b16 %v1031
        %v3970 = vunpack.c.l.b16 %v1032
        %v3971 = vunpack.c.h.b16 %v1032
        %v3972 = vunpack.c.l.b16 %v1033
        %v3973 = vunpack.c.h.b16 %v1033
        %v3974 = vunpack.c.l.b16 %v1034
        %v3975 = vunpack.c.h.b16 %v1034
        %v3976 = vunpack.c.l.b16 %v1035
        %v3977 = vunpack.c.h.b16 %v1035
        %v3978 = vunpack.c.l.b16 %v1036
        %v3979 = vunpack.c.h.b16 %v1036
        %v3980 = vunpack.c.l.b16 %v1037
        %v3981 = vunpack.c.h.b16 %v1037
        %v3982 = vunpack.c.l.b16 %v1038
        %v3983 = vunpack.c.h.b16 %v1038
        %v3984 = vunpack.c.l.b16 %v1039
        %v3985 = vunpack.c.h.b16 %v1039
        %v3986 = vunpack.c.l.b16 %v1040
        %v3987 = vunpack.c.h.b16 %v1040
        %v3988 = vunpack.c.l.b16 %v1041
        %v3989 = vunpack.c.h.b16 %v1041
        %v3990 = vunpack.c.l.b16 %v1042
        %v3991 = vunpack.c.h.b16 %v1042
        %v3992 = vunpack.c.l.b16 %v1043
        %v3993 = vunpack.c.h.b16 %v1043
        %v3994 = vunpack.c.l.b16 %v1044
        %v3995 = vunpack.c.h.b16 %v1044
        %v3996 = vpack.c.b16 %v3426, %v3420
        %v3997 = vpack.c.b16 %v3427, %v3421
        %v3998 = vpack.c.b16 %v3428, %v3422
        %v3999 = vpack.c.b16 %v3429, %v3423
        %v4000 = vpack.c.b16 %v3430, %v3424
        %v4001 = vpack.c.b16 %v3431, %v3425
        %v4002 = vpack.c.b16 %v3438, %v3432
        %v4003 = vpack.c.b16 %v3439, %v3433
        %v4004 = vpack.c.b16 %v3440, %v3434
        %v4005 = vpack.c.b16 %v3441, %v3435
        %v4006 = vpack.c.b16 %v3442, %v3436
        %v4007 = vpack.c.b16 %v3443, %v3437
        %v4008 = vpack.c.b16 %v3450, %v3444
        %v4009 = vpack.c.b16 %v3451, %v3445
        %v4010 = vpack.c.b16 %v3452, %v3446
        %v4011 = vpack.c.b16 %v3453, %v3447
        %v4012 = vpack.c.b16 %v3454, %v3448
        %v4013 = vpack.c.b16 %v3455, %v3449
        %v4014 = vpack.c.b16 %v3462, %v3456
        %v4015 = vpack.c.b16 %v3463, %v3457
        %v4016 = vpack.c.b16 %v3464, %v3458
        %v4017 = vpack.c.b16 %v3465, %v3459
        %v4018 = vpack.c.b16 %v3466, %v3460
        %v4019 = vpack.c.b16 %v3467, %v3461
        %v4020 = vpack.c.b16 %v3474, %v3468
        %v4021 = vpack.c.b16 %v3475, %v3469
        %v4022 = vpack.c.b16 %v3476, %v3470
        %v4023 = vpack.c.b16 %v3477, %v3471
        %v4024 = vpack.c.b16 %v3478, %v3472
        %v4025 = vpack.c.b16 %v3479, %v3473
        %v4026 = vpack.c.b16 %v3486, %v3480
        %v4027 = vpack.c.b16 %v3487, %v3481
        %v4028 = vpack.c.b16 %v3488, %v3482
        %v4029 = vpack.c.b16 %v3489, %v3483
        %v4030 = vpack.c.b16 %v3490, %v3484
        %v4031 = vpack.c.b16 %v3491, %v3485
        %v4032 = vpack.c.b16 %v3498, %v3492
        %v4033 = vpack.c.b16 %v3499, %v3493
        %v4034 = vpack.c.b16 %v3500, %v3494
        %v4035 = vpack.c.b16 %v3501, %v3495
        %v4036 = vpack.c.b16 %v3502, %v3496
        %v4037 = vpack.c.b16 %v3503, %v3497
        %v4038 = vpack.c.b16 %v3510, %v3504
        %v4039 = vpack.c.b16 %v3511, %v3505
        %v4040 = vpack.c.b16 %v3512, %v3506
        %v4041 = vpack.c.b16 %v3513, %v3507
        %v4042 = vpack.c.b16 %v3514, %v3508
        %v4043 = vpack.c.b16 %v3515, %v3509
        %v4044 = vpack.c.b16 %v3522, %v3516
        %v4045 = vpack.c.b16 %v3523, %v3517
        %v4046 = vpack.c.b16 %v3524, %v3518
        %v4047 = vpack.c.b16 %v3525, %v3519
        %v4048 = vpack.c.b16 %v3526, %v3520
        %v4049 = vpack.c.b16 %v3527, %v3521
        %v4050 = vpack.c.b16 %v3534, %v3528
        %v4051 = vpack.c.b16 %v3535, %v3529
        %v4052 = vpack.c.b16 %v3536, %v3530
        %v4053 = vpack.c.b16 %v3537, %v3531
        %v4054 = vpack.c.b16 %v3538, %v3532
        %v4055 = vpack.c.b16 %v3539, %v3533
        %v4056 = vpack.c.b16 %v3546, %v3540
        %v4057 = vpack.c.b16 %v3547, %v3541
        %v4058 = vpack.c.b16 %v3548, %v3542
        %v4059 = vpack.c.b16 %v3549, %v3543
        %v4060 = vpack.c.b16 %v3550, %v3544
        %v4061 = vpack.c.b16 %v3551, %v3545
        %v4062 = vpack.c.b16 %v3558, %v3552
        %v4063 = vpack.c.b16 %v3559, %v3553
        %v4064 = vpack.c.b16 %v3560, %v3554
        %v4065 = vpack.c.b16 %v3561, %v3555
        %v4066 = vpack.c.b16 %v3562, %v3556
        %v4067 = vpack.c.b16 %v3563, %v3557
        %v4068 = vpack.c.b16 %v3570, %v3564
        %v4069 = vpack.c.b16 %v3571, %v3565
        %v4070 = vpack.c.b16 %v3572, %v3566
        %v4071 = vpack.c.b16 %v3573, %v3567
        %v4072 = vpack.c.b16 %v3574, %v3568
        %v4073 = vpack.c.b16 %v3575, %v3569
        %v4074 = vpack.c.b16 %v3582, %v3576
        %v4075 = vpack.c.b16 %v3583, %v3577
        %v4076 = vpack.c.b16 %v3584, %v3578
        %v4077 = vpack.c.b16 %v3585, %v3579
        %v4078 = vpack.c.b16 %v3586, %v3580
        %v4079 = vpack.c.b16 %v3587, %v3581
        %v4080 = vpack.c.b16 %v3594, %v3588
        %v4081 = vpack.c.b16 %v3595, %v3589
        %v4082 = vpack.c.b16 %v3596, %v3590
        %v4083 = vpack.c.b16 %v3597, %v3591
        %v4084 = vpack.c.b16 %v3598, %v3592
        %v4085 = vpack.c.b16 %v3599, %v3593
        %v4086 = vpack.c.b16 %v3606, %v3600
        %v4087 = vpack.c.b16 %v3607, %v3601
        %v4088 = vpack.c.b16 %v3608, %v3602
        %v4089 = vpack.c.b16 %v3609, %v3603
        %v4090 = vpack.c.b16 %v3610, %v3604
        %v4091 = vpack.c.b16 %v3611, %v3605
        %v4092 = vpack.c.b16 %v3618, %v3612
        %v4093 = vpack.c.b16 %v3619, %v3613
        %v4094 = vpack.c.b16 %v3620, %v3614
        %v4095 = vpack.c.b16 %v3621, %v3615
        %v4096 = vpack.c.b16 %v3622, %v3616
        %v4097 = vpack.c.b16 %v3623, %v3617
        %v4098 = vpack.c.b16 %v3630, %v3624
        %v4099 = vpack.c.b16 %v3631, %v3625
        %v4100 = vpack.c.b16 %v3632, %v3626
        %v4101 = vpack.c.b16 %v3633, %v3627
        %v4102 = vpack.c.b16 %v3634, %v3628
        %v4103 = vpack.c.b16 %v3635, %v3629
        %v4104 = vpack.c.b16 %v3642, %v3636
        %v4105 = vpack.c.b16 %v3643, %v3637
        %v4106 = vpack.c.b16 %v3644, %v3638
        %v4107 = vpack.c.b16 %v3645, %v3639
        %v4108 = vpack.c.b16 %v3646, %v3640
        %v4109 = vpack.c.b16 %v3647, %v3641
        %v4110 = vpack.c.b16 %v3654, %v3648
        %v4111 = vpack.c.b16 %v3655, %v3649
        %v4112 = vpack.c.b16 %v3656, %v3650
        %v4113 = vpack.c.b16 %v3657, %v3651
        %v4114 = vpack.c.b16 %v3658, %v3652
        %v4115 = vpack.c.b16 %v3659, %v3653
        %v4116 = vpack.c.b16 %v3666, %v3660
        %v4117 = vpack.c.b16 %v3667, %v3661
        %v4118 = vpack.c.b16 %v3668, %v3662
        %v4119 = vpack.c.b16 %v3669, %v3663
        %v4120 = vpack.c.b16 %v3670, %v3664
        %v4121 = vpack.c.b16 %v3671, %v3665
        %v4122 = vpack.c.b16 %v3678, %v3672
        %v4123 = vpack.c.b16 %v3679, %v3673
        %v4124 = vpack.c.b16 %v3680, %v3674
        %v4125 = vpack.c.b16 %v3681, %v3675
        %v4126 = vpack.c.b16 %v3682, %v3676
        %v4127 = vpack.c.b16 %v3683, %v3677
        %v4128 = vpack.c.b16 %v3690, %v3684
        %v4129 = vpack.c.b16 %v3691, %v3685
        %v4130 = vpack.c.b16 %v3692, %v3686
        %v4131 = vpack.c.b16 %v3693, %v3687
        %v4132 = vpack.c.b16 %v3694, %v3688
        %v4133 = vpack.c.b16 %v3695, %v3689
        %v4134 = vpack.c.b16 %v3702, %v3696
        %v4135 = vpack.c.b16 %v3703, %v3697
        %v4136 = vpack.c.b16 %v3704, %v3698
        %v4137 = vpack.c.b16 %v3705, %v3699
        %v4138 = vpack.c.b16 %v3706, %v3700
        %v4139 = vpack.c.b16 %v3707, %v3701
        %v4140 = vpack.c.b16 %v3714, %v3708
        %v4141 = vpack.c.b16 %v3715, %v3709
        %v4142 = vpack.c.b16 %v3716, %v3710
        %v4143 = vpack.c.b16 %v3717, %v3711
        %v4144 = vpack.c.b16 %v3718, %v3712
        %v4145 = vpack.c.b16 %v3719, %v3713
        %v4146 = vpack.c.b16 %v3726, %v3720
        %v4147 = vpack.c.b16 %v3727, %v3721
        %v4148 = vpack.c.b16 %v3728, %v3722
        %v4149 = vpack.c.b16 %v3729, %v3723
        %v4150 = vpack.c.b16 %v3730, %v3724
        %v4151 = vpack.c.b16 %v3731, %v3725
        %v4152 = vpack.c.b16 %v3738, %v3732
        %v4153 = vpack.c.b16 %v3739, %v3733
        %v4154 = vpack.c.b16 %v3740, %v3734
        %v4155 = vpack.c.b16 %v3741, %v3735
        %v4156 = vpack.c.b16 %v3742, %v3736
        %v4157 = vpack.c.b16 %v3743, %v3737
        %v4158 = vpack.c.b16 %v3750, %v3744
        %v4159 = vpack.c.b16 %v3751, %v3745
        %v4160 = vpack.c.b16 %v3752, %v3746
        %v4161 = vpack.c.b16 %v3753, %v3747
        %v4162 = vpack.c.b16 %v3754, %v3748
        %v4163 = vpack.c.b16 %v3755, %v3749
        %v4164 = vpack.c.b16 %v3762, %v3756
        %v4165 = vpack.c.b16 %v3763, %v3757
        %v4166 = vpack.c.b16 %v3764, %v3758
        %v4167 = vpack.c.b16 %v3765, %v3759
        %v4168 = vpack.c.b16 %v3766, %v3760
        %v4169 = vpack.c.b16 %v3767, %v3761
        %v4170 = vpack.c.b16 %v3774, %v3768
        %v4171 = vpack.c.b16 %v3775, %v3769
        %v4172 = vpack.c.b16 %v3776, %v3770
        %v4173 = vpack.c.b16 %v3777, %v3771
        %v4174 = vpack.c.b16 %v3778, %v3772
        %v4175 = vpack.c.b16 %v3779, %v3773
        %v4176 = vpack.c.b16 %v3786, %v3780
        %v4177 = vpack.c.b16 %v3787, %v3781
        %v4178 = vpack.c.b16 %v3788, %v3782
        %v4179 = vpack.c.b16 %v3789, %v3783
        %v4180 = vpack.c.b16 %v3790, %v3784
        %v4181 = vpack.c.b16 %v3791, %v3785
        %v4182 = vpack.c.b16 %v3798, %v3792
        %v4183 = vpack.c.b16 %v3799, %v3793
        %v4184 = vpack.c.b16 %v3800, %v3794
        %v4185 = vpack.c.b16 %v3801, %v3795
        %v4186 = vpack.c.b16 %v3802, %v3796
        %v4187 = vpack.c.b16 %v3803, %v3797
        %v4188 = vpack.c.b16 %v3810, %v3804
        %v4189 = vpack.c.b16 %v3811, %v3805
        %v4190 = vpack.c.b16 %v3812, %v3806
        %v4191 = vpack.c.b16 %v3813, %v3807
        %v4192 = vpack.c.b16 %v3814, %v3808
        %v4193 = vpack.c.b16 %v3815, %v3809
        %v4194 = vpack.c.b16 %v3822, %v3816
        %v4195 = vpack.c.b16 %v3823, %v3817
        %v4196 = vpack.c.b16 %v3824, %v3818
        %v4197 = vpack.c.b16 %v3825, %v3819
        %v4198 = vpack.c.b16 %v3826, %v3820
        %v4199 = vpack.c.b16 %v3827, %v3821
        %v4200 = vpack.c.b16 %v3834, %v3828
        %v4201 = vpack.c.b16 %v3835, %v3829
        %v4202 = vpack.c.b16 %v3836, %v3830
        %v4203 = vpack.c.b16 %v3837, %v3831
        %v4204 = vpack.c.b16 %v3838, %v3832
        %v4205 = vpack.c.b16 %v3839, %v3833
        %v4206 = vpack.c.b16 %v3846, %v3840
        %v4207 = vpack.c.b16 %v3847, %v3841
        %v4208 = vpack.c.b16 %v3848, %v3842
        %v4209 = vpack.c.b16 %v3849, %v3843
        %v4210 = vpack.c.b16 %v3850, %v3844
        %v4211 = vpack.c.b16 %v3851, %v3845
        %v4212 = vpack.c.b16 %v3858, %v3852
        %v4213 = vpack.c.b16 %v3859, %v3853
        %v4214 = vpack.c.b16 %v3860, %v3854
        %v4215 = vpack.c.b16 %v3861, %v3855
        %v4216 = vpack.c.b16 %v3862, %v3856
        %v4217 = vpack.c.b16 %v3863, %v3857
        %v4218 = vpack.c.b16 %v3870, %v3864
        %v4219 = vpack.c.b16 %v3871, %v3865
        %v4220 = vpack.c.b16 %v3872, %v3866
        %v4221 = vpack.c.b16 %v3873, %v3867
        %v4222 = vpack.c.b16 %v3874, %v3868
        %v4223 = vpack.c.b16 %v3875, %v3869
        %v4224 = vpack.c.b16 %v3882, %v3876
        %v4225 = vpack.c.b16 %v3883, %v3877
        %v4226 = vpack.c.b16 %v3884, %v3878
        %v4227 = vpack.c.b16 %v3885, %v3879
        %v4228 = vpack.c.b16 %v3886, %v3880
        %v4229 = vpack.c.b16 %v3887, %v3881
        %v4230 = vpack.c.b16 %v3894, %v3888
        %v4231 = vpack.c.b16 %v3895, %v3889
        %v4232 = vpack.c.b16 %v3896, %v3890
        %v4233 = vpack.c.b16 %v3897, %v3891
        %v4234 = vpack.c.b16 %v3898, %v3892
        %v4235 = vpack.c.b16 %v3899, %v3893
        %v4236 = vpack.c.b16 %v3906, %v3900
        %v4237 = vpack.c.b16 %v3907, %v3901
        %v4238 = vpack.c.b16 %v3908, %v3902
        %v4239 = vpack.c.b16 %v3909, %v3903
        %v4240 = vpack.c.b16 %v3910, %v3904
        %v4241 = vpack.c.b16 %v3911, %v3905
        %v4242 = vpack.c.b16 %v3918, %v3912
        %v4243 = vpack.c.b16 %v3919, %v3913
        %v4244 = vpack.c.b16 %v3920, %v3914
        %v4245 = vpack.c.b16 %v3921, %v3915
        %v4246 = vpack.c.b16 %v3922, %v3916
        %v4247 = vpack.c.b16 %v3923, %v3917
        %v4248 = vpack.c.b16 %v3930, %v3924
        %v4249 = vpack.c.b16 %v3931, %v3925
        %v4250 = vpack.c.b16 %v3932, %v3926
        %v4251 = vpack.c.b16 %v3933, %v3927
        %v4252 = vpack.c.b16 %v3934, %v3928
        %v4253 = vpack.c.b16 %v3935, %v3929
        %v4254 = vpack.c.b16 %v3942, %v3936
        %v4255 = vpack.c.b16 %v3943, %v3937
        %v4256 = vpack.c.b16 %v3944, %v3938
        %v4257 = vpack.c.b16 %v3945, %v3939
        %v4258 = vpack.c.b16 %v3946, %v3940
        %v4259 = vpack.c.b16 %v3947, %v3941
        %v4260 = vpack.c.b16 %v3954, %v3948
        %v4261 = vpack.c.b16 %v3955, %v3949
        %v4262 = vpack.c.b16 %v3956, %v3950
        %v4263 = vpack.c.b16 %v3957, %v3951
        %v4264 = vpack.c.b16 %v3958, %v3952
        %v4265 = vpack.c.b16 %v3959, %v3953
        %v4266 = vpack.c.b16 %v3966, %v3960
        %v4267 = vpack.c.b16 %v3967, %v3961
        %v4268 = vpack.c.b16 %v3968, %v3962
        %v4269 = vpack.c.b16 %v3969, %v3963
        %v4270 = vpack.c.b16 %v3970, %v3964
        %v4271 = vpack.c.b16 %v3971, %v3965
        %v4272 = vpack.c.b16 %v3978, %v3972
        %v4273 = vpack.c.b16 %v3979, %v3973
        %v4274 = vpack.c.b16 %v3980, %v3974
        %v4275 = vpack.c.b16 %v3981, %v3975
        %v4276 = vpack.c.b16 %v3982, %v3976
        %v4277 = vpack.c.b16 %v3983, %v3977
        %v4278 = vpack.c.b16 %v3990, %v3984
        %v4279 = vpack.c.b16 %v3991, %v3985
        %v4280 = vpack.c.b16 %v3992, %v3986
        %v4281 = vpack.c.b16 %v3993, %v3987
        %v4282 = vpack.c.b16 %v3994, %v3988
        %v4283 = vpack.c.b16 %v3995, %v3989
        %4572 = vmatpush.bf16.msra.mxu0 %v4038
        %4573 = vmatpush.bf16.msra.mxu0 %v4032
        %4574 = vmatpush.bf16.msra.mxu0 %v4026
        %4575 = vmatpush.bf16.msra.mxu0 %v4020
        %4576 = vmatpush.bf16.msra.mxu0 %v4014
        %4577 = vmatpush.bf16.msra.mxu0 %v4008
        %4578 = vmatpush.bf16.msra.mxu0 %v4002
        %4579 = vmatpush.bf16.msra.mxu0 %v3996
        %4580 = vmatmul.bf16.gmra.mxu0 %v3126
        %v4581 = vpop.f32.mrf.mxu0
        %v4582 = vadd.f32 0.0, %v4581
        %v4583 = vpop.f32.mrf.mxu0
        %4584 = vdwg.mxu0
        %4585 = vmatpush.bf16.msra.mxu0 %v4086
        %4586 = vmatpush.bf16.msra.mxu0 %v4080
        %4587 = vmatpush.bf16.msra.mxu0 %v4074
        %4588 = vmatpush.bf16.msra.mxu0 %v4068
        %4589 = vmatpush.bf16.msra.mxu0 %v4062
        %4590 = vmatpush.bf16.msra.mxu0 %v4056
        %4591 = vmatpush.bf16.msra.mxu0 %v4050
        %4592 = vmatpush.bf16.msra.mxu0 %v4044
        %4593 = vmatmul.bf16.gmra.mxu0 %v3127
        %v4594 = vpop.f32.mrf.mxu0
        %v4595 = vadd.f32 %v4582, %v4594
        %v4596 = vpop.f32.mrf.mxu0
        %4597 = vdwg.mxu0
        %4598 = vmatpush.bf16.msra.mxu0 %v4134
        %4599 = vmatpush.bf16.msra.mxu0 %v4128
        %4600 = vmatpush.bf16.msra.mxu0 %v4122
        %4601 = vmatpush.bf16.msra.mxu0 %v4116
        %4602 = vmatpush.bf16.msra.mxu0 %v4110
        %4603 = vmatpush.bf16.msra.mxu0 %v4104
        %4604 = vmatpush.bf16.msra.mxu0 %v4098
        %4605 = vmatpush.bf16.msra.mxu0 %v4092
        %4606 = vmatmul.bf16.gmra.mxu0 %v3128
        %v4607 = vpop.f32.mrf.mxu0
        %v4608 = vadd.f32 %v4595, %v4607
        %v4609 = vpop.f32.mrf.mxu0
        %4610 = vdwg.mxu0
        %4611 = vmatpush.bf16.msra.mxu0 %v4182
        %4612 = vmatpush.bf16.msra.mxu0 %v4176
        %4613 = vmatpush.bf16.msra.mxu0 %v4170
        %4614 = vmatpush.bf16.msra.mxu0 %v4164
        %4615 = vmatpush.bf16.msra.mxu0 %v4158
        %4616 = vmatpush.bf16.msra.mxu0 %v4152
        %4617 = vmatpush.bf16.msra.mxu0 %v4146
        %4618 = vmatpush.bf16.msra.mxu0 %v4140
        %4619 = vmatmul.bf16.gmra.mxu0 %v3129
        %v4620 = vpop.f32.mrf.mxu0
        %v4621 = vadd.f32 %v4608, %v4620
        %v4622 = vpop.f32.mrf.mxu0
        %4623 = vdwg.mxu0
        %4624 = vmatpush.bf16.msra.mxu0 %v4230
        %4625 = vmatpush.bf16.msra.mxu0 %v4224
        %4626 = vmatpush.bf16.msra.mxu0 %v4218
        %4627 = vmatpush.bf16.msra.mxu0 %v4212
        %4628 = vmatpush.bf16.msra.mxu0 %v4206
        %4629 = vmatpush.bf16.msra.mxu0 %v4200
        %4630 = vmatpush.bf16.msra.mxu0 %v4194
        %4631 = vmatpush.bf16.msra.mxu0 %v4188
        %4632 = vmatmul.bf16.gmra.mxu0 %v3130
        %v4633 = vpop.f32.mrf.mxu0
        %v4634 = vadd.f32 %v4621, %v4633
        %v4635 = vpop.f32.mrf.mxu0
        %4636 = vdwg.mxu0
        %4637 = vmatpush.bf16.msra.mxu0 %v4278
        %4638 = vmatpush.bf16.msra.mxu0 %v4272
        %4639 = vmatpush.bf16.msra.mxu0 %v4266
        %4640 = vmatpush.bf16.msra.mxu0 %v4260
        %4641 = vmatpush.bf16.msra.mxu0 %v4254
        %4642 = vmatpush.bf16.msra.mxu0 %v4248
        %4643 = vmatpush.bf16.msra.mxu0 %v4242
        %4644 = vmatpush.bf16.msra.mxu0 %v4236
        %4645 = vmatmul.bf16.gmra.mxu0 %v3131
        %v4646 = vpop.f32.mrf.mxu0
        %v4647 = vadd.f32 %v4634, %v4646
        %v4648 = vpop.f32.mrf.mxu0
        %4649 = vdwg.mxu0
        %4650 = vmatpush.bf16.msra.mxu0 %v4039
        %4651 = vmatpush.bf16.msra.mxu0 %v4033
        %4652 = vmatpush.bf16.msra.mxu0 %v4027
        %4653 = vmatpush.bf16.msra.mxu0 %v4021
        %4654 = vmatpush.bf16.msra.mxu0 %v4015
        %4655 = vmatpush.bf16.msra.mxu0 %v4009
        %4656 = vmatpush.bf16.msra.mxu0 %v4003
        %4657 = vmatpush.bf16.msra.mxu0 %v3997
        %4658 = vmatmul.bf16.gmra.mxu0 %v3126
        %v4659 = vpop.f32.mrf.mxu0
        %v4660 = vadd.f32 0.0, %v4659
        %v4661 = vpop.f32.mrf.mxu0
        %4662 = vdwg.mxu0
        %4663 = vmatpush.bf16.msra.mxu0 %v4087
        %4664 = vmatpush.bf16.msra.mxu0 %v4081
        %4665 = vmatpush.bf16.msra.mxu0 %v4075
        %4666 = vmatpush.bf16.msra.mxu0 %v4069
        %4667 = vmatpush.bf16.msra.mxu0 %v4063
        %4668 = vmatpush.bf16.msra.mxu0 %v4057
        %4669 = vmatpush.bf16.msra.mxu0 %v4051
        %4670 = vmatpush.bf16.msra.mxu0 %v4045
        %4671 = vmatmul.bf16.gmra.mxu0 %v3127
        %v4672 = vpop.f32.mrf.mxu0
        %v4673 = vadd.f32 %v4660, %v4672
        %v4674 = vpop.f32.mrf.mxu0
        %4675 = vdwg.mxu0
        %4676 = vmatpush.bf16.msra.mxu0 %v4135
        %4677 = vmatpush.bf16.msra.mxu0 %v4129
        %4678 = vmatpush.bf16.msra.mxu0 %v4123
        %4679 = vmatpush.bf16.msra.mxu0 %v4117
        %4680 = vmatpush.bf16.msra.mxu0 %v4111
        %4681 = vmatpush.bf16.msra.mxu0 %v4105
        %4682 = vmatpush.bf16.msra.mxu0 %v4099
        %4683 = vmatpush.bf16.msra.mxu0 %v4093
        %4684 = vmatmul.bf16.gmra.mxu0 %v3128
        %v4685 = vpop.f32.mrf.mxu0
        %v4686 = vadd.f32 %v4673, %v4685
        %v4687 = vpop.f32.mrf.mxu0
        %4688 = vdwg.mxu0
        %4689 = vmatpush.bf16.msra.mxu0 %v4183
        %4690 = vmatpush.bf16.msra.mxu0 %v4177
        %4691 = vmatpush.bf16.msra.mxu0 %v4171
        %4692 = vmatpush.bf16.msra.mxu0 %v4165
        %4693 = vmatpush.bf16.msra.mxu0 %v4159
        %4694 = vmatpush.bf16.msra.mxu0 %v4153
        %4695 = vmatpush.bf16.msra.mxu0 %v4147
        %4696 = vmatpush.bf16.msra.mxu0 %v4141
        %4697 = vmatmul.bf16.gmra.mxu0 %v3129
        %v4698 = vpop.f32.mrf.mxu0
        %v4699 = vadd.f32 %v4686, %v4698
        %v4700 = vpop.f32.mrf.mxu0
        %4701 = vdwg.mxu0
        %4702 = vmatpush.bf16.msra.mxu0 %v4231
        %4703 = vmatpush.bf16.msra.mxu0 %v4225
        %4704 = vmatpush.bf16.msra.mxu0 %v4219
        %4705 = vmatpush.bf16.msra.mxu0 %v4213
        %4706 = vmatpush.bf16.msra.mxu0 %v4207
        %4707 = vmatpush.bf16.msra.mxu0 %v4201
        %4708 = vmatpush.bf16.msra.mxu0 %v4195
        %4709 = vmatpush.bf16.msra.mxu0 %v4189
        %4710 = vmatmul.bf16.gmra.mxu0 %v3130
        %v4711 = vpop.f32.mrf.mxu0
        %v4712 = vadd.f32 %v4699, %v4711
        %v4713 = vpop.f32.mrf.mxu0
        %4714 = vdwg.mxu0
        %4715 = vmatpush.bf16.msra.mxu0 %v4279
        %4716 = vmatpush.bf16.msra.mxu0 %v4273
        %4717 = vmatpush.bf16.msra.mxu0 %v4267
        %4718 = vmatpush.bf16.msra.mxu0 %v4261
        %4719 = vmatpush.bf16.msra.mxu0 %v4255
        %4720 = vmatpush.bf16.msra.mxu0 %v4249
        %4721 = vmatpush.bf16.msra.mxu0 %v4243
        %4722 = vmatpush.bf16.msra.mxu0 %v4237
        %4723 = vmatmul.bf16.gmra.mxu0 %v3131
        %v4724 = vpop.f32.mrf.mxu0
        %v4725 = vadd.f32 %v4712, %v4724
        %v4726 = vpop.f32.mrf.mxu0
        %4727 = vdwg.mxu0
        %4728 = vmatpush.bf16.msra.mxu0 %v4040
        %4729 = vmatpush.bf16.msra.mxu0 %v4034
        %4730 = vmatpush.bf16.msra.mxu0 %v4028
        %4731 = vmatpush.bf16.msra.mxu0 %v4022
        %4732 = vmatpush.bf16.msra.mxu0 %v4016
        %4733 = vmatpush.bf16.msra.mxu0 %v4010
        %4734 = vmatpush.bf16.msra.mxu0 %v4004
        %4735 = vmatpush.bf16.msra.mxu0 %v3998
        %4736 = vmatmul.bf16.gmra.mxu0 %v3126
        %v4737 = vpop.f32.mrf.mxu0
        %v4738 = vadd.f32 0.0, %v4737
        %v4739 = vpop.f32.mrf.mxu0
        %4740 = vdwg.mxu0
        %4741 = vmatpush.bf16.msra.mxu0 %v4088
        %4742 = vmatpush.bf16.msra.mxu0 %v4082
        %4743 = vmatpush.bf16.msra.mxu0 %v4076
        %4744 = vmatpush.bf16.msra.mxu0 %v4070
        %4745 = vmatpush.bf16.msra.mxu0 %v4064
        %4746 = vmatpush.bf16.msra.mxu0 %v4058
        %4747 = vmatpush.bf16.msra.mxu0 %v4052
        %4748 = vmatpush.bf16.msra.mxu0 %v4046
        %4749 = vmatmul.bf16.gmra.mxu0 %v3127
        %v4750 = vpop.f32.mrf.mxu0
        %v4751 = vadd.f32 %v4738, %v4750
        %v4752 = vpop.f32.mrf.mxu0
        %4753 = vdwg.mxu0
        %4754 = vmatpush.bf16.msra.mxu0 %v4136
        %4755 = vmatpush.bf16.msra.mxu0 %v4130
        %4756 = vmatpush.bf16.msra.mxu0 %v4124
        %4757 = vmatpush.bf16.msra.mxu0 %v4118
        %4758 = vmatpush.bf16.msra.mxu0 %v4112
        %4759 = vmatpush.bf16.msra.mxu0 %v4106
        %4760 = vmatpush.bf16.msra.mxu0 %v4100
        %4761 = vmatpush.bf16.msra.mxu0 %v4094
        %4762 = vmatmul.bf16.gmra.mxu0 %v3128
        %v4763 = vpop.f32.mrf.mxu0
        %v4764 = vadd.f32 %v4751, %v4763
        %v4765 = vpop.f32.mrf.mxu0
        %4766 = vdwg.mxu0
        %4767 = vmatpush.bf16.msra.mxu0 %v4184
        %4768 = vmatpush.bf16.msra.mxu0 %v4178
        %4769 = vmatpush.bf16.msra.mxu0 %v4172
        %4770 = vmatpush.bf16.msra.mxu0 %v4166
        %4771 = vmatpush.bf16.msra.mxu0 %v4160
        %4772 = vmatpush.bf16.msra.mxu0 %v4154
        %4773 = vmatpush.bf16.msra.mxu0 %v4148
        %4774 = vmatpush.bf16.msra.mxu0 %v4142
        %4775 = vmatmul.bf16.gmra.mxu0 %v3129
        %v4776 = vpop.f32.mrf.mxu0
        %v4777 = vadd.f32 %v4764, %v4776
        %v4778 = vpop.f32.mrf.mxu0
        %4779 = vdwg.mxu0
        %4780 = vmatpush.bf16.msra.mxu0 %v4232
        %4781 = vmatpush.bf16.msra.mxu0 %v4226
        %4782 = vmatpush.bf16.msra.mxu0 %v4220
        %4783 = vmatpush.bf16.msra.mxu0 %v4214
        %4784 = vmatpush.bf16.msra.mxu0 %v4208
        %4785 = vmatpush.bf16.msra.mxu0 %v4202
        %4786 = vmatpush.bf16.msra.mxu0 %v4196
        %4787 = vmatpush.bf16.msra.mxu0 %v4190
        %4788 = vmatmul.bf16.gmra.mxu0 %v3130
        %v4789 = vpop.f32.mrf.mxu0
        %v4790 = vadd.f32 %v4777, %v4789
        %v4791 = vpop.f32.mrf.mxu0
        %4792 = vdwg.mxu0
        %4793 = vmatpush.bf16.msra.mxu0 %v4280
        %4794 = vmatpush.bf16.msra.mxu0 %v4274
        %4795 = vmatpush.bf16.msra.mxu0 %v4268
        %4796 = vmatpush.bf16.msra.mxu0 %v4262
        %4797 = vmatpush.bf16.msra.mxu0 %v4256
        %4798 = vmatpush.bf16.msra.mxu0 %v4250
        %4799 = vmatpush.bf16.msra.mxu0 %v4244
        %4800 = vmatpush.bf16.msra.mxu0 %v4238
        %4801 = vmatmul.bf16.gmra.mxu0 %v3131
        %v4802 = vpop.f32.mrf.mxu0
        %v4803 = vadd.f32 %v4790, %v4802
        %v4804 = vpop.f32.mrf.mxu0
        %4805 = vdwg.mxu0
        %4806 = vmatpush.bf16.msra.mxu0 %v4041
        %4807 = vmatpush.bf16.msra.mxu0 %v4035
        %4808 = vmatpush.bf16.msra.mxu0 %v4029
        %4809 = vmatpush.bf16.msra.mxu0 %v4023
        %4810 = vmatpush.bf16.msra.mxu0 %v4017
        %4811 = vmatpush.bf16.msra.mxu0 %v4011
        %4812 = vmatpush.bf16.msra.mxu0 %v4005
        %4813 = vmatpush.bf16.msra.mxu0 %v3999
        %4814 = vmatmul.bf16.gmra.mxu0 %v3126
        %v4815 = vpop.f32.mrf.mxu0
        %v4816 = vadd.f32 0.0, %v4815
        %v4817 = vpop.f32.mrf.mxu0
        %4818 = vdwg.mxu0
        %4819 = vmatpush.bf16.msra.mxu0 %v4089
        %4820 = vmatpush.bf16.msra.mxu0 %v4083
        %4821 = vmatpush.bf16.msra.mxu0 %v4077
        %4822 = vmatpush.bf16.msra.mxu0 %v4071
        %4823 = vmatpush.bf16.msra.mxu0 %v4065
        %4824 = vmatpush.bf16.msra.mxu0 %v4059
        %4825 = vmatpush.bf16.msra.mxu0 %v4053
        %4826 = vmatpush.bf16.msra.mxu0 %v4047
        %4827 = vmatmul.bf16.gmra.mxu0 %v3127
        %v4828 = vpop.f32.mrf.mxu0
        %v4829 = vadd.f32 %v4816, %v4828
        %v4830 = vpop.f32.mrf.mxu0
        %4831 = vdwg.mxu0
        %4832 = vmatpush.bf16.msra.mxu0 %v4137
        %4833 = vmatpush.bf16.msra.mxu0 %v4131
        %4834 = vmatpush.bf16.msra.mxu0 %v4125
        %4835 = vmatpush.bf16.msra.mxu0 %v4119
        %4836 = vmatpush.bf16.msra.mxu0 %v4113
        %4837 = vmatpush.bf16.msra.mxu0 %v4107
        %4838 = vmatpush.bf16.msra.mxu0 %v4101
        %4839 = vmatpush.bf16.msra.mxu0 %v4095
        %4840 = vmatmul.bf16.gmra.mxu0 %v3128
        %v4841 = vpop.f32.mrf.mxu0
        %v4842 = vadd.f32 %v4829, %v4841
        %v4843 = vpop.f32.mrf.mxu0
        %4844 = vdwg.mxu0
        %4845 = vmatpush.bf16.msra.mxu0 %v4185
        %4846 = vmatpush.bf16.msra.mxu0 %v4179
        %4847 = vmatpush.bf16.msra.mxu0 %v4173
        %4848 = vmatpush.bf16.msra.mxu0 %v4167
        %4849 = vmatpush.bf16.msra.mxu0 %v4161
        %4850 = vmatpush.bf16.msra.mxu0 %v4155
        %4851 = vmatpush.bf16.msra.mxu0 %v4149
        %4852 = vmatpush.bf16.msra.mxu0 %v4143
        %4853 = vmatmul.bf16.gmra.mxu0 %v3129
        %v4854 = vpop.f32.mrf.mxu0
        %v4855 = vadd.f32 %v4842, %v4854
        %v4856 = vpop.f32.mrf.mxu0
        %4857 = vdwg.mxu0
        %4858 = vmatpush.bf16.msra.mxu0 %v4233
        %4859 = vmatpush.bf16.msra.mxu0 %v4227
        %4860 = vmatpush.bf16.msra.mxu0 %v4221
        %4861 = vmatpush.bf16.msra.mxu0 %v4215
        %4862 = vmatpush.bf16.msra.mxu0 %v4209
        %4863 = vmatpush.bf16.msra.mxu0 %v4203
        %4864 = vmatpush.bf16.msra.mxu0 %v4197
        %4865 = vmatpush.bf16.msra.mxu0 %v4191
        %4866 = vmatmul.bf16.gmra.mxu0 %v3130
        %v4867 = vpop.f32.mrf.mxu0
        %v4868 = vadd.f32 %v4855, %v4867
        %v4869 = vpop.f32.mrf.mxu0
        %4870 = vdwg.mxu0
        %4871 = vmatpush.bf16.msra.mxu0 %v4281
        %4872 = vmatpush.bf16.msra.mxu0 %v4275
        %4873 = vmatpush.bf16.msra.mxu0 %v4269
        %4874 = vmatpush.bf16.msra.mxu0 %v4263
        %4875 = vmatpush.bf16.msra.mxu0 %v4257
        %4876 = vmatpush.bf16.msra.mxu0 %v4251
        %4877 = vmatpush.bf16.msra.mxu0 %v4245
        %4878 = vmatpush.bf16.msra.mxu0 %v4239
        %4879 = vmatmul.bf16.gmra.mxu0 %v3131
        %v4880 = vpop.f32.mrf.mxu0
        %v4881 = vadd.f32 %v4868, %v4880
        %v4882 = vpop.f32.mrf.mxu0
        %4883 = vdwg.mxu0
        %4884 = vmatpush.bf16.msra.mxu0 %v4042
        %4885 = vmatpush.bf16.msra.mxu0 %v4036
        %4886 = vmatpush.bf16.msra.mxu0 %v4030
        %4887 = vmatpush.bf16.msra.mxu0 %v4024
        %4888 = vmatpush.bf16.msra.mxu0 %v4018
        %4889 = vmatpush.bf16.msra.mxu0 %v4012
        %4890 = vmatpush.bf16.msra.mxu0 %v4006
        %4891 = vmatpush.bf16.msra.mxu0 %v4000
        %4892 = vmatmul.bf16.gmra.mxu0 %v3126
        %v4893 = vpop.f32.mrf.mxu0
        %v4894 = vadd.f32 0.0, %v4893
        %v4895 = vpop.f32.mrf.mxu0
        %4896 = vdwg.mxu0
        %4897 = vmatpush.bf16.msra.mxu0 %v4090
        %4898 = vmatpush.bf16.msra.mxu0 %v4084
        %4899 = vmatpush.bf16.msra.mxu0 %v4078
        %4900 = vmatpush.bf16.msra.mxu0 %v4072
        %4901 = vmatpush.bf16.msra.mxu0 %v4066
        %4902 = vmatpush.bf16.msra.mxu0 %v4060
        %4903 = vmatpush.bf16.msra.mxu0 %v4054
        %4904 = vmatpush.bf16.msra.mxu0 %v4048
        %4905 = vmatmul.bf16.gmra.mxu0 %v3127
        %v4906 = vpop.f32.mrf.mxu0
        %v4907 = vadd.f32 %v4894, %v4906
        %v4908 = vpop.f32.mrf.mxu0
        %4909 = vdwg.mxu0
        %4910 = vmatpush.bf16.msra.mxu0 %v4138
        %4911 = vmatpush.bf16.msra.mxu0 %v4132
        %4912 = vmatpush.bf16.msra.mxu0 %v4126
        %4913 = vmatpush.bf16.msra.mxu0 %v4120
        %4914 = vmatpush.bf16.msra.mxu0 %v4114
        %4915 = vmatpush.bf16.msra.mxu0 %v4108
        %4916 = vmatpush.bf16.msra.mxu0 %v4102
        %4917 = vmatpush.bf16.msra.mxu0 %v4096
        %4918 = vmatmul.bf16.gmra.mxu0 %v3128
        %v4919 = vpop.f32.mrf.mxu0
        %v4920 = vadd.f32 %v4907, %v4919
        %v4921 = vpop.f32.mrf.mxu0
        %4922 = vdwg.mxu0
        %4923 = vmatpush.bf16.msra.mxu0 %v4186
        %4924 = vmatpush.bf16.msra.mxu0 %v4180
        %4925 = vmatpush.bf16.msra.mxu0 %v4174
        %4926 = vmatpush.bf16.msra.mxu0 %v4168
        %4927 = vmatpush.bf16.msra.mxu0 %v4162
        %4928 = vmatpush.bf16.msra.mxu0 %v4156
        %4929 = vmatpush.bf16.msra.mxu0 %v4150
        %4930 = vmatpush.bf16.msra.mxu0 %v4144
        %4931 = vmatmul.bf16.gmra.mxu0 %v3129
        %v4932 = vpop.f32.mrf.mxu0
        %v4933 = vadd.f32 %v4920, %v4932
        %v4934 = vpop.f32.mrf.mxu0
        %4935 = vdwg.mxu0
        %4936 = vmatpush.bf16.msra.mxu0 %v4234
        %4937 = vmatpush.bf16.msra.mxu0 %v4228
        %4938 = vmatpush.bf16.msra.mxu0 %v4222
        %4939 = vmatpush.bf16.msra.mxu0 %v4216
        %4940 = vmatpush.bf16.msra.mxu0 %v4210
        %4941 = vmatpush.bf16.msra.mxu0 %v4204
        %4942 = vmatpush.bf16.msra.mxu0 %v4198
        %4943 = vmatpush.bf16.msra.mxu0 %v4192
        %4944 = vmatmul.bf16.gmra.mxu0 %v3130
        %v4945 = vpop.f32.mrf.mxu0
        %v4946 = vadd.f32 %v4933, %v4945
        %v4947 = vpop.f32.mrf.mxu0
        %4948 = vdwg.mxu0
        %4949 = vmatpush.bf16.msra.mxu0 %v4282
        %4950 = vmatpush.bf16.msra.mxu0 %v4276
        %4951 = vmatpush.bf16.msra.mxu0 %v4270
        %4952 = vmatpush.bf16.msra.mxu0 %v4264
        %4953 = vmatpush.bf16.msra.mxu0 %v4258
        %4954 = vmatpush.bf16.msra.mxu0 %v4252
        %4955 = vmatpush.bf16.msra.mxu0 %v4246
        %4956 = vmatpush.bf16.msra.mxu0 %v4240
        %4957 = vmatmul.bf16.gmra.mxu0 %v3131
        %v4958 = vpop.f32.mrf.mxu0
        %v4959 = vadd.f32 %v4946, %v4958
        %v4960 = vpop.f32.mrf.mxu0
        %4961 = vdwg.mxu0
        %4962 = vmatpush.bf16.msra.mxu0 %v4043
        %4963 = vmatpush.bf16.msra.mxu0 %v4037
        %4964 = vmatpush.bf16.msra.mxu0 %v4031
        %4965 = vmatpush.bf16.msra.mxu0 %v4025
        %4966 = vmatpush.bf16.msra.mxu0 %v4019
        %4967 = vmatpush.bf16.msra.mxu0 %v4013
        %4968 = vmatpush.bf16.msra.mxu0 %v4007
        %4969 = vmatpush.bf16.msra.mxu0 %v4001
        %4970 = vmatmul.bf16.gmra.mxu0 %v3126
        %v4971 = vpop.f32.mrf.mxu0
        %v4972 = vadd.f32 0.0, %v4971
        %v4973 = vpop.f32.mrf.mxu0
        %4974 = vdwg.mxu0
        %4975 = vmatpush.bf16.msra.mxu0 %v4091
        %4976 = vmatpush.bf16.msra.mxu0 %v4085
        %4977 = vmatpush.bf16.msra.mxu0 %v4079
        %4978 = vmatpush.bf16.msra.mxu0 %v4073
        %4979 = vmatpush.bf16.msra.mxu0 %v4067
        %4980 = vmatpush.bf16.msra.mxu0 %v4061
        %4981 = vmatpush.bf16.msra.mxu0 %v4055
        %4982 = vmatpush.bf16.msra.mxu0 %v4049
        %4983 = vmatmul.bf16.gmra.mxu0 %v3127
        %v4984 = vpop.f32.mrf.mxu0
        %v4985 = vadd.f32 %v4972, %v4984
        %v4986 = vpop.f32.mrf.mxu0
        %4987 = vdwg.mxu0
        %4988 = vmatpush.bf16.msra.mxu0 %v4139
        %4989 = vmatpush.bf16.msra.mxu0 %v4133
        %4990 = vmatpush.bf16.msra.mxu0 %v4127
        %4991 = vmatpush.bf16.msra.mxu0 %v4121
        %4992 = vmatpush.bf16.msra.mxu0 %v4115
        %4993 = vmatpush.bf16.msra.mxu0 %v4109
        %4994 = vmatpush.bf16.msra.mxu0 %v4103
        %4995 = vmatpush.bf16.msra.mxu0 %v4097
        %4996 = vmatmul.bf16.gmra.mxu0 %v3128
        %v4997 = vpop.f32.mrf.mxu0
        %v4998 = vadd.f32 %v4985, %v4997
        %v4999 = vpop.f32.mrf.mxu0
        %5000 = vdwg.mxu0
        %5001 = vmatpush.bf16.msra.mxu0 %v4187
        %5002 = vmatpush.bf16.msra.mxu0 %v4181
        %5003 = vmatpush.bf16.msra.mxu0 %v4175
        %5004 = vmatpush.bf16.msra.mxu0 %v4169
        %5005 = vmatpush.bf16.msra.mxu0 %v4163
        %5006 = vmatpush.bf16.msra.mxu0 %v4157
        %5007 = vmatpush.bf16.msra.mxu0 %v4151
        %5008 = vmatpush.bf16.msra.mxu0 %v4145
        %5009 = vmatmul.bf16.gmra.mxu0 %v3129
        %v5010 = vpop.f32.mrf.mxu0
        %v5011 = vadd.f32 %v4998, %v5010
        %v5012 = vpop.f32.mrf.mxu0
        %5013 = vdwg.mxu0
        %5014 = vmatpush.bf16.msra.mxu0 %v4235
        %5015 = vmatpush.bf16.msra.mxu0 %v4229
        %5016 = vmatpush.bf16.msra.mxu0 %v4223
        %5017 = vmatpush.bf16.msra.mxu0 %v4217
        %5018 = vmatpush.bf16.msra.mxu0 %v4211
        %5019 = vmatpush.bf16.msra.mxu0 %v4205
        %5020 = vmatpush.bf16.msra.mxu0 %v4199
        %5021 = vmatpush.bf16.msra.mxu0 %v4193
        %5022 = vmatmul.bf16.gmra.mxu0 %v3130
        %v5023 = vpop.f32.mrf.mxu0
        %v5024 = vadd.f32 %v5011, %v5023
        %v5025 = vpop.f32.mrf.mxu0
        %5026 = vdwg.mxu0
        %5027 = vmatpush.bf16.msra.mxu0 %v4283
        %5028 = vmatpush.bf16.msra.mxu0 %v4277
        %5029 = vmatpush.bf16.msra.mxu0 %v4271
        %5030 = vmatpush.bf16.msra.mxu0 %v4265
        %5031 = vmatpush.bf16.msra.mxu0 %v4259
        %5032 = vmatpush.bf16.msra.mxu0 %v4253
        %5033 = vmatpush.bf16.msra.mxu0 %v4247
        %5034 = vmatpush.bf16.msra.mxu0 %v4241
        %5035 = vmatmul.bf16.gmra.mxu0 %v3131
        %v5036 = vpop.f32.mrf.mxu0
        %v5037 = vadd.f32 %v5024, %v5036
        %v5038 = vpop.f32.mrf.mxu0
        %5039 = vdwg.mxu0
        %v5041 = vperm.slane %v1045, 0
        %v5042 = vperm.slane %v1045, 1
        %v5043 = vperm.slane %v1045, 2
        %v5044 = vperm.slane %v1045, 3
        %v5045 = vperm.slane %v1045, 4
        %v5046 = vperm.slane %v1045, 5
        %5053 = vmatpush.msra.mxu0 0.0
        %5054 = vmatpush.msra.mxu0 0.0
        %5055 = vmatpush.msra.mxu0 0.0
        %5056 = vmatpush.msra.mxu0 0.0
        %5057 = vmatpush.msra.mxu0 0.0
        %5058 = vmatpush.msra.mxu0 0.0
        %5059 = vmatpush.msra.mxu0 0.0
        %5060 = vmatpush.msra.mxu0 0.0
        %5061 = vmatpush.msra.mxu0 0.0
        %5062 = vmatpush.msra.mxu0 0.0
        %5063 = vmatpush.msra.mxu0 0.0
        %5064 = vmatpush.msra.mxu0 0.0
        %5065 = vmatpush.msra.mxu0 0.0
        %5066 = vmatpush.msra.mxu0 0.0
        %5067 = vmatpush.msra.mxu0 0.0
        %5068 = vmatpush.msra.mxu0 %v4647
        %5069 = vmatmul.f32.gmra.mxu0 %v2992
        %v5070 = vpop.f32.mrf.mxu0
        %v5071 = vadd.f32 %v5041, %v5070
        %5072 = vdwg.mxu0
        %5073 = vmatpush.msra.mxu0 0.0
        %5074 = vmatpush.msra.mxu0 0.0
        %5075 = vmatpush.msra.mxu0 0.0
        %5076 = vmatpush.msra.mxu0 0.0
        %5077 = vmatpush.msra.mxu0 0.0
        %5078 = vmatpush.msra.mxu0 0.0
        %5079 = vmatpush.msra.mxu0 0.0
        %5080 = vmatpush.msra.mxu0 0.0
        %5081 = vmatpush.msra.mxu0 0.0
        %5082 = vmatpush.msra.mxu0 0.0
        %5083 = vmatpush.msra.mxu0 0.0
        %5084 = vmatpush.msra.mxu0 0.0
        %5085 = vmatpush.msra.mxu0 0.0
        %5086 = vmatpush.msra.mxu0 0.0
        %5087 = vmatpush.msra.mxu0 0.0
        %5088 = vmatpush.msra.mxu0 %v4725
        %5089 = vmatmul.f32.gmra.mxu0 %v2992
        %v5090 = vpop.f32.mrf.mxu0
        %v5091 = vadd.f32 %v5042, %v5090
        %5092 = vdwg.mxu0
        %5093 = vmatpush.msra.mxu0 0.0
        %5094 = vmatpush.msra.mxu0 0.0
        %5095 = vmatpush.msra.mxu0 0.0
        %5096 = vmatpush.msra.mxu0 0.0
        %5097 = vmatpush.msra.mxu0 0.0
        %5098 = vmatpush.msra.mxu0 0.0
        %5099 = vmatpush.msra.mxu0 0.0
        %5100 = vmatpush.msra.mxu0 0.0
        %5101 = vmatpush.msra.mxu0 0.0
        %5102 = vmatpush.msra.mxu0 0.0
        %5103 = vmatpush.msra.mxu0 0.0
        %5104 = vmatpush.msra.mxu0 0.0
        %5105 = vmatpush.msra.mxu0 0.0
        %5106 = vmatpush.msra.mxu0 0.0
        %5107 = vmatpush.msra.mxu0 0.0
        %5108 = vmatpush.msra.mxu0 %v4803
        %5109 = vmatmul.f32.gmra.mxu0 %v2992
        %v5110 = vpop.f32.mrf.mxu0
        %v5111 = vadd.f32 %v5043, %v5110
        %5112 = vdwg.mxu0
        %5113 = vmatpush.msra.mxu0 0.0
        %5114 = vmatpush.msra.mxu0 0.0
        %5115 = vmatpush.msra.mxu0 0.0
        %5116 = vmatpush.msra.mxu0 0.0
        %5117 = vmatpush.msra.mxu0 0.0
        %5118 = vmatpush.msra.mxu0 0.0
        %5119 = vmatpush.msra.mxu0 0.0
        %5120 = vmatpush.msra.mxu0 0.0
        %5121 = vmatpush.msra.mxu0 0.0
        %5122 = vmatpush.msra.mxu0 0.0
        %5123 = vmatpush.msra.mxu0 0.0
        %5124 = vmatpush.msra.mxu0 0.0
        %5125 = vmatpush.msra.mxu0 0.0
        %5126 = vmatpush.msra.mxu0 0.0
        %5127 = vmatpush.msra.mxu0 0.0
        %5128 = vmatpush.msra.mxu0 %v4881
        %5129 = vmatmul.f32.gmra.mxu0 %v2992
        %v5130 = vpop.f32.mrf.mxu0
        %v5131 = vadd.f32 %v5044, %v5130
        %5132 = vdwg.mxu0
        %5133 = vmatpush.msra.mxu0 0.0
        %5134 = vmatpush.msra.mxu0 0.0
        %5135 = vmatpush.msra.mxu0 0.0
        %5136 = vmatpush.msra.mxu0 0.0
        %5137 = vmatpush.msra.mxu0 0.0
        %5138 = vmatpush.msra.mxu0 0.0
        %5139 = vmatpush.msra.mxu0 0.0
        %5140 = vmatpush.msra.mxu0 0.0
        %5141 = vmatpush.msra.mxu0 0.0
        %5142 = vmatpush.msra.mxu0 0.0
        %5143 = vmatpush.msra.mxu0 0.0
        %5144 = vmatpush.msra.mxu0 0.0
        %5145 = vmatpush.msra.mxu0 0.0
        %5146 = vmatpush.msra.mxu0 0.0
        %5147 = vmatpush.msra.mxu0 0.0
        %5148 = vmatpush.msra.mxu0 %v4959
        %5149 = vmatmul.f32.gmra.mxu0 %v2992
        %v5150 = vpop.f32.mrf.mxu0
        %v5151 = vadd.f32 %v5045, %v5150
        %5152 = vdwg.mxu0
        %5153 = vmatpush.msra.mxu0 0.0
        %5154 = vmatpush.msra.mxu0 0.0
        %5155 = vmatpush.msra.mxu0 0.0
        %5156 = vmatpush.msra.mxu0 0.0
        %5157 = vmatpush.msra.mxu0 0.0
        %5158 = vmatpush.msra.mxu0 0.0
        %5159 = vmatpush.msra.mxu0 0.0
        %5160 = vmatpush.msra.mxu0 0.0
        %5161 = vmatpush.msra.mxu0 0.0
        %5162 = vmatpush.msra.mxu0 0.0
        %5163 = vmatpush.msra.mxu0 0.0
        %5164 = vmatpush.msra.mxu0 0.0
        %5165 = vmatpush.msra.mxu0 0.0
        %5166 = vmatpush.msra.mxu0 0.0
        %5167 = vmatpush.msra.mxu0 0.0
        %5168 = vmatpush.msra.mxu0 %v5037
        %5169 = vmatmul.f32.gmra.mxu0 %v2992
        %v5170 = vpop.f32.mrf.mxu0
        %v5171 = vadd.f32 %v5046, %v5170
        %5172 = vdwg.mxu0
        %v5173 = vmax.f32 %v5071, 0.0
        %v5174 = vmax.f32 %v5091, 0.0
        %v5175 = vmax.f32 %v5111, 0.0
        %v5176 = vmax.f32 %v5131, 0.0
        %v5177 = vmax.f32 %v5151, 0.0
        %v5178 = vmax.f32 %v5171, 0.0
        %5180 = vset.pattern.permute.xlu0 0
        %5181 = vperm.xlu0 %5180, %v460
        %v5182 = vpop.permute.xlu0 %5181
        %v5184 = vmul.f32 %v5173, %v5182
        %v5185 = vmul.f32 %v5174, %v5182
        %v5186 = vmul.f32 %v5175, %v5182
        %v5187 = vmul.f32 %v5176, %v5182
        %v5188 = vmul.f32 %v5177, %v5182
        %v5189 = vmul.f32 %v5178, %v5182
        %5190 = vst [vmem:[%s450] sm:$0xff] %v5184
        %5191 = vst [vmem:[%s450 + $0x8] sm:$0xff] %v5185
        %5192 = vst [vmem:[%s450 + $0x10] sm:$0xff] %v5186
        %5193 = vst [vmem:[%s450 + $0x18] sm:$0xff] %v5187
        %5194 = vst [vmem:[%s450 + $0x20] sm:$0xff] %v5188
        %5195 = vst [vmem:[%s450 + $0x28] sm:$0xff] %v5189
        %s5196 = sand.u32 %s226, 1
        %s5197 = scalar_lea.sflag [#allocation4], %s5196
        %s5198 = sand.u32 %s226, 1
        %s5199 = smul.addr %s5198, 48
        %s5200 = scalar_lea.vmem [#allocation13], %s5199
        // Predicated region
        $region77: #{tpu_custom_call.1} parent=51 // pred_check
          %p5201 = pneg %p236
        $region78: #{tpu_custom_call.1} parent=51 // pred_check_branch
          %5203 = sbr.rel (%p5201) target = $region80
        $region79: #{tpu_custom_call.1} parent=51 // pred_region
          %5205 = vsyncadd %s5197, 0
          %s5206 = smul.addr %s30, 6
          %s5207 = smul.addr %s5206, 8
          %s5208 = scalar_lea.hbm %s8, %s5207
          %s5210 = sshll.u32 %s5200, 4
          %s5211 = int_to_ptr.vmem [resolvable:$true] %s5210
          %s5212 = sshll.u32 %s5208, 4
          %s5213 = int_to_ptr.hbm [resolvable:$true] %s5212
          %5215 = dma.vmem_to_hbm [thread:$0]  %s5211, 768, %s5213, %s5197
        $region80: #{tpu_custom_call.1} parent=51 // pred_fallthru
          _
      $region52: #{tpu_custom_call.1} parent=5 // pred_fallthru
        _
      %p5216 = scmp.le.s32.totalorder 2, %s25
      // Predicated region
      $region81: #{tpu_custom_call.1} parent=5 // pred_check
        %p5217 = pneg %p5216
      $region82: #{tpu_custom_call.1} parent=5 // pred_check_branch
        %5219 = sbr.rel (%p5217) target = $region84
      $region83: #{tpu_custom_call.1} parent=5 // pred_region
        %s5220 = ssub.s32 %s25, 2
        // Predicated region
        $region85: #{tpu_custom_call.1} parent=83 // pred_check
          %p5221 = pneg %p242
        $region86: #{tpu_custom_call.1} parent=83 // pred_check_branch
          %5223 = sbr.rel (%p5221) target = $region88
        $region87: #{tpu_custom_call.1} parent=83 // pred_region
          %s5224 = sand.u32 %s227, 1
          %s5225 = scalar_lea.sflag [#allocation4], %s5224
          %s5226 = sand.u32 %s227, 1
          %s5227 = smul.addr %s5226, 48
          %s5228 = scalar_lea.vmem [#allocation13], %s5227
          %5230 = dma.done %s5225, 768
        $region88: #{tpu_custom_call.1} parent=83 // pred_fallthru
          _
      $region84: #{tpu_custom_call.1} parent=5 // pred_fallthru
        _
    $region6: #{tpu_custom_call.1} parent=1 // loop_footer
      %s29 = sadd.s32 1, %s25
    $region7: #{tpu_custom_call.1} parent=1 // loop_footer_branch
      %24 = sbr.rel target = $region3
    $region8: #{tpu_custom_call.1} parent=1 // loop_exit
      _
    %5231 = vsyncpa [#allocation3], 1
    %s5232 = scalar_lea.sflag [#allocation3], 1
    %5233 = vsyncpa %s5232, 1
    %5234 = vsyncpa [#allocation6], 1
    %s5235 = scalar_lea.sflag [#allocation6], 1
    %5236 = vsyncpa %s5235, 1
    %5237 = vsyncpa [#allocation9], 1
    %5238 = vsyncpa [#allocation12], 1
    %5239 = vsyncpa [#allocation4], 1
    %s5240 = scalar_lea.sflag [#allocation4], 1
    %5241 = vsyncpa %s5240, 1

</llo_original>
